<compile_context>
chip_gen: v7x
topology: tpu7x:2x2x1
jax: 0.10.0
libtpu: 0.0.40
codegen_flags: <defaults>
</compile_context>

<pallas_src>
import functools

import jax
import jax.numpy as jnp
from jax.experimental import pallas as pl
from jax.experimental.pallas import tpu as pltpu


def _round_up(v, m):
    return (v + m - 1) // m * m


# ------------------------------ Pallas kernel --------------------------------

def _conv_block_kernel(mask_ref, xp_ref, w1_ref, b1_ref, w2_ref, b2_ref,
                       w3_ref, b3_ref, xout_ref, x2_ref, h1_ref, *, W):
    """Fused ConvBlock forward for one spatially padded, flattened image.

    Layout: flat row q = r*(W+2) + c over padded spatial coords (r, c); the
    wrapper zero-pads the image spatially (1 px ring) and pads rows to R_pad.

    mask_ref : (R_pad, 1)          f32   1 on interior pixels, 0 on halo/tail
    xp_ref   : (R_pad, Cin_p)      f32   padded input, channels zero-padded
    w1_ref   : (Cin_p, Cmed_p)     bf16  1x1 conv1 weight (BN1 scale folded)
    b1_ref   : (1, Cmed_p)         f32   BN1 bias
    w2_ref   : (9, Cmed_p, Cmed_p) bf16  3x3 conv2 taps, tap = ky*3+kx (BN2 folded)
    b2_ref   : (1, Cmed_p)         f32   BN2 bias
    w3_ref   : (Cmed_p, Cout_p)    bf16  1x1 conv3 weight (BN3 scale folded)
    b3_ref   : (1, Cout_p)         f32   BN3 bias
    xout_ref : (HW2, Cout_p)       bf16  'wide' output rows, HW2 = H*(W+2)
    x2_ref   : (HW2, Cmed_p)       bf16  'wide' intermediate x2 (post act2)
    h1_ref   : (R_pad, Cmed_p)     bf16  VMEM scratch: padded h1, flat
    """
    Wp = W + 2
    HW2 = xout_ref.shape[0]                      # H * (W + 2)

    # --- conv1 (1x1) + folded BN1 + ReLU over the padded image ---------------
    # The mask zeroes the bias on halo/tail rows (their matmul result is
    # exactly 0), so the padded ring of h1 is exactly zero with NO zero-fill
    # stores and NO per-row scatter: one dense contiguous store of h1.
    x_all = xp_ref[...]
    h1 = jnp.dot(x_all.astype(jnp.bfloat16), w1_ref[...],
                 preferred_element_type=jnp.float32)
    h1 = jnp.maximum(h1 + b1_ref[...], 0.0) * mask_ref[...]
    h1_ref[...] = h1.astype(jnp.bfloat16)

    # --- conv2 (3x3, pad=1): 9 contiguous row-slabs, back-to-back MXU dots ---
    # Slab for tap (ky, kx) starts at flat offset ky*(W+2)+kx; 'wide' output
    # row p = i*(W+2)+j is valid for j < W, the 2 halo columns are dropped by
    # the wrapper.  (On v6e/v7x these nine K=Cmed_p dots could be merged into
    # one K=9*Cmed_p dot via an im2col LHS; kept as a pure accumulation chain
    # here so v7x can use in-place MRB accumulation.)
    acc = None
    for ky in range(3):
        for kx in range(3):
            off = ky * Wp + kx
            slab = h1_ref[off:off + HW2, :]
            d = jnp.dot(slab, w2_ref[ky * 3 + kx],
                        preferred_element_type=jnp.float32)
            acc = d if acc is None else acc + d
    x2 = jnp.maximum(acc + b2_ref[...], 0.0)
    x2_b = x2.astype(jnp.bfloat16)
    x2_ref[...] = x2_b

    # --- conv3 (1x1) + folded BN3 + residual (raw f32 input) + ReLU ----------
    # Residual for wide row p is the unpadded pixel = padded flat row p + W+3
    # (another contiguous slab of the already-resident input tile).
    res = xp_ref[Wp + 1:Wp + 1 + HW2, :]
    y = jnp.dot(x2_b, w3_ref[...], preferred_element_type=jnp.float32)
    y = y + b3_ref[...] + res
    xout_ref[...] = jnp.maximum(y, 0.0).astype(jnp.bfloat16)


# ------------------------------ JAX glue --------------------------------------

def _fold_bn(gamma, beta, mean, var, eps=1e-6):
    scale = gamma / jnp.sqrt(var + eps)
    bias = beta - mean * scale
    return scale, bias


def _vmem_limit_bytes():
    # Per-generation VMEM budget (v5e/v6e: 128 MiB physical, v7x: 64 MiB).
    try:
        cap = int(pltpu.get_tpu_info().vmem_capacity_bytes)
    except Exception:
        cap = 64 * 1024 * 1024
    return min((cap * 3) // 4, 96 * 1024 * 1024)


def conv_block_forward(x_nchw, params):
    """ConvBlock.forward (res_conv=False, stride=1, groups=1, x_t=None).

    Returns (x, x2) in NCHW, matching the PyTorch module (return_x_2=True).
    """
    N, Cin, H, W = x_nchw.shape
    w1, w2, w3 = params["w1"], params["w2"], params["w3"]
    Cmed, Cout = w1.shape[1], w3.shape[1]
    assert Cin == Cout, "res_conv=False requires inplanes == outplanes"

    Cin_p = _round_up(Cin, 128)
    Cmed_p = _round_up(Cmed, 128)
    Cout_p = _round_up(Cout, 128)
    Wp = W + 2
    Rflat = (H + 2) * Wp                   # padded image, flattened rows
    R_pad = _round_up(Rflat + 2, 8)        # room so every 3x3 slab stays in-bounds
    HW2 = H * Wp                           # 'wide' output rows

    # Fold eval-mode BN scale into the conv weights; keep the biases separate.
    s1, b1 = _fold_bn(*params["bn1"])
    s2, b2 = _fold_bn(*params["bn2"])
    s3, b3 = _fold_bn(*params["bn3"])
    w1f = w1 * s1[None, :]                               # (Cin, Cmed)
    w2f = w2 * s2[None, None, None, :]                   # (3, 3, Cmed, Cmed) HWIO
    w3f = w3 * s3[None, :]                               # (Cmed, Cout)

    # Zero-pad channels to 128-lane multiples; weights in bf16 for the MXU.
    w1p = jnp.pad(w1f, ((0, Cin_p - Cin), (0, Cmed_p - Cmed))).astype(jnp.bfloat16)
    w2p = jnp.pad(w2f, ((0, 0), (0, 0), (0, Cmed_p - Cmed), (0, Cmed_p - Cmed)))
    w2p = w2p.reshape(9, Cmed_p, Cmed_p).astype(jnp.bfloat16)
    w3p = jnp.pad(w3f, ((0, Cmed_p - Cmed), (0, Cout_p - Cout))).astype(jnp.bfloat16)
    b1p = jnp.pad(b1, (0, Cmed_p - Cmed)).reshape(1, Cmed_p).astype(jnp.float32)
    b2p = jnp.pad(b2, (0, Cmed_p - Cmed)).reshape(1, Cmed_p).astype(jnp.float32)
    b3p = jnp.pad(b3, (0, Cout_p - Cout)).reshape(1, Cout_p).astype(jnp.float32)

    # NCHW -> NHWC, 1px spatial zero-pad, channel pad, flatten rows to R_pad.
    # TODO(synk): in a full model keep activations NHWC / channel-padded end to
    # end so these wrapper-side transposes/pads (extra HBM round trips) vanish.
    x_nhwc = jnp.transpose(x_nchw, (0, 2, 3, 1)).astype(jnp.float32)
    xp = jnp.pad(x_nhwc, ((0, 0), (1, 1), (1, 1), (0, Cin_p - Cin)))
    xp = xp.reshape(N, Rflat, Cin_p)
    xp = jnp.pad(xp, ((0, 0), (0, R_pad - Rflat), (0, 0)))

    # {0,1} interior mask over the flattened padded rows (halo + tail = 0).
    rr = jnp.arange(R_pad)
    r, c = rr // Wp, rr % Wp
    mask = ((r >= 1) & (r <= H) & (c >= 1) & (c <= W)).astype(jnp.float32)
    mask = mask.reshape(R_pad, 1)

    grid_spec = pltpu.PrefetchScalarGridSpec(
        num_scalar_prefetch=0,
        grid=(N,),                                          # one image per step
        in_specs=[
            pl.BlockSpec((R_pad, 1), lambda n: (0, 0)),              # mask
            pl.BlockSpec((None, R_pad, Cin_p), lambda n: (n, 0, 0)),  # x (padded)
            pl.BlockSpec((Cin_p, Cmed_p), lambda n: (0, 0)),          # w1
            pl.BlockSpec((1, Cmed_p), lambda n: (0, 0)),              # b1
            pl.BlockSpec((9, Cmed_p, Cmed_p), lambda n: (0, 0, 0)),   # w2
            pl.BlockSpec((1, Cmed_p), lambda n: (0, 0)),              # b2
            pl.BlockSpec((Cmed_p, Cout_p), lambda n: (0, 0)),         # w3
            pl.BlockSpec((1, Cout_p), lambda n: (0, 0)),              # b3
        ],
        out_specs=[
            pl.BlockSpec((None, HW2, Cout_p), lambda n: (n, 0, 0)),
            pl.BlockSpec((None, HW2, Cmed_p), lambda n: (n, 0, 0)),
        ],
        scratch_shapes=[pltpu.VMEM((R_pad, Cmed_p), jnp.bfloat16)],
    )

    flops = 2 * N * (R_pad * Cin_p * Cmed_p
                     + 9 * HW2 * Cmed_p * Cmed_p
                     + HW2 * Cmed_p * Cout_p)
    bytes_accessed = (N * R_pad * Cin_p * 4 + R_pad * 4
                      + 2 * (Cin_p * Cmed_p + 9 * Cmed_p * Cmed_p + Cmed_p * Cout_p)
                      + 4 * (2 * Cmed_p + Cout_p)
                      + 2 * N * HW2 * (Cout_p + Cmed_p))

    x_out_w, x2_w = pl.pallas_call(
        functools.partial(_conv_block_kernel, W=W),
        out_shape=(jax.ShapeDtypeStruct((N, HW2, Cout_p), jnp.bfloat16),
                   jax.ShapeDtypeStruct((N, HW2, Cmed_p), jnp.bfloat16)),
        grid_spec=grid_spec,
        compiler_params=pltpu.CompilerParams(
            dimension_semantics=("parallel",),               # megacore: split batch
            vmem_limit_bytes=_vmem_limit_bytes()),
        cost_estimate=pl.CostEstimate(flops=flops, transcendentals=0,
                                      bytes_accessed=bytes_accessed),
    )(mask, xp, w1p, b1p, w2p, b2p, w3p, b3p)

    # Drop the 2 halo columns + channel padding; fused with the NCHW transpose
    # into one XLA copy.
    # TODO(synk): res_conv=True (1x1 residual conv + BN), x_t input, stride>1,
    # groups>1, training-mode BN, drop_block/drop_path, and H-row tiling (with
    # a 1-row halo) for images too large for v7x's 64 MiB VMEM are not
    # implemented.
    x_out = x_out_w.reshape(N, H, Wp, Cout_p)[:, :, :W, :Cout]
    x2_out = x2_w.reshape(N, H, Wp, Cmed_p)[:, :, :W, :Cmed]
    x_out = jnp.transpose(x_out, (0, 3, 1, 2)).astype(jnp.float32)
    x2_out = jnp.transpose(x2_out, (0, 3, 1, 2)).astype(jnp.float32)
    return x_out, x2_out


# ------------------------- Pure-JAX reference (f32) ---------------------------

def conv_block_reference(x_nchw, params, eps=1e-6):
    dn = ("NHWC", "HWIO", "NHWC")
    hp = jax.lax.Precision.HIGHEST

    def bn(h, p):
        g, b, m, v = p
        return (h - m) * (g * jax.lax.rsqrt(v + eps)) + b

    x = jnp.transpose(x_nchw, (0, 2, 3, 1))
    h = jax.lax.conv_general_dilated(x, params["w1"][None, None], (1, 1), "VALID",
                                     dimension_numbers=dn, precision=hp)
    h = jax.nn.relu(bn(h, params["bn1"]))
    h = jax.lax.conv_general_dilated(h, params["w2"], (1, 1), ((1, 1), (1, 1)),
                                     dimension_numbers=dn, precision=hp)
    x2 = jax.nn.relu(bn(h, params["bn2"]))
    h = jax.lax.conv_general_dilated(x2, params["w3"][None, None], (1, 1), "VALID",
                                     dimension_numbers=dn, precision=hp)
    out = jax.nn.relu(bn(h, params["bn3"]) + x)
    return jnp.transpose(out, (0, 3, 1, 2)), jnp.transpose(x2, (0, 3, 1, 2))


# ------------------------------ Param init ------------------------------------

def init_params(key, inplanes, outplanes):
    expansion = 4
    med = outplanes // expansion
    ks = jax.random.split(key, 6)

    def bn_params(k, c):
        k1, k2, k3, k4 = jax.random.split(k, 4)
        gamma = jax.random.uniform(k1, (c,), jnp.float32, 0.5, 1.5)
        beta = jax.random.normal(k2, (c,), jnp.float32) * 0.1
        mean = jax.random.normal(k3, (c,), jnp.float32) * 0.1
        var = jax.random.uniform(k4, (c,), jnp.float32, 0.5, 1.5)
        return (gamma, beta, mean, var)

    # Matmul-friendly layouts (equivalent to the PyTorch OIHW weights):
    #   w1: (Cin, Cmed)      w2: (3, 3, Cmed, Cmed) HWIO      w3: (Cmed, Cout)
    w1 = jax.random.normal(ks[0], (inplanes, med), jnp.float32) * 0.1
    w2 = jax.random.normal(ks[1], (3, 3, med, med), jnp.float32) * 0.1
    w3 = jax.random.normal(ks[2], (med, outplanes), jnp.float32) * 0.1
    return {"w1": w1, "w2": w2, "w3": w3,
            "bn1": bn_params(ks[3], med),
            "bn2": bn_params(ks[4], med),
            "bn3": bn_params(ks[5], outplanes)}


# ---------------------------------- main --------------------------------------

if __name__ == "__main__":
    key = jax.random.PRNGKey(0)
    k_x, k_p = jax.random.split(key)

    # res_conv=False requires inplanes == outplanes; expansion=4 => med_planes=4.
    # NOTE: toy channel sizes are padding-dominated; tune tiling at production
    # channel counts (multiples of 128) before drawing perf conclusions.
    N, inplanes, outplanes, H, W = 2, 16, 16, 16, 16
    x = jax.random.normal(k_x, (N, inplanes, H, W), jnp.float32)   # NCHW
    params = init_params(k_p, inplanes, outplanes)

    x_out, x2_out = jax.jit(conv_block_forward)(x, params)
    jax.block_until_ready((x_out, x2_out))

    assert x_out.shape == (N, outplanes, H, W)
    assert x2_out.shape == (N, outplanes // 4, H, W)
    assert bool(jnp.all(jnp.isfinite(x_out))) and bool(jnp.all(jnp.isfinite(x2_out)))

    # Numerical check vs. a pure-JAX f32 reference (loose tol: bf16 MXU inputs
    # and bf16 kernel outputs).
    x_gold, x2_gold = jax.jit(conv_block_reference)(x, params)
    err_x = float(jnp.max(jnp.abs(x_out - x_gold)))
    err_x2 = float(jnp.max(jnp.abs(x2_out - x2_gold)))
    assert err_x < 1e-1 and err_x2 < 1e-1, (err_x, err_x2)

    print("KERNEL_OK")
</pallas_src>

<mosaic_0001>
module attributes {stable_mosaic.version = 11 : i64} {
  func.func @_conv_block_kernel(%arg0: i32, %arg1: memref<328x1xf32, #tpu.memory_space<vmem>>, %arg2: memref<1x328x128xf32, #tpu.memory_space<vmem>>, %arg3: memref<128x128xbf16, #tpu.memory_space<vmem>>, %arg4: memref<1x128xf32, #tpu.memory_space<vmem>>, %arg5: memref<9x128x128xbf16, #tpu.memory_space<vmem>>, %arg6: memref<1x128xf32, #tpu.memory_space<vmem>>, %arg7: memref<128x128xbf16, #tpu.memory_space<vmem>>, %arg8: memref<1x128xf32, #tpu.memory_space<vmem>>, %arg9: memref<1x288x128xbf16, #tpu.memory_space<vmem>>, %arg10: memref<1x288x128xbf16, #tpu.memory_space<vmem>>, %arg11: memref<328x128xbf16, #tpu.memory_space<vmem>>) attributes {dimension_semantics = [#tpu.dimension_semantics<parallel>], iteration_bounds = array<i64: 2>, scalar_prefetch = 0 : i64, scratch_operands = 1 : i64, tpu.core_type = #tpu.core_type<tc>, window_params = [{pipeline_mode = #tpu.pipeline_mode<synchronous>, transform_indices = @transform_0, window_bounds = array<i64: 328, 1>}, {transform_indices = @transform_1, window_bounds = array<i64: 1, 328, 128>}, {pipeline_mode = #tpu.pipeline_mode<synchronous>, transform_indices = @transform_2, window_bounds = array<i64: 128, 128>}, {pipeline_mode = #tpu.pipeline_mode<synchronous>, transform_indices = @transform_3, window_bounds = array<i64: 1, 128>}, {pipeline_mode = #tpu.pipeline_mode<synchronous>, transform_indices = @transform_4, window_bounds = array<i64: 9, 128, 128>}, {pipeline_mode = #tpu.pipeline_mode<synchronous>, transform_indices = @transform_5, window_bounds = array<i64: 1, 128>}, {pipeline_mode = #tpu.pipeline_mode<synchronous>, transform_indices = @transform_6, window_bounds = array<i64: 128, 128>}, {pipeline_mode = #tpu.pipeline_mode<synchronous>, transform_indices = @transform_7, window_bounds = array<i64: 1, 128>}, {transform_indices = @transform_8, window_bounds = array<i64: 1, 288, 128>}, {transform_indices = @transform_9, window_bounds = array<i64: 1, 288, 128>}]} {
    %c0 = arith.constant 0 : index
    %c0_0 = arith.constant 0 : index
    %c0_1 = arith.constant 0 : index
    %0 = vector.load %arg2[%c0, %c0_0, %c0_1] : memref<1x328x128xf32, #tpu.memory_space<vmem>>, vector<1x328x128xf32>
    %1 = vector.shape_cast %0 : vector<1x328x128xf32> to vector<328x128xf32>
    %2 = arith.truncf %1 : vector<328x128xf32> to vector<328x128xbf16>
    %c0_2 = arith.constant 0 : index
    %c0_3 = arith.constant 0 : index
    %3 = vector.load %arg3[%c0_2, %c0_3] : memref<128x128xbf16, #tpu.memory_space<vmem>>, vector<128x128xbf16>
    %cst = arith.constant dense<0.000000e+00> : vector<328x128xf32>
    %4 = tpu.matmul %2, %3, %cst {dimension_numbers = #tpu.dot_dimension_numbers<[1], [0], [0], [1], [0, 0, 1, 1], [], []>} : vector<328x128xbf16>, vector<128x128xbf16>, vector<328x128xf32> -> vector<328x128xf32>
    %c0_4 = arith.constant 0 : index
    %c0_5 = arith.constant 0 : index
    %5 = vector.load %arg4[%c0_4, %c0_5] : memref<1x128xf32, #tpu.memory_space<vmem>>, vector<1x128xf32>
    %6 = vector.broadcast %5 : vector<1x128xf32> to vector<328x128xf32>
    %7 = arith.addf %4, %6 : vector<328x128xf32>
    %cst_6 = arith.constant 0.000000e+00 : f32
    %8 = vector.broadcast %cst_6 : f32 to vector<328x128xf32>
    %9 = arith.maximumf %7, %8 : vector<328x128xf32>
    %c0_7 = arith.constant 0 : index
    %c0_8 = arith.constant 0 : index
    %10 = vector.load %arg1[%c0_7, %c0_8] : memref<328x1xf32, #tpu.memory_space<vmem>>, vector<328x1xf32>
    %11 = vector.broadcast %10 : vector<328x1xf32> to vector<328x128xf32>
    %12 = arith.mulf %9, %11 : vector<328x128xf32>
    %13 = arith.truncf %12 : vector<328x128xf32> to vector<328x128xbf16>
    %c0_9 = arith.constant 0 : index
    %c0_10 = arith.constant 0 : index
    %14 = vector.load %arg11[%c0_9, %c0_10] : memref<328x128xbf16, #tpu.memory_space<vmem>>, vector<328x128xbf16>
    tpu.vector_store %arg11[%c0_9, %c0_10], %13 {strides = array<i32>} : memref<328x128xbf16, #tpu.memory_space<vmem>>, vector<328x128xbf16>,
    %c0_11 = arith.constant 0 : index
    %c0_12 = arith.constant 0 : index
    %15 = vector.load %arg11[%c0_11, %c0_12] : memref<328x128xbf16, #tpu.memory_space<vmem>>, vector<288x128xbf16>
    %c0_13 = arith.constant 0 : index
    %c0_14 = arith.constant 0 : index
    %c0_15 = arith.constant 0 : index
    %16 = vector.load %arg5[%c0_13, %c0_14, %c0_15] : memref<9x128x128xbf16, #tpu.memory_space<vmem>>, vector<1x128x128xbf16>
    %17 = vector.shape_cast %16 : vector<1x128x128xbf16> to vector<128x128xbf16>
    %cst_16 = arith.constant dense<0.000000e+00> : vector<288x128xf32>
    %18 = tpu.matmul %15, %17, %cst_16 {dimension_numbers = #tpu.dot_dimension_numbers<[1], [0], [0], [1], [0, 0, 1, 1], [], []>} : vector<288x128xbf16>, vector<128x128xbf16>, vector<288x128xf32> -> vector<288x128xf32>
    %c1 = arith.constant 1 : index
    %c0_17 = arith.constant 0 : index
    %19 = vector.load %arg11[%c1, %c0_17] : memref<328x128xbf16, #tpu.memory_space<vmem>>, vector<288x128xbf16>
    %c1_18 = arith.constant 1 : index
    %c0_19 = arith.constant 0 : index
    %c0_20 = arith.constant 0 : index
    %20 = vector.load %arg5[%c1_18, %c0_19, %c0_20] : memref<9x128x128xbf16, #tpu.memory_space<vmem>>, vector<1x128x128xbf16>
    %21 = vector.shape_cast %20 : vector<1x128x128xbf16> to vector<128x128xbf16>
    %cst_21 = arith.constant dense<0.000000e+00> : vector<288x128xf32>
    %22 = tpu.matmul %19, %21, %cst_21 {dimension_numbers = #tpu.dot_dimension_numbers<[1], [0], [0], [1], [0, 0, 1, 1], [], []>} : vector<288x128xbf16>, vector<128x128xbf16>, vector<288x128xf32> -> vector<288x128xf32>
    %23 = arith.addf %18, %22 : vector<288x128xf32>
    %c2 = arith.constant 2 : index
    %c0_22 = arith.constant 0 : index
    %24 = vector.load %arg11[%c2, %c0_22] : memref<328x128xbf16, #tpu.memory_space<vmem>>, vector<288x128xbf16>
    %c2_23 = arith.constant 2 : index
    %c0_24 = arith.constant 0 : index
    %c0_25 = arith.constant 0 : index
    %25 = vector.load %arg5[%c2_23, %c0_24, %c0_25] : memref<9x128x128xbf16, #tpu.memory_space<vmem>>, vector<1x128x128xbf16>
    %26 = vector.shape_cast %25 : vector<1x128x128xbf16> to vector<128x128xbf16>
    %cst_26 = arith.constant dense<0.000000e+00> : vector<288x128xf32>
    %27 = tpu.matmul %24, %26, %cst_26 {dimension_numbers = #tpu.dot_dimension_numbers<[1], [0], [0], [1], [0, 0, 1, 1], [], []>} : vector<288x128xbf16>, vector<128x128xbf16>, vector<288x128xf32> -> vector<288x128xf32>
    %28 = arith.addf %23, %27 : vector<288x128xf32>
    %c18 = arith.constant 18 : index
    %c0_27 = arith.constant 0 : index
    %29 = vector.load %arg11[%c18, %c0_27] : memref<328x128xbf16, #tpu.memory_space<vmem>>, vector<288x128xbf16>
    %c3 = arith.constant 3 : index
    %c0_28 = arith.constant 0 : index
    %c0_29 = arith.constant 0 : index
    %30 = vector.load %arg5[%c3, %c0_28, %c0_29] : memref<9x128x128xbf16, #tpu.memory_space<vmem>>, vector<1x128x128xbf16>
    %31 = vector.shape_cast %30 : vector<1x128x128xbf16> to vector<128x128xbf16>
    %cst_30 = arith.constant dense<0.000000e+00> : vector<288x128xf32>
    %32 = tpu.matmul %29, %31, %cst_30 {dimension_numbers = #tpu.dot_dimension_numbers<[1], [0], [0], [1], [0, 0, 1, 1], [], []>} : vector<288x128xbf16>, vector<128x128xbf16>, vector<288x128xf32> -> vector<288x128xf32>
    %33 = arith.addf %28, %32 : vector<288x128xf32>
    %c19 = arith.constant 19 : index
    %c0_31 = arith.constant 0 : index
    %34 = vector.load %arg11[%c19, %c0_31] : memref<328x128xbf16, #tpu.memory_space<vmem>>, vector<288x128xbf16>
    %c4 = arith.constant 4 : index
    %c0_32 = arith.constant 0 : index
    %c0_33 = arith.constant 0 : index
    %35 = vector.load %arg5[%c4, %c0_32, %c0_33] : memref<9x128x128xbf16, #tpu.memory_space<vmem>>, vector<1x128x128xbf16>
    %36 = vector.shape_cast %35 : vector<1x128x128xbf16> to vector<128x128xbf16>
    %cst_34 = arith.constant dense<0.000000e+00> : vector<288x128xf32>
    %37 = tpu.matmul %34, %36, %cst_34 {dimension_numbers = #tpu.dot_dimension_numbers<[1], [0], [0], [1], [0, 0, 1, 1], [], []>} : vector<288x128xbf16>, vector<128x128xbf16>, vector<288x128xf32> -> vector<288x128xf32>
    %38 = arith.addf %33, %37 : vector<288x128xf32>
    %c20 = arith.constant 20 : index
    %c0_35 = arith.constant 0 : index
    %39 = vector.load %arg11[%c20, %c0_35] : memref<328x128xbf16, #tpu.memory_space<vmem>>, vector<288x128xbf16>
    %c5 = arith.constant 5 : index
    %c0_36 = arith.constant 0 : index
    %c0_37 = arith.constant 0 : index
    %40 = vector.load %arg5[%c5, %c0_36, %c0_37] : memref<9x128x128xbf16, #tpu.memory_space<vmem>>, vector<1x128x128xbf16>
    %41 = vector.shape_cast %40 : vector<1x128x128xbf16> to vector<128x128xbf16>
    %cst_38 = arith.constant dense<0.000000e+00> : vector<288x128xf32>
    %42 = tpu.matmul %39, %41, %cst_38 {dimension_numbers = #tpu.dot_dimension_numbers<[1], [0], [0], [1], [0, 0, 1, 1], [], []>} : vector<288x128xbf16>, vector<128x128xbf16>, vector<288x128xf32> -> vector<288x128xf32>
    %43 = arith.addf %38, %42 : vector<288x128xf32>
    %c36 = arith.constant 36 : index
    %c0_39 = arith.constant 0 : index
    %44 = vector.load %arg11[%c36, %c0_39] : memref<328x128xbf16, #tpu.memory_space<vmem>>, vector<288x128xbf16>
    %c6 = arith.constant 6 : index
    %c0_40 = arith.constant 0 : index
    %c0_41 = arith.constant 0 : index
    %45 = vector.load %arg5[%c6, %c0_40, %c0_41] : memref<9x128x128xbf16, #tpu.memory_space<vmem>>, vector<1x128x128xbf16>
    %46 = vector.shape_cast %45 : vector<1x128x128xbf16> to vector<128x128xbf16>
    %cst_42 = arith.constant dense<0.000000e+00> : vector<288x128xf32>
    %47 = tpu.matmul %44, %46, %cst_42 {dimension_numbers = #tpu.dot_dimension_numbers<[1], [0], [0], [1], [0, 0, 1, 1], [], []>} : vector<288x128xbf16>, vector<128x128xbf16>, vector<288x128xf32> -> vector<288x128xf32>
    %48 = arith.addf %43, %47 : vector<288x128xf32>
    %c37 = arith.constant 37 : index
    %c0_43 = arith.constant 0 : index
    %49 = vector.load %arg11[%c37, %c0_43] : memref<328x128xbf16, #tpu.memory_space<vmem>>, vector<288x128xbf16>
    %c7 = arith.constant 7 : index
    %c0_44 = arith.constant 0 : index
    %c0_45 = arith.constant 0 : index
    %50 = vector.load %arg5[%c7, %c0_44, %c0_45] : memref<9x128x128xbf16, #tpu.memory_space<vmem>>, vector<1x128x128xbf16>
    %51 = vector.shape_cast %50 : vector<1x128x128xbf16> to vector<128x128xbf16>
    %cst_46 = arith.constant dense<0.000000e+00> : vector<288x128xf32>
    %52 = tpu.matmul %49, %51, %cst_46 {dimension_numbers = #tpu.dot_dimension_numbers<[1], [0], [0], [1], [0, 0, 1, 1], [], []>} : vector<288x128xbf16>, vector<128x128xbf16>, vector<288x128xf32> -> vector<288x128xf32>
    %53 = arith.addf %48, %52 : vector<288x128xf32>
    %c38 = arith.constant 38 : index
    %c0_47 = arith.constant 0 : index
    %54 = vector.load %arg11[%c38, %c0_47] : memref<328x128xbf16, #tpu.memory_space<vmem>>, vector<288x128xbf16>
    %c8 = arith.constant 8 : index
    %c0_48 = arith.constant 0 : index
    %c0_49 = arith.constant 0 : index
    %55 = vector.load %arg5[%c8, %c0_48, %c0_49] : memref<9x128x128xbf16, #tpu.memory_space<vmem>>, vector<1x128x128xbf16>
    %56 = vector.shape_cast %55 : vector<1x128x128xbf16> to vector<128x128xbf16>
    %cst_50 = arith.constant dense<0.000000e+00> : vector<288x128xf32>
    %57 = tpu.matmul %54, %56, %cst_50 {dimension_numbers = #tpu.dot_dimension_numbers<[1], [0], [0], [1], [0, 0, 1, 1], [], []>} : vector<288x128xbf16>, vector<128x128xbf16>, vector<288x128xf32> -> vector<288x128xf32>
    %58 = arith.addf %53, %57 : vector<288x128xf32>
    %c0_51 = arith.constant 0 : index
    %c0_52 = arith.constant 0 : index
    %59 = vector.load %arg6[%c0_51, %c0_52] : memref<1x128xf32, #tpu.memory_space<vmem>>, vector<1x128xf32>
    %60 = vector.broadcast %59 : vector<1x128xf32> to vector<288x128xf32>
    %61 = arith.addf %58, %60 : vector<288x128xf32>
    %cst_53 = arith.constant 0.000000e+00 : f32
    %62 = vector.broadcast %cst_53 : f32 to vector<288x128xf32>
    %63 = arith.maximumf %61, %62 : vector<288x128xf32>
    %64 = arith.truncf %63 : vector<288x128xf32> to vector<288x128xbf16>
    %c0_54 = arith.constant 0 : index
    %c0_55 = arith.constant 0 : index
    %c0_56 = arith.constant 0 : index
    %65 = vector.load %arg10[%c0_54, %c0_55, %c0_56] : memref<1x288x128xbf16, #tpu.memory_space<vmem>>, vector<1x288x128xbf16>
    %66 = vector.shape_cast %65 : vector<1x288x128xbf16> to vector<288x128xbf16>
    %67 = vector.shape_cast %64 : vector<288x128xbf16> to vector<1x288x128xbf16>
    tpu.vector_store %arg10[%c0_54, %c0_55, %c0_56], %67 {strides = array<i32>} : memref<1x288x128xbf16, #tpu.memory_space<vmem>>, vector<1x288x128xbf16>,
    %c0_57 = arith.constant 0 : index
    %c19_58 = arith.constant 19 : index
    %c0_59 = arith.constant 0 : index
    %68 = vector.load %arg2[%c0_57, %c19_58, %c0_59] : memref<1x328x128xf32, #tpu.memory_space<vmem>>, vector<1x288x128xf32>
    %69 = vector.shape_cast %68 : vector<1x288x128xf32> to vector<288x128xf32>
    %c0_60 = arith.constant 0 : index
    %c0_61 = arith.constant 0 : index
    %70 = vector.load %arg7[%c0_60, %c0_61] : memref<128x128xbf16, #tpu.memory_space<vmem>>, vector<128x128xbf16>
    %cst_62 = arith.constant dense<0.000000e+00> : vector<288x128xf32>
    %71 = tpu.matmul %64, %70, %cst_62 {dimension_numbers = #tpu.dot_dimension_numbers<[1], [0], [0], [1], [0, 0, 1, 1], [], []>} : vector<288x128xbf16>, vector<128x128xbf16>, vector<288x128xf32> -> vector<288x128xf32>
    %c0_63 = arith.constant 0 : index
    %c0_64 = arith.constant 0 : index
    %72 = vector.load %arg8[%c0_63, %c0_64] : memref<1x128xf32, #tpu.memory_space<vmem>>, vector<1x128xf32>
    %73 = vector.broadcast %72 : vector<1x128xf32> to vector<288x128xf32>
    %74 = arith.addf %71, %73 : vector<288x128xf32>
    %75 = arith.addf %74, %69 : vector<288x128xf32>
    %cst_65 = arith.constant 0.000000e+00 : f32
    %76 = vector.broadcast %cst_65 : f32 to vector<288x128xf32>
    %77 = arith.maximumf %75, %76 : vector<288x128xf32>
    %78 = arith.truncf %77 : vector<288x128xf32> to vector<288x128xbf16>
    %c0_66 = arith.constant 0 : index
    %c0_67 = arith.constant 0 : index
    %c0_68 = arith.constant 0 : index
    %79 = vector.load %arg9[%c0_66, %c0_67, %c0_68] : memref<1x288x128xbf16, #tpu.memory_space<vmem>>, vector<1x288x128xbf16>
    %80 = vector.shape_cast %79 : vector<1x288x128xbf16> to vector<288x128xbf16>
    %81 = vector.shape_cast %78 : vector<288x128xbf16> to vector<1x288x128xbf16>
    tpu.vector_store %arg9[%c0_66, %c0_67, %c0_68], %81 {strides = array<i32>} : memref<1x288x128xbf16, #tpu.memory_space<vmem>>, vector<1x288x128xbf16>,
    return
  }
  func.func @transform_0(%arg0: i32) -> (i32, i32) {
    %c0_i32 = arith.constant 0 : i32
    %c0_i32_0 = arith.constant 0 : i32
    %c0_i32_1 = arith.constant 0 : i32
    return %c0_i32, %c0_i32_0 : i32, i32
  }
  func.func @transform_1(%arg0: i32) -> (i32, i32, i32) {
    %c0_i32 = arith.constant 0 : i32
    %c0_i32_0 = arith.constant 0 : i32
    %c0_i32_1 = arith.constant 0 : i32
    return %arg0, %c0_i32, %c0_i32_0 : i32, i32, i32
  }
  func.func @transform_2(%arg0: i32) -> (i32, i32) {
    %c0_i32 = arith.constant 0 : i32
    %c0_i32_0 = arith.constant 0 : i32
    %c0_i32_1 = arith.constant 0 : i32
    return %c0_i32, %c0_i32_0 : i32, i32
  }
  func.func @transform_3(%arg0: i32) -> (i32, i32) {
    %c0_i32 = arith.constant 0 : i32
    %c0_i32_0 = arith.constant 0 : i32
    %c0_i32_1 = arith.constant 0 : i32
    return %c0_i32, %c0_i32_0 : i32, i32
  }
  func.func @transform_4(%arg0: i32) -> (i32, i32, i32) {
    %c0_i32 = arith.constant 0 : i32
    %c0_i32_0 = arith.constant 0 : i32
    %c0_i32_1 = arith.constant 0 : i32
    %c0_i32_2 = arith.constant 0 : i32
    return %c0_i32, %c0_i32_0, %c0_i32_1 : i32, i32, i32
  }
  func.func @transform_5(%arg0: i32) -> (i32, i32) {
    %c0_i32 = arith.constant 0 : i32
    %c0_i32_0 = arith.constant 0 : i32
    %c0_i32_1 = arith.constant 0 : i32
    return %c0_i32, %c0_i32_0 : i32, i32
  }
  func.func @transform_6(%arg0: i32) -> (i32, i32) {
    %c0_i32 = arith.constant 0 : i32
    %c0_i32_0 = arith.constant 0 : i32
    %c0_i32_1 = arith.constant 0 : i32
    return %c0_i32, %c0_i32_0 : i32, i32
  }
  func.func @transform_7(%arg0: i32) -> (i32, i32) {
    %c0_i32 = arith.constant 0 : i32
    %c0_i32_0 = arith.constant 0 : i32
    %c0_i32_1 = arith.constant 0 : i32
    return %c0_i32, %c0_i32_0 : i32, i32
  }
  func.func @transform_8(%arg0: i32) -> (i32, i32, i32) {
    %c0_i32 = arith.constant 0 : i32
    %c0_i32_0 = arith.constant 0 : i32
    %c0_i32_1 = arith.constant 0 : i32
    return %arg0, %c0_i32, %c0_i32_0 : i32, i32, i32
  }
  func.func @transform_9(%arg0: i32) -> (i32, i32, i32) {
    %c0_i32 = arith.constant 0 : i32
    %c0_i32_0 = arith.constant 0 : i32
    %c0_i32_1 = arith.constant 0 : i32
    return %arg0, %c0_i32, %c0_i32_0 : i32, i32, i32
  }
}

</mosaic_0001>

<llo_original>
// kernel: conv_block_forward.1
$region0: #{conv_block_forward.1}
  #allocation0 [shape = 'u32[]', space=smem, size = 0x4, offset = 0x4, fixed_abs, tag = 'smem constant byte address 0x4 - core index']
  #allocation1 [shape = 'u32[144,128]{1,0:T(1,128)}', space=vmem, size = 0x12000, scoped, tag = 'internal scratch']
  #allocation2 [shape = 'bf16[328,128]{1,0:T(8,128)(2,1)}', space=vmem, size = 0x14800, scoped, tag = 'scratch operand']
  %s0 = inlined_call_operand.vmem [shape: f32[328,1], index: 0, kind: input, shape index: {}]
  %s1 = inlined_call_operand.vmem [shape: f32[2,328,128], index: 1, kind: input, shape index: {}]
  %s2 = inlined_call_operand.vmem [shape: bf16[128,128], index: 2, kind: input, shape index: {}]
  %s3 = inlined_call_operand.vmem [shape: f32[1,128], index: 3, kind: input, shape index: {}]
  %s4 = inlined_call_operand.vmem [shape: bf16[9,128,128], index: 4, kind: input, shape index: {}]
  %s5 = inlined_call_operand.vmem [shape: f32[1,128], index: 5, kind: input, shape index: {}]
  %s6 = inlined_call_operand.vmem [shape: bf16[128,128], index: 6, kind: input, shape index: {}]
  %s7 = inlined_call_operand.vmem [shape: f32[1,128], index: 7, kind: input, shape index: {}]
  %s8 = inlined_call_operand.vmem [shape: bf16[2,288,128], index: 8, kind: output, shape index: {0}]
  %s9 = inlined_call_operand.vmem [shape: bf16[2,288,128], index: 9, kind: output, shape index: {1}]
  %10 = xla_tuple %s8, %s9
  %s11 = sld [smem:[#allocation0]]
  $region73: #{conv_block_forward.1} parent=0
    _
  %s13 = ssub.s32 1, %s11
  %s14 = scalar_select 0, %s13, %s11
  loop: start=0, step=1, limit=4
  $region2: #{conv_block_forward.1} parent=0 // loop_pre_header
    _
  $region3: #{conv_block_forward.1} parent=0 // loop_header
    %s16 = sphi 0, %s20
    %p17 = scmp.ge.s32.totalorder %s16, 4
    %s24 = sphi 0, %s24
    %s26 = sphi 0, %s24
    %s27 = sphi 0, %s26
    %s41 = sphi 0, %s27
    %s47 = sphi 0, %s49
    %s50 = sphi 0, %s47
    %s51 = sphi 0, %s50
    %s67 = sphi 0, %s51
    %s71 = sphi 0, %s71
    %s73 = sphi 0, %s71
    %s74 = sphi 0, %s73
    %s88 = sphi 0, %s74
    %s92 = sphi 0, %s92
    %s94 = sphi 0, %s92
    %s95 = sphi 0, %s94
    %s109 = sphi 0, %s95
    %s113 = sphi 0, %s113
    %s115 = sphi 0, %s113
    %s116 = sphi 0, %s115
    %s130 = sphi 0, %s116
    %s134 = sphi 0, %s134
    %s136 = sphi 0, %s134
    %s137 = sphi 0, %s136
    %s151 = sphi 0, %s137
    %s155 = sphi 0, %s155
    %s157 = sphi 0, %s155
    %s158 = sphi 0, %s157
    %s172 = sphi 0, %s158
    %s176 = sphi 0, %s176
    %s178 = sphi 0, %s176
    %s179 = sphi 0, %s178
    %s193 = sphi 0, %s179
    %s199 = sphi 0, %s201
    %s202 = sphi 0, %s199
    %s203 = sphi 0, %s202
    %s219 = sphi 0, %s203
    %s225 = sphi 0, %s227
    %s228 = sphi 0, %s225
    %s229 = sphi 0, %s228
    %s245 = sphi 0, %s229
  $region4: #{conv_block_forward.1} parent=0 // loop_header_branch
    %19 = sbr.rel (%p17) target = $region8
  $region5: #{conv_block_forward.1} parent=0 // loop_body
    %s21 = ssub.s32 %s16, 1
    %s22 = ssub.s32 %s16, 2
    %s23 = sadd.s32 %s16, 1
    %s25 = sadd.s32 %s24, 1
    %p28 = scmp.eq.s32.totalorder %s16, 1
    %p29 = scmp.ne.s32.totalorder %s24, %s26
    %p30 = scmp.eq.s32.totalorder %s16, 0
    %p31 = por %p29, %p30
    %p32 = scmp.ne.s32.totalorder %s24, %s26
    %p33 = scmp.eq.s32.totalorder %s21, 1
    %p34 = por %p32, %p33
    %p35 = scmp.ne.s32.totalorder %s26, %s27
    %p36 = scmp.eq.s32.totalorder %s21, 0
    %p37 = por %p35, %p36
    %p38 = scmp.ne.s32.totalorder %s26, %s27
    %p39 = scmp.eq.s32.totalorder %s22, 1
    %p40 = por %p38, %p39
    %p42 = scmp.ne.s32.totalorder %s27, %s41
    %p43 = scmp.eq.s32.totalorder %s22, 0
    %p44 = por %p42, %p43
    %s45 = ssub.s32 %s16, %s23
    %p46 = scmp.eq.s32.totalorder %s45, 0
    %s48 = sadd.s32 %s47, 1
    %s49 = scalar_select %p46, %s47, %s48
    %p52 = pneg %p46
    %p53 = scmp.eq.s32.totalorder %s16, 1
    %p54 = por %p52, %p53
    %p55 = scmp.ne.s32.totalorder %s47, %s50
    %p56 = scmp.eq.s32.totalorder %s16, 0
    %p57 = por %p55, %p56
    %p58 = scmp.ne.s32.totalorder %s47, %s50
    %p59 = scmp.eq.s32.totalorder %s21, 1
    %p60 = por %p58, %p59
    %p61 = scmp.ne.s32.totalorder %s50, %s51
    %p62 = scmp.eq.s32.totalorder %s21, 0
    %p63 = por %p61, %p62
    %p64 = scmp.ne.s32.totalorder %s50, %s51
    %p65 = scmp.eq.s32.totalorder %s22, 1
    %p66 = por %p64, %p65
    %p68 = scmp.ne.s32.totalorder %s51, %s67
    %p69 = scmp.eq.s32.totalorder %s22, 0
    %p70 = por %p68, %p69
    %s72 = sadd.s32 %s71, 1
    %p75 = scmp.eq.s32.totalorder %s16, 1
    %p76 = scmp.ne.s32.totalorder %s71, %s73
    %p77 = scmp.eq.s32.totalorder %s16, 0
    %p78 = por %p76, %p77
    %p79 = scmp.ne.s32.totalorder %s71, %s73
    %p80 = scmp.eq.s32.totalorder %s21, 1
    %p81 = por %p79, %p80
    %p82 = scmp.ne.s32.totalorder %s73, %s74
    %p83 = scmp.eq.s32.totalorder %s21, 0
    %p84 = por %p82, %p83
    %p85 = scmp.ne.s32.totalorder %s73, %s74
    %p86 = scmp.eq.s32.totalorder %s22, 1
    %p87 = por %p85, %p86
    %p89 = scmp.ne.s32.totalorder %s74, %s88
    %p90 = scmp.eq.s32.totalorder %s22, 0
    %p91 = por %p89, %p90
    %s93 = sadd.s32 %s92, 1
    %p96 = scmp.eq.s32.totalorder %s16, 1
    %p97 = scmp.ne.s32.totalorder %s92, %s94
    %p98 = scmp.eq.s32.totalorder %s16, 0
    %p99 = por %p97, %p98
    %p100 = scmp.ne.s32.totalorder %s92, %s94
    %p101 = scmp.eq.s32.totalorder %s21, 1
    %p102 = por %p100, %p101
    %p103 = scmp.ne.s32.totalorder %s94, %s95
    %p104 = scmp.eq.s32.totalorder %s21, 0
    %p105 = por %p103, %p104
    %p106 = scmp.ne.s32.totalorder %s94, %s95
    %p107 = scmp.eq.s32.totalorder %s22, 1
    %p108 = por %p106, %p107
    %p110 = scmp.ne.s32.totalorder %s95, %s109
    %p111 = scmp.eq.s32.totalorder %s22, 0
    %p112 = por %p110, %p111
    %s114 = sadd.s32 %s113, 1
    %p117 = scmp.eq.s32.totalorder %s16, 1
    %p118 = scmp.ne.s32.totalorder %s113, %s115
    %p119 = scmp.eq.s32.totalorder %s16, 0
    %p120 = por %p118, %p119
    %p121 = scmp.ne.s32.totalorder %s113, %s115
    %p122 = scmp.eq.s32.totalorder %s21, 1
    %p123 = por %p121, %p122
    %p124 = scmp.ne.s32.totalorder %s115, %s116
    %p125 = scmp.eq.s32.totalorder %s21, 0
    %p126 = por %p124, %p125
    %p127 = scmp.ne.s32.totalorder %s115, %s116
    %p128 = scmp.eq.s32.totalorder %s22, 1
    %p129 = por %p127, %p128
    %p131 = scmp.ne.s32.totalorder %s116, %s130
    %p132 = scmp.eq.s32.totalorder %s22, 0
    %p133 = por %p131, %p132
    %s135 = sadd.s32 %s134, 1
    %p138 = scmp.eq.s32.totalorder %s16, 1
    %p139 = scmp.ne.s32.totalorder %s134, %s136
    %p140 = scmp.eq.s32.totalorder %s16, 0
    %p141 = por %p139, %p140
    %p142 = scmp.ne.s32.totalorder %s134, %s136
    %p143 = scmp.eq.s32.totalorder %s21, 1
    %p144 = por %p142, %p143
    %p145 = scmp.ne.s32.totalorder %s136, %s137
    %p146 = scmp.eq.s32.totalorder %s21, 0
    %p147 = por %p145, %p146
    %p148 = scmp.ne.s32.totalorder %s136, %s137
    %p149 = scmp.eq.s32.totalorder %s22, 1
    %p150 = por %p148, %p149
    %p152 = scmp.ne.s32.totalorder %s137, %s151
    %p153 = scmp.eq.s32.totalorder %s22, 0
    %p154 = por %p152, %p153
    %s156 = sadd.s32 %s155, 1
    %p159 = scmp.eq.s32.totalorder %s16, 1
    %p160 = scmp.ne.s32.totalorder %s155, %s157
    %p161 = scmp.eq.s32.totalorder %s16, 0
    %p162 = por %p160, %p161
    %p163 = scmp.ne.s32.totalorder %s155, %s157
    %p164 = scmp.eq.s32.totalorder %s21, 1
    %p165 = por %p163, %p164
    %p166 = scmp.ne.s32.totalorder %s157, %s158
    %p167 = scmp.eq.s32.totalorder %s21, 0
    %p168 = por %p166, %p167
    %p169 = scmp.ne.s32.totalorder %s157, %s158
    %p170 = scmp.eq.s32.totalorder %s22, 1
    %p171 = por %p169, %p170
    %p173 = scmp.ne.s32.totalorder %s158, %s172
    %p174 = scmp.eq.s32.totalorder %s22, 0
    %p175 = por %p173, %p174
    %s177 = sadd.s32 %s176, 1
    %p180 = scmp.eq.s32.totalorder %s16, 1
    %p181 = scmp.ne.s32.totalorder %s176, %s178
    %p182 = scmp.eq.s32.totalorder %s16, 0
    %p183 = por %p181, %p182
    %p184 = scmp.ne.s32.totalorder %s176, %s178
    %p185 = scmp.eq.s32.totalorder %s21, 1
    %p186 = por %p184, %p185
    %p187 = scmp.ne.s32.totalorder %s178, %s179
    %p188 = scmp.eq.s32.totalorder %s21, 0
    %p189 = por %p187, %p188
    %p190 = scmp.ne.s32.totalorder %s178, %s179
    %p191 = scmp.eq.s32.totalorder %s22, 1
    %p192 = por %p190, %p191
    %p194 = scmp.ne.s32.totalorder %s179, %s193
    %p195 = scmp.eq.s32.totalorder %s22, 0
    %p196 = por %p194, %p195
    %s197 = ssub.s32 %s16, %s23
    %p198 = scmp.eq.s32.totalorder %s197, 0
    %s200 = sadd.s32 %s199, 1
    %s201 = scalar_select %p198, %s199, %s200
    %p204 = pneg %p198
    %p205 = scmp.eq.s32.totalorder %s16, 1
    %p206 = por %p204, %p205
    %p207 = scmp.ne.s32.totalorder %s199, %s202
    %p208 = scmp.eq.s32.totalorder %s16, 0
    %p209 = por %p207, %p208
    %p210 = scmp.ne.s32.totalorder %s199, %s202
    %p211 = scmp.eq.s32.totalorder %s21, 1
    %p212 = por %p210, %p211
    %p213 = scmp.ne.s32.totalorder %s202, %s203
    %p214 = scmp.eq.s32.totalorder %s21, 0
    %p215 = por %p213, %p214
    %p216 = scmp.ne.s32.totalorder %s202, %s203
    %p217 = scmp.eq.s32.totalorder %s22, 1
    %p218 = por %p216, %p217
    %p220 = scmp.ne.s32.totalorder %s203, %s219
    %p221 = scmp.eq.s32.totalorder %s22, 0
    %p222 = por %p220, %p221
    %s223 = ssub.s32 %s16, %s23
    %p224 = scmp.eq.s32.totalorder %s223, 0
    %s226 = sadd.s32 %s225, 1
    %s227 = scalar_select %p224, %s225, %s226
    %p230 = pneg %p224
    %p231 = scmp.eq.s32.totalorder %s16, 1
    %p232 = por %p230, %p231
    %p233 = scmp.ne.s32.totalorder %s225, %s228
    %p234 = scmp.eq.s32.totalorder %s16, 0
    %p235 = por %p233, %p234
    %p236 = scmp.ne.s32.totalorder %s225, %s228
    %p237 = scmp.eq.s32.totalorder %s21, 1
    %p238 = por %p236, %p237
    %p239 = scmp.ne.s32.totalorder %s228, %s229
    %p240 = scmp.eq.s32.totalorder %s21, 0
    %p241 = por %p239, %p240
    %p242 = scmp.ne.s32.totalorder %s228, %s229
    %p243 = scmp.eq.s32.totalorder %s22, 1
    %p244 = por %p242, %p243
    %p246 = scmp.ne.s32.totalorder %s229, %s245
    %p247 = scmp.eq.s32.totalorder %s22, 0
    %p248 = por %p246, %p247
    %p249 = scmp.le.s32.totalorder 1, %s16
    %p250 = scmp.lt.s32.totalorder %s16, 3
    %p251 = pnand %p249, %p250
    %p252 = pneg %p251
    // Predicated region
    $region9: #{conv_block_forward.1} parent=5 // pred_check
      _
    $region10: #{conv_block_forward.1} parent=5 // pred_check_branch
      %254 = sbr.rel (%p251) target = $region12
    $region11: #{conv_block_forward.1} parent=5 // pred_region
      %s255 = ssub.s32 %s16, 1
      // Predicated region
      $region13: #{conv_block_forward.1} parent=11 // pred_check
        %p256 = pneg %p37
      $region14: #{conv_block_forward.1} parent=11 // pred_check_branch
        %258 = sbr.rel (%p256) target = $region16
      $region15: #{conv_block_forward.1} parent=11 // pred_region
        _
      $region16: #{conv_block_forward.1} parent=11 // pred_fallthru
        _
      // Predicated region
      $region17: #{conv_block_forward.1} parent=11 // pred_check
        %p259 = pneg %p84
      $region18: #{conv_block_forward.1} parent=11 // pred_check_branch
        %261 = sbr.rel (%p259) target = $region20
      $region19: #{conv_block_forward.1} parent=11 // pred_region
        _
      $region20: #{conv_block_forward.1} parent=11 // pred_fallthru
        _
      // Predicated region
      $region21: #{conv_block_forward.1} parent=11 // pred_check
        %p262 = pneg %p105
      $region22: #{conv_block_forward.1} parent=11 // pred_check_branch
        %264 = sbr.rel (%p262) target = $region24
      $region23: #{conv_block_forward.1} parent=11 // pred_region
        _
      $region24: #{conv_block_forward.1} parent=11 // pred_fallthru
        _
      // Predicated region
      $region25: #{conv_block_forward.1} parent=11 // pred_check
        %p265 = pneg %p126
      $region26: #{conv_block_forward.1} parent=11 // pred_check_branch
        %267 = sbr.rel (%p265) target = $region28
      $region27: #{conv_block_forward.1} parent=11 // pred_region
        _
      $region28: #{conv_block_forward.1} parent=11 // pred_fallthru
        _
      // Predicated region
      $region29: #{conv_block_forward.1} parent=11 // pred_check
        %p268 = pneg %p147
      $region30: #{conv_block_forward.1} parent=11 // pred_check_branch
        %270 = sbr.rel (%p268) target = $region32
      $region31: #{conv_block_forward.1} parent=11 // pred_region
        _
      $region32: #{conv_block_forward.1} parent=11 // pred_fallthru
        _
      // Predicated region
      $region33: #{conv_block_forward.1} parent=11 // pred_check
        %p271 = pneg %p168
      $region34: #{conv_block_forward.1} parent=11 // pred_check_branch
        %273 = sbr.rel (%p271) target = $region36
      $region35: #{conv_block_forward.1} parent=11 // pred_region
        _
      $region36: #{conv_block_forward.1} parent=11 // pred_fallthru
        _
      // Predicated region
      $region37: #{conv_block_forward.1} parent=11 // pred_check
        %p274 = pneg %p189
      $region38: #{conv_block_forward.1} parent=11 // pred_check_branch
        %276 = sbr.rel (%p274) target = $region40
      $region39: #{conv_block_forward.1} parent=11 // pred_region
        _
      $region40: #{conv_block_forward.1} parent=11 // pred_fallthru
        _
    $region12: #{conv_block_forward.1} parent=5 // pred_fallthru
      _
    %p277 = scmp.lt.s32.totalorder %s16, 2
    // Predicated region
    $region41: #{conv_block_forward.1} parent=5 // pred_check
      %p278 = pneg %p277
    $region42: #{conv_block_forward.1} parent=5 // pred_check_branch
      %280 = sbr.rel (%p278) target = $region44
    $region43: #{conv_block_forward.1} parent=5 // pred_region
      // Predicated region
      $region45: #{conv_block_forward.1} parent=43 // pred_check
        %p281 = pneg %p57
      $region46: #{conv_block_forward.1} parent=43 // pred_check_branch
        %283 = sbr.rel (%p281) target = $region48
      $region47: #{conv_block_forward.1} parent=43 // pred_region
        %p284 = scmp.lt.s32.totalorder %s16, 1
        %s285 = scalar_select %p284, %s16, 1
        %s286 = smul.addr %s285, 41
        %s287 = smul.addr %s286, 8
        %s288 = scalar_lea.vmem %s1, %s287
      $region48: #{conv_block_forward.1} parent=43 // pred_fallthru
        _
    $region44: #{conv_block_forward.1} parent=5 // pred_fallthru
      _
    %p289 = scmp.le.s32.totalorder 1, %s16
    %p290 = scmp.lt.s32.totalorder %s16, 3
    %p291 = pnand %p289, %p290
    %p292 = pneg %p291
    // Predicated region
    $region49: #{conv_block_forward.1} parent=5 // pred_check
      _
    $region50: #{conv_block_forward.1} parent=5 // pred_check_branch
      %294 = sbr.rel (%p291) target = $region52
    $region51: #{conv_block_forward.1} parent=5 // pred_region
      %s295 = ssub.s32 %s16, 1
      %p296 = pneg %p37
      %p297 = pneg %p34
      %p298 = scmp.lt.s32.totalorder %s21, 1
      %s299 = scalar_select %p298, %s21, 1
      %s300 = smul.addr %s299, 41
      %s301 = smul.addr %s300, 8
      %s302 = scalar_lea.vmem %s1, %s301
      %p303 = pneg %p63
      %p304 = pneg %p60
      %p305 = pneg %p84
      %p306 = pneg %p81
      %p307 = pneg %p105
      %p308 = pneg %p102
      %p309 = pneg %p126
      %p310 = pneg %p123
      %p311 = pneg %p147
      %p312 = pneg %p144
      %p313 = pneg %p168
      %p314 = pneg %p165
      %p315 = pneg %p189
      %p316 = pneg %p186
      %p317 = pneg %p215
      %p318 = pneg %p212
      %p319 = scmp.lt.s32.totalorder %s21, 1
      %s320 = scalar_select %p319, %s21, 1
      %s321 = smul.addr %s320, 36
      %s322 = smul.addr %s321, 4
      %s323 = scalar_lea.vmem %s8, %s322
      %p324 = pneg %p241
      %p325 = pneg %p238
      %p326 = scmp.lt.s32.totalorder %s21, 1
      %s327 = scalar_select %p326, %s21, 1
      %s328 = smul.addr %s327, 36
      %s329 = smul.addr %s328, 4
      %s330 = scalar_lea.vmem %s9, %s329
      %p331 = scmp.lt.s32.totalorder %s21, 1
      %s332 = scalar_select %p331, %s21, 1
      %s333 = smul.addr %s332, 41
      %s334 = smul.addr %s333, 8
      %s335 = scalar_lea.vmem %s1, %s334
      %p336 = scmp.lt.s32.totalorder %s21, 1
      %s337 = scalar_select %p336, %s21, 1
      %s338 = smul.addr %s337, 36
      %s339 = smul.addr %s338, 4
      %s340 = scalar_lea.vmem %s8, %s339
      %p341 = scmp.lt.s32.totalorder %s21, 1
      %s342 = scalar_select %p341, %s21, 1
      %s343 = smul.addr %s342, 36
      %s344 = smul.addr %s343, 4
      %s345 = scalar_lea.vmem %s9, %s344
      %v347 = vld [vmem:[%s335] sm:$0xff]
      %v348 = vld [vmem:[%s335 + $0x8] sm:$0xff]
      %v349 = vld [vmem:[%s335 + $0x10] sm:$0xff]
      %v350 = vld [vmem:[%s335 + $0x18] sm:$0xff]
      %v351 = vld [vmem:[%s335 + $0x20] sm:$0xff]
      %v352 = vld [vmem:[%s335 + $0x28] sm:$0xff]
      %v353 = vld [vmem:[%s335 + $0x30] sm:$0xff]
      %v354 = vld [vmem:[%s335 + $0x38] sm:$0xff]
      %v355 = vld [vmem:[%s335 + $0x40] sm:$0xff]
      %v356 = vld [vmem:[%s335 + $0x48] sm:$0xff]
      %v357 = vld [vmem:[%s335 + $0x50] sm:$0xff]
      %v358 = vld [vmem:[%s335 + $0x58] sm:$0xff]
      %v359 = vld [vmem:[%s335 + $0x60] sm:$0xff]
      %v360 = vld [vmem:[%s335 + $0x68] sm:$0xff]
      %v361 = vld [vmem:[%s335 + $0x70] sm:$0xff]
      %v362 = vld [vmem:[%s335 + $0x78] sm:$0xff]
      %v363 = vld [vmem:[%s335 + $0x80] sm:$0xff]
      %v364 = vld [vmem:[%s335 + $0x88] sm:$0xff]
      %v365 = vld [vmem:[%s335 + $0x90] sm:$0xff]
      %v366 = vld [vmem:[%s335 + $0x98] sm:$0xff]
      %v367 = vld [vmem:[%s335 + $0xa0] sm:$0xff]
      %v368 = vld [vmem:[%s335 + $0xa8] sm:$0xff]
      %v369 = vld [vmem:[%s335 + $0xb0] sm:$0xff]
      %v370 = vld [vmem:[%s335 + $0xb8] sm:$0xff]
      %v371 = vld [vmem:[%s335 + $0xc0] sm:$0xff]
      %v372 = vld [vmem:[%s335 + $0xc8] sm:$0xff]
      %v373 = vld [vmem:[%s335 + $0xd0] sm:$0xff]
      %v374 = vld [vmem:[%s335 + $0xd8] sm:$0xff]
      %v375 = vld [vmem:[%s335 + $0xe0] sm:$0xff]
      %v376 = vld [vmem:[%s335 + $0xe8] sm:$0xff]
      %v377 = vld [vmem:[%s335 + $0xf0] sm:$0xff]
      %v378 = vld [vmem:[%s335 + $0xf8] sm:$0xff]
      %v379 = vld [vmem:[%s335 + $0x100] sm:$0xff]
      %v380 = vld [vmem:[%s335 + $0x108] sm:$0xff]
      %v381 = vld [vmem:[%s335 + $0x110] sm:$0xff]
      %v382 = vld [vmem:[%s335 + $0x118] sm:$0xff]
      %v383 = vld [vmem:[%s335 + $0x120] sm:$0xff]
      %v384 = vld [vmem:[%s335 + $0x128] sm:$0xff]
      %v385 = vld [vmem:[%s335 + $0x130] sm:$0xff]
      %v386 = vld [vmem:[%s335 + $0x138] sm:$0xff]
      %v387 = vld [vmem:[%s335 + $0x140] sm:$0xff]
      %v388 = vpack.c.bf16 %v348, %v347
      %v389 = vpack.c.bf16 %v350, %v349
      %v390 = vpack.c.bf16 %v352, %v351
      %v391 = vpack.c.bf16 %v354, %v353
      %v392 = vpack.c.bf16 %v356, %v355
      %v393 = vpack.c.bf16 %v358, %v357
      %v394 = vpack.c.bf16 %v360, %v359
      %v395 = vpack.c.bf16 %v362, %v361
      %v396 = vpack.c.bf16 %v364, %v363
      %v397 = vpack.c.bf16 %v366, %v365
      %v398 = vpack.c.bf16 %v368, %v367
      %v399 = vpack.c.bf16 %v370, %v369
      %v400 = vpack.c.bf16 %v372, %v371
      %v401 = vpack.c.bf16 %v374, %v373
      %v402 = vpack.c.bf16 %v376, %v375
      %v403 = vpack.c.bf16 %v378, %v377
      %v404 = vpack.c.bf16 %v380, %v379
      %v405 = vpack.c.bf16 %v382, %v381
      %v406 = vpack.c.bf16 %v384, %v383
      %v407 = vpack.c.bf16 %v386, %v385
      %v408 = vpack.c.bf16 %v387, %v387
      %v409 = vld [vmem:[%s2] sm:$0xf]
      %v410 = vld [vmem:[%s2 + $0x4] sm:$0xf]
      %v411 = vld [vmem:[%s2 + $0x8] sm:$0xf]
      %v412 = vld [vmem:[%s2 + $0xc] sm:$0xf]
      %v413 = vld [vmem:[%s2 + $0x10] sm:$0xf]
      %v414 = vld [vmem:[%s2 + $0x14] sm:$0xf]
      %v415 = vld [vmem:[%s2 + $0x18] sm:$0xf]
      %v416 = vld [vmem:[%s2 + $0x1c] sm:$0xf]
      %v417 = vld [vmem:[%s2 + $0x20] sm:$0xf]
      %v418 = vld [vmem:[%s2 + $0x24] sm:$0xf]
      %v419 = vld [vmem:[%s2 + $0x28] sm:$0xf]
      %v420 = vld [vmem:[%s2 + $0x2c] sm:$0xf]
      %v421 = vld [vmem:[%s2 + $0x30] sm:$0xf]
      %v422 = vld [vmem:[%s2 + $0x34] sm:$0xf]
      %v423 = vld [vmem:[%s2 + $0x38] sm:$0xf]
      %v424 = vld [vmem:[%s2 + $0x3c] sm:$0xf]
      %v425 = vld [vmem:[%s3] sm:$0x1]
      %v427 = vlaneseq
      %v428 = vshrl.u32 %v427, 7
      %v429 = vsub.s32 0, %v428
      %v430 = vrot.slane %v425, %v429
      %v448 = vunpack.c.l.b16 %v409
      %v449 = vunpack.c.l.b16 %v410
      %v450 = vunpack.c.l.b16 %v411
      %v451 = vunpack.c.l.b16 %v412
      %v452 = vunpack.c.l.b16 %v413
      %v453 = vunpack.c.l.b16 %v414
      %v454 = vunpack.c.l.b16 %v415
      %v455 = vunpack.c.l.b16 %v416
      %v456 = vunpack.c.l.b16 %v417
      %v457 = vunpack.c.l.b16 %v418
      %v458 = vunpack.c.l.b16 %v419
      %v459 = vunpack.c.l.b16 %v420
      %v460 = vunpack.c.l.b16 %v421
      %v461 = vunpack.c.l.b16 %v422
      %v462 = vunpack.c.l.b16 %v423
      %v463 = vunpack.c.l.b16 %v424
      %v464 = vpack.c.b16 %v449, %v448
      %v465 = vpack.c.b16 %v451, %v450
      %v466 = vpack.c.b16 %v453, %v452
      %v467 = vpack.c.b16 %v455, %v454
      %v468 = vpack.c.b16 %v457, %v456
      %v469 = vpack.c.b16 %v459, %v458
      %v470 = vpack.c.b16 %v461, %v460
      %v471 = vpack.c.b16 %v463, %v462
      %480 = vmatprep.subr.bf16.mxu0 0
      %481 = vmatpush1.bf16.msra.mxu0 %v464
      %482 = vmatprep.subr.bf16.mxu0 0
      %483 = vmatpush1.bf16.msra.mxu0 %v465
      %484 = vmatprep.subr.bf16.mxu0 0
      %485 = vmatpush1.bf16.msra.mxu0 %v466
      %486 = vmatprep.subr.bf16.mxu0 0
      %487 = vmatpush1.bf16.msra.mxu0 %v467
      %488 = vmatprep.subr.bf16.mxu0 0
      %489 = vmatpush1.bf16.msra.mxu0 %v468
      %490 = vmatprep.subr.bf16.mxu0 0
      %491 = vmatpush1.bf16.msra.mxu0 %v469
      %492 = vmatprep.subr.bf16.mxu0 0
      %493 = vmatpush1.bf16.msra.mxu0 %v470
      %494 = vmatprep.subr.bf16.mxu0 0
      %495 = vmatpush1.bf16.msra.mxu0 %v471
      %496 = vmatprep.subr.bf16.mxu0 0
      %497 = vmatpush1.bf16.msra.mxu0 0
      %498 = vmatprep.subr.bf16.mxu0 0
      %499 = vmatpush1.bf16.msra.mxu0 0
      %500 = vmatprep.subr.bf16.mxu0 0
      %501 = vmatpush1.bf16.msra.mxu0 0
      %502 = vmatprep.subr.bf16.mxu0 0
      %503 = vmatpush1.bf16.msra.mxu0 0
      %504 = vmatprep.subr.bf16.mxu0 0
      %505 = vmatpush1.bf16.msra.mxu0 0
      %506 = vmatprep.subr.bf16.mxu0 0
      %507 = vmatpush1.bf16.msra.mxu0 0
      %508 = vmatprep.subr.bf16.mxu0 0
      %509 = vmatpush1.bf16.msra.mxu0 0
      %510 = vmatprep.subr.bf16.mxu0 0
      %511 = vmatpush1.bf16.msra.mxu0 0
      %512 = vmatprep.mubr.bf16.mxu0 0
      %513 = vmatmul.mubr.bf16.gmra.mrb[0].mxu0 %v388
      %v514 = vpop.f32.mrb[0].mxu0
      %v515 = vadd.f32 %v430, %v514
      %v516 = vpop.f32.mrb[0].mxu0
      %v517 = vpop.f32.mrb[0].mxu0
      %v518 = vadd.f32 %v430, %v517
      %v519 = vpop.f32.mrb[0].mxu0
      %520 = vmatprep.mubr.bf16.mxu0 0
      %521 = vmatmul.mubr.bf16.gmra.mrb[0].mxu0 %v389
      %v522 = vpop.f32.mrb[0].mxu0
      %v523 = vadd.f32 %v430, %v522
      %v524 = vpop.f32.mrb[0].mxu0
      %v525 = vpop.f32.mrb[0].mxu0
      %v526 = vadd.f32 %v430, %v525
      %v527 = vpop.f32.mrb[0].mxu0
      %528 = vmatprep.mubr.bf16.mxu0 0
      %529 = vmatmul.mubr.bf16.gmra.mrb[0].mxu0 %v390
      %v530 = vpop.f32.mrb[0].mxu0
      %v531 = vadd.f32 %v430, %v530
      %v532 = vpop.f32.mrb[0].mxu0
      %v533 = vpop.f32.mrb[0].mxu0
      %v534 = vadd.f32 %v430, %v533
      %v535 = vpop.f32.mrb[0].mxu0
      %536 = vmatprep.mubr.bf16.mxu0 0
      %537 = vmatmul.mubr.bf16.gmra.mrb[0].mxu0 %v391
      %v538 = vpop.f32.mrb[0].mxu0
      %v539 = vadd.f32 %v430, %v538
      %v540 = vpop.f32.mrb[0].mxu0
      %v541 = vpop.f32.mrb[0].mxu0
      %v542 = vadd.f32 %v430, %v541
      %v543 = vpop.f32.mrb[0].mxu0
      %544 = vmatprep.mubr.bf16.mxu0 0
      %545 = vmatmul.mubr.bf16.gmra.mrb[0].mxu0 %v392
      %v546 = vpop.f32.mrb[0].mxu0
      %v547 = vadd.f32 %v430, %v546
      %v548 = vpop.f32.mrb[0].mxu0
      %v549 = vpop.f32.mrb[0].mxu0
      %v550 = vadd.f32 %v430, %v549
      %v551 = vpop.f32.mrb[0].mxu0
      %552 = vmatprep.mubr.bf16.mxu0 0
      %553 = vmatmul.mubr.bf16.gmra.mrb[0].mxu0 %v393
      %v554 = vpop.f32.mrb[0].mxu0
      %v555 = vadd.f32 %v430, %v554
      %v556 = vpop.f32.mrb[0].mxu0
      %v557 = vpop.f32.mrb[0].mxu0
      %v558 = vadd.f32 %v430, %v557
      %v559 = vpop.f32.mrb[0].mxu0
      %560 = vmatprep.mubr.bf16.mxu0 0
      %561 = vmatmul.mubr.bf16.gmra.mrb[0].mxu0 %v394
      %v562 = vpop.f32.mrb[0].mxu0
      %v563 = vadd.f32 %v430, %v562
      %v564 = vpop.f32.mrb[0].mxu0
      %v565 = vpop.f32.mrb[0].mxu0
      %v566 = vadd.f32 %v430, %v565
      %v567 = vpop.f32.mrb[0].mxu0
      %568 = vmatprep.mubr.bf16.mxu0 0
      %569 = vmatmul.mubr.bf16.gmra.mrb[0].mxu0 %v395
      %v570 = vpop.f32.mrb[0].mxu0
      %v571 = vadd.f32 %v430, %v570
      %v572 = vpop.f32.mrb[0].mxu0
      %v573 = vpop.f32.mrb[0].mxu0
      %v574 = vadd.f32 %v430, %v573
      %v575 = vpop.f32.mrb[0].mxu0
      %576 = vmatprep.mubr.bf16.mxu0 0
      %577 = vmatmul.mubr.bf16.gmra.mrb[0].mxu0 %v396
      %v578 = vpop.f32.mrb[0].mxu0
      %v579 = vadd.f32 %v430, %v578
      %v580 = vpop.f32.mrb[0].mxu0
      %v581 = vpop.f32.mrb[0].mxu0
      %v582 = vadd.f32 %v430, %v581
      %v583 = vpop.f32.mrb[0].mxu0
      %584 = vmatprep.mubr.bf16.mxu0 0
      %585 = vmatmul.mubr.bf16.gmra.mrb[0].mxu0 %v397
      %v586 = vpop.f32.mrb[0].mxu0
      %v587 = vadd.f32 %v430, %v586
      %v588 = vpop.f32.mrb[0].mxu0
      %v589 = vpop.f32.mrb[0].mxu0
      %v590 = vadd.f32 %v430, %v589
      %v591 = vpop.f32.mrb[0].mxu0
      %592 = vmatprep.mubr.bf16.mxu0 0
      %593 = vmatmul.mubr.bf16.gmra.mrb[0].mxu0 %v398
      %v594 = vpop.f32.mrb[0].mxu0
      %v595 = vadd.f32 %v430, %v594
      %v596 = vpop.f32.mrb[0].mxu0
      %v597 = vpop.f32.mrb[0].mxu0
      %v598 = vadd.f32 %v430, %v597
      %v599 = vpop.f32.mrb[0].mxu0
      %600 = vmatprep.mubr.bf16.mxu0 0
      %601 = vmatmul.mubr.bf16.gmra.mrb[0].mxu0 %v399
      %v602 = vpop.f32.mrb[0].mxu0
      %v603 = vadd.f32 %v430, %v602
      %v604 = vpop.f32.mrb[0].mxu0
      %v605 = vpop.f32.mrb[0].mxu0
      %v606 = vadd.f32 %v430, %v605
      %v607 = vpop.f32.mrb[0].mxu0
      %608 = vmatprep.mubr.bf16.mxu0 0
      %609 = vmatmul.mubr.bf16.gmra.mrb[0].mxu0 %v400
      %v610 = vpop.f32.mrb[0].mxu0
      %v611 = vadd.f32 %v430, %v610
      %v612 = vpop.f32.mrb[0].mxu0
      %v613 = vpop.f32.mrb[0].mxu0
      %v614 = vadd.f32 %v430, %v613
      %v615 = vpop.f32.mrb[0].mxu0
      %616 = vmatprep.mubr.bf16.mxu0 0
      %617 = vmatmul.mubr.bf16.gmra.mrb[0].mxu0 %v401
      %v618 = vpop.f32.mrb[0].mxu0
      %v619 = vadd.f32 %v430, %v618
      %v620 = vpop.f32.mrb[0].mxu0
      %v621 = vpop.f32.mrb[0].mxu0
      %v622 = vadd.f32 %v430, %v621
      %v623 = vpop.f32.mrb[0].mxu0
      %624 = vmatprep.mubr.bf16.mxu0 0
      %625 = vmatmul.mubr.bf16.gmra.mrb[0].mxu0 %v402
      %v626 = vpop.f32.mrb[0].mxu0
      %v627 = vadd.f32 %v430, %v626
      %v628 = vpop.f32.mrb[0].mxu0
      %v629 = vpop.f32.mrb[0].mxu0
      %v630 = vadd.f32 %v430, %v629
      %v631 = vpop.f32.mrb[0].mxu0
      %632 = vmatprep.mubr.bf16.mxu0 0
      %633 = vmatmul.mubr.bf16.gmra.mrb[0].mxu0 %v403
      %v634 = vpop.f32.mrb[0].mxu0
      %v635 = vadd.f32 %v430, %v634
      %v636 = vpop.f32.mrb[0].mxu0
      %v637 = vpop.f32.mrb[0].mxu0
      %v638 = vadd.f32 %v430, %v637
      %v639 = vpop.f32.mrb[0].mxu0
      %640 = vmatprep.mubr.bf16.mxu0 0
      %641 = vmatmul.mubr.bf16.gmra.mrb[0].mxu0 %v404
      %v642 = vpop.f32.mrb[0].mxu0
      %v643 = vadd.f32 %v430, %v642
      %v644 = vpop.f32.mrb[0].mxu0
      %v645 = vpop.f32.mrb[0].mxu0
      %v646 = vadd.f32 %v430, %v645
      %v647 = vpop.f32.mrb[0].mxu0
      %648 = vmatprep.mubr.bf16.mxu0 0
      %649 = vmatmul.mubr.bf16.gmra.mrb[0].mxu0 %v405
      %v650 = vpop.f32.mrb[0].mxu0
      %v651 = vadd.f32 %v430, %v650
      %v652 = vpop.f32.mrb[0].mxu0
      %v653 = vpop.f32.mrb[0].mxu0
      %v654 = vadd.f32 %v430, %v653
      %v655 = vpop.f32.mrb[0].mxu0
      %656 = vmatprep.mubr.bf16.mxu0 0
      %657 = vmatmul.mubr.bf16.gmra.mrb[0].mxu0 %v406
      %v658 = vpop.f32.mrb[0].mxu0
      %v659 = vadd.f32 %v430, %v658
      %v660 = vpop.f32.mrb[0].mxu0
      %v661 = vpop.f32.mrb[0].mxu0
      %v662 = vadd.f32 %v430, %v661
      %v663 = vpop.f32.mrb[0].mxu0
      %664 = vmatprep.mubr.bf16.mxu0 0
      %665 = vmatmul.mubr.bf16.gmra.mrb[0].mxu0 %v407
      %v666 = vpop.f32.mrb[0].mxu0
      %v667 = vadd.f32 %v430, %v666
      %v668 = vpop.f32.mrb[0].mxu0
      %v669 = vpop.f32.mrb[0].mxu0
      %v670 = vadd.f32 %v430, %v669
      %v671 = vpop.f32.mrb[0].mxu0
      %672 = vmatprep.mubr.bf16.mxu0 0
      %673 = vmatmul.mubr.bf16.gmra.mrb[0].mxu0 %v408
      %v674 = vpop.f32.mrb[0].mxu0
      %v675 = vadd.f32 %v430, %v674
      %v676 = vpop.f32.mrb[0].mxu0
      %v677 = vpop.f32.mrb[0].mxu0
      %v678 = vpop.f32.mrb[0].mxu0
      %679 = vdwg.mxu0
      %v680 = vmax.f32 %v515, 0.0
      %v681 = vmax.f32 %v518, 0.0
      %v682 = vmax.f32 %v523, 0.0
      %v683 = vmax.f32 %v526, 0.0
      %v684 = vmax.f32 %v531, 0.0
      %v685 = vmax.f32 %v534, 0.0
      %v686 = vmax.f32 %v539, 0.0
      %v687 = vmax.f32 %v542, 0.0
      %v688 = vmax.f32 %v547, 0.0
      %v689 = vmax.f32 %v550, 0.0
      %v690 = vmax.f32 %v555, 0.0
      %v691 = vmax.f32 %v558, 0.0
      %v692 = vmax.f32 %v563, 0.0
      %v693 = vmax.f32 %v566, 0.0
      %v694 = vmax.f32 %v571, 0.0
      %v695 = vmax.f32 %v574, 0.0
      %v696 = vmax.f32 %v579, 0.0
      %v697 = vmax.f32 %v582, 0.0
      %v698 = vmax.f32 %v587, 0.0
      %v699 = vmax.f32 %v590, 0.0
      %v700 = vmax.f32 %v595, 0.0
      %v701 = vmax.f32 %v598, 0.0
      %v702 = vmax.f32 %v603, 0.0
      %v703 = vmax.f32 %v606, 0.0
      %v704 = vmax.f32 %v611, 0.0
      %v705 = vmax.f32 %v614, 0.0
      %v706 = vmax.f32 %v619, 0.0
      %v707 = vmax.f32 %v622, 0.0
      %v708 = vmax.f32 %v627, 0.0
      %v709 = vmax.f32 %v630, 0.0
      %v710 = vmax.f32 %v635, 0.0
      %v711 = vmax.f32 %v638, 0.0
      %v712 = vmax.f32 %v643, 0.0
      %v713 = vmax.f32 %v646, 0.0
      %v714 = vmax.f32 %v651, 0.0
      %v715 = vmax.f32 %v654, 0.0
      %v716 = vmax.f32 %v659, 0.0
      %v717 = vmax.f32 %v662, 0.0
      %v718 = vmax.f32 %v667, 0.0
      %v719 = vmax.f32 %v670, 0.0
      %v720 = vmax.f32 %v675, 0.0
      %v721 = vld [vmem:[%s0] sm:$0xff]
      %v722 = vld [vmem:[%s0 + $0x8] sm:$0xff]
      %v723 = vld [vmem:[%s0 + $0x10] sm:$0xff]
      %v724 = vld [vmem:[%s0 + $0x18] sm:$0xff]
      %v725 = vld [vmem:[%s0 + $0x20] sm:$0xff]
      %v726 = vld [vmem:[%s0 + $0x28] sm:$0xff]
      %v727 = vld [vmem:[%s0 + $0x30] sm:$0xff]
      %v728 = vld [vmem:[%s0 + $0x38] sm:$0xff]
      %v729 = vld [vmem:[%s0 + $0x40] sm:$0xff]
      %v730 = vld [vmem:[%s0 + $0x48] sm:$0xff]
      %v731 = vld [vmem:[%s0 + $0x50] sm:$0xff]
      %v732 = vld [vmem:[%s0 + $0x58] sm:$0xff]
      %v733 = vld [vmem:[%s0 + $0x60] sm:$0xff]
      %v734 = vld [vmem:[%s0 + $0x68] sm:$0xff]
      %v735 = vld [vmem:[%s0 + $0x70] sm:$0xff]
      %v736 = vld [vmem:[%s0 + $0x78] sm:$0xff]
      %v737 = vld [vmem:[%s0 + $0x80] sm:$0xff]
      %v738 = vld [vmem:[%s0 + $0x88] sm:$0xff]
      %v739 = vld [vmem:[%s0 + $0x90] sm:$0xff]
      %v740 = vld [vmem:[%s0 + $0x98] sm:$0xff]
      %v741 = vld [vmem:[%s0 + $0xa0] sm:$0xff]
      %v742 = vld [vmem:[%s0 + $0xa8] sm:$0xff]
      %v743 = vld [vmem:[%s0 + $0xb0] sm:$0xff]
      %v744 = vld [vmem:[%s0 + $0xb8] sm:$0xff]
      %v745 = vld [vmem:[%s0 + $0xc0] sm:$0xff]
      %v746 = vld [vmem:[%s0 + $0xc8] sm:$0xff]
      %v747 = vld [vmem:[%s0 + $0xd0] sm:$0xff]
      %v748 = vld [vmem:[%s0 + $0xd8] sm:$0xff]
      %v749 = vld [vmem:[%s0 + $0xe0] sm:$0xff]
      %v750 = vld [vmem:[%s0 + $0xe8] sm:$0xff]
      %v751 = vld [vmem:[%s0 + $0xf0] sm:$0xff]
      %v752 = vld [vmem:[%s0 + $0xf8] sm:$0xff]
      %v753 = vld [vmem:[%s0 + $0x100] sm:$0xff]
      %v754 = vld [vmem:[%s0 + $0x108] sm:$0xff]
      %v755 = vld [vmem:[%s0 + $0x110] sm:$0xff]
      %v756 = vld [vmem:[%s0 + $0x118] sm:$0xff]
      %v757 = vld [vmem:[%s0 + $0x120] sm:$0xff]
      %v758 = vld [vmem:[%s0 + $0x128] sm:$0xff]
      %v759 = vld [vmem:[%s0 + $0x130] sm:$0xff]
      %v760 = vld [vmem:[%s0 + $0x138] sm:$0xff]
      %v761 = vld [vmem:[%s0 + $0x140] sm:$0xff]
      %763 = vset.pattern.permute.xlu0 0
      %764 = vperm.xlu0 %763, %v721
      %v765 = vpop.permute.xlu0 %764
      %768 = vset.pattern.permute.xlu0 0
      %769 = vperm.xlu0 %768, %v722
      %v770 = vpop.permute.xlu0 %769
      %773 = vset.pattern.permute.xlu0 0
      %774 = vperm.xlu0 %773, %v723
      %v775 = vpop.permute.xlu0 %774
      %778 = vset.pattern.permute.xlu0 0
      %779 = vperm.xlu0 %778, %v724
      %v780 = vpop.permute.xlu0 %779
      %783 = vset.pattern.permute.xlu0 0
      %784 = vperm.xlu0 %783, %v725
      %v785 = vpop.permute.xlu0 %784
      %788 = vset.pattern.permute.xlu0 0
      %789 = vperm.xlu0 %788, %v726
      %v790 = vpop.permute.xlu0 %789
      %793 = vset.pattern.permute.xlu0 0
      %794 = vperm.xlu0 %793, %v727
      %v795 = vpop.permute.xlu0 %794
      %798 = vset.pattern.permute.xlu0 0
      %799 = vperm.xlu0 %798, %v728
      %v800 = vpop.permute.xlu0 %799
      %803 = vset.pattern.permute.xlu0 0
      %804 = vperm.xlu0 %803, %v729
      %v805 = vpop.permute.xlu0 %804
      %808 = vset.pattern.permute.xlu0 0
      %809 = vperm.xlu0 %808, %v730
      %v810 = vpop.permute.xlu0 %809
      %813 = vset.pattern.permute.xlu0 0
      %814 = vperm.xlu0 %813, %v731
      %v815 = vpop.permute.xlu0 %814
      %818 = vset.pattern.permute.xlu0 0
      %819 = vperm.xlu0 %818, %v732
      %v820 = vpop.permute.xlu0 %819
      %823 = vset.pattern.permute.xlu0 0
      %824 = vperm.xlu0 %823, %v733
      %v825 = vpop.permute.xlu0 %824
      %828 = vset.pattern.permute.xlu0 0
      %829 = vperm.xlu0 %828, %v734
      %v830 = vpop.permute.xlu0 %829
      %833 = vset.pattern.permute.xlu0 0
      %834 = vperm.xlu0 %833, %v735
      %v835 = vpop.permute.xlu0 %834
      %838 = vset.pattern.permute.xlu0 0
      %839 = vperm.xlu0 %838, %v736
      %v840 = vpop.permute.xlu0 %839
      %843 = vset.pattern.permute.xlu0 0
      %844 = vperm.xlu0 %843, %v737
      %v845 = vpop.permute.xlu0 %844
      %848 = vset.pattern.permute.xlu0 0
      %849 = vperm.xlu0 %848, %v738
      %v850 = vpop.permute.xlu0 %849
      %853 = vset.pattern.permute.xlu0 0
      %854 = vperm.xlu0 %853, %v739
      %v855 = vpop.permute.xlu0 %854
      %858 = vset.pattern.permute.xlu0 0
      %859 = vperm.xlu0 %858, %v740
      %v860 = vpop.permute.xlu0 %859
      %863 = vset.pattern.permute.xlu0 0
      %864 = vperm.xlu0 %863, %v741
      %v865 = vpop.permute.xlu0 %864
      %868 = vset.pattern.permute.xlu0 0
      %869 = vperm.xlu0 %868, %v742
      %v870 = vpop.permute.xlu0 %869
      %873 = vset.pattern.permute.xlu0 0
      %874 = vperm.xlu0 %873, %v743
      %v875 = vpop.permute.xlu0 %874
      %878 = vset.pattern.permute.xlu0 0
      %879 = vperm.xlu0 %878, %v744
      %v880 = vpop.permute.xlu0 %879
      %883 = vset.pattern.permute.xlu0 0
      %884 = vperm.xlu0 %883, %v745
      %v885 = vpop.permute.xlu0 %884
      %888 = vset.pattern.permute.xlu0 0
      %889 = vperm.xlu0 %888, %v746
      %v890 = vpop.permute.xlu0 %889
      %893 = vset.pattern.permute.xlu0 0
      %894 = vperm.xlu0 %893, %v747
      %v895 = vpop.permute.xlu0 %894
      %898 = vset.pattern.permute.xlu0 0
      %899 = vperm.xlu0 %898, %v748
      %v900 = vpop.permute.xlu0 %899
      %903 = vset.pattern.permute.xlu0 0
      %904 = vperm.xlu0 %903, %v749
      %v905 = vpop.permute.xlu0 %904
      %908 = vset.pattern.permute.xlu0 0
      %909 = vperm.xlu0 %908, %v750
      %v910 = vpop.permute.xlu0 %909
      %913 = vset.pattern.permute.xlu0 0
      %914 = vperm.xlu0 %913, %v751
      %v915 = vpop.permute.xlu0 %914
      %918 = vset.pattern.permute.xlu0 0
      %919 = vperm.xlu0 %918, %v752
      %v920 = vpop.permute.xlu0 %919
      %923 = vset.pattern.permute.xlu0 0
      %924 = vperm.xlu0 %923, %v753
      %v925 = vpop.permute.xlu0 %924
      %928 = vset.pattern.permute.xlu0 0
      %929 = vperm.xlu0 %928, %v754
      %v930 = vpop.permute.xlu0 %929
      %933 = vset.pattern.permute.xlu0 0
      %934 = vperm.xlu0 %933, %v755
      %v935 = vpop.permute.xlu0 %934
      %938 = vset.pattern.permute.xlu0 0
      %939 = vperm.xlu0 %938, %v756
      %v940 = vpop.permute.xlu0 %939
      %943 = vset.pattern.permute.xlu0 0
      %944 = vperm.xlu0 %943, %v757
      %v945 = vpop.permute.xlu0 %944
      %948 = vset.pattern.permute.xlu0 0
      %949 = vperm.xlu0 %948, %v758
      %v950 = vpop.permute.xlu0 %949
      %953 = vset.pattern.permute.xlu0 0
      %954 = vperm.xlu0 %953, %v759
      %v955 = vpop.permute.xlu0 %954
      %958 = vset.pattern.permute.xlu0 0
      %959 = vperm.xlu0 %958, %v760
      %v960 = vpop.permute.xlu0 %959
      %963 = vset.pattern.permute.xlu0 0
      %964 = vperm.xlu0 %963, %v761
      %v965 = vpop.permute.xlu0 %964
      %v967 = vmul.f32 %v680, %v765
      %v968 = vmul.f32 %v681, %v770
      %v969 = vmul.f32 %v682, %v775
      %v970 = vmul.f32 %v683, %v780
      %v971 = vmul.f32 %v684, %v785
      %v972 = vmul.f32 %v685, %v790
      %v973 = vmul.f32 %v686, %v795
      %v974 = vmul.f32 %v687, %v800
      %v975 = vmul.f32 %v688, %v805
      %v976 = vmul.f32 %v689, %v810
      %v977 = vmul.f32 %v690, %v815
      %v978 = vmul.f32 %v691, %v820
      %v979 = vmul.f32 %v692, %v825
      %v980 = vmul.f32 %v693, %v830
      %v981 = vmul.f32 %v694, %v835
      %v982 = vmul.f32 %v695, %v840
      %v983 = vmul.f32 %v696, %v845
      %v984 = vmul.f32 %v697, %v850
      %v985 = vmul.f32 %v698, %v855
      %v986 = vmul.f32 %v699, %v860
      %v987 = vmul.f32 %v700, %v865
      %v988 = vmul.f32 %v701, %v870
      %v989 = vmul.f32 %v702, %v875
      %v990 = vmul.f32 %v703, %v880
      %v991 = vmul.f32 %v704, %v885
      %v992 = vmul.f32 %v705, %v890
      %v993 = vmul.f32 %v706, %v895
      %v994 = vmul.f32 %v707, %v900
      %v995 = vmul.f32 %v708, %v905
      %v996 = vmul.f32 %v709, %v910
      %v997 = vmul.f32 %v710, %v915
      %v998 = vmul.f32 %v711, %v920
      %v999 = vmul.f32 %v712, %v925
      %v1000 = vmul.f32 %v713, %v930
      %v1001 = vmul.f32 %v714, %v935
      %v1002 = vmul.f32 %v715, %v940
      %v1003 = vmul.f32 %v716, %v945
      %v1004 = vmul.f32 %v717, %v950
      %v1005 = vmul.f32 %v718, %v955
      %v1006 = vmul.f32 %v719, %v960
      %v1007 = vmul.f32 %v720, %v965
      %v1008 = vpack.c.bf16 %v968, %v967
      %v1009 = vpack.c.bf16 %v970, %v969
      %v1010 = vpack.c.bf16 %v972, %v971
      %v1011 = vpack.c.bf16 %v974, %v973
      %v1012 = vpack.c.bf16 %v976, %v975
      %v1013 = vpack.c.bf16 %v978, %v977
      %v1014 = vpack.c.bf16 %v980, %v979
      %v1015 = vpack.c.bf16 %v982, %v981
      %v1016 = vpack.c.bf16 %v984, %v983
      %v1017 = vpack.c.bf16 %v986, %v985
      %v1018 = vpack.c.bf16 %v988, %v987
      %v1019 = vpack.c.bf16 %v990, %v989
      %v1020 = vpack.c.bf16 %v992, %v991
      %v1021 = vpack.c.bf16 %v994, %v993
      %v1022 = vpack.c.bf16 %v996, %v995
      %v1023 = vpack.c.bf16 %v998, %v997
      %v1024 = vpack.c.bf16 %v1000, %v999
      %v1025 = vpack.c.bf16 %v1002, %v1001
      %v1026 = vpack.c.bf16 %v1004, %v1003
      %v1027 = vpack.c.bf16 %v1006, %v1005
      %v1028 = vpack.c.bf16 %v1007, %v1007
      %v1050 = vunpack.c.l.b16 %v1008
      %v1051 = vunpack.c.h.b16 %v1008
      %v1052 = vunpack.c.l.b16 %v1009
      %v1053 = vunpack.c.h.b16 %v1009
      %v1054 = vunpack.c.l.b16 %v1010
      %v1055 = vunpack.c.h.b16 %v1010
      %v1056 = vunpack.c.l.b16 %v1011
      %v1057 = vunpack.c.h.b16 %v1011
      %v1058 = vunpack.c.l.b16 %v1012
      %v1059 = vunpack.c.h.b16 %v1012
      %v1060 = vunpack.c.l.b16 %v1013
      %v1061 = vunpack.c.h.b16 %v1013
      %v1062 = vunpack.c.l.b16 %v1014
      %v1063 = vunpack.c.h.b16 %v1014
      %v1064 = vunpack.c.l.b16 %v1015
      %v1065 = vunpack.c.h.b16 %v1015
      %v1066 = vunpack.c.l.b16 %v1016
      %v1067 = vunpack.c.h.b16 %v1016
      %v1068 = vunpack.c.l.b16 %v1017
      %v1069 = vunpack.c.h.b16 %v1017
      %v1070 = vunpack.c.l.b16 %v1018
      %v1071 = vunpack.c.h.b16 %v1018
      %v1072 = vunpack.c.l.b16 %v1019
      %v1073 = vunpack.c.h.b16 %v1019
      %v1074 = vunpack.c.l.b16 %v1020
      %v1075 = vunpack.c.h.b16 %v1020
      %v1076 = vunpack.c.l.b16 %v1021
      %v1077 = vunpack.c.h.b16 %v1021
      %v1078 = vunpack.c.l.b16 %v1022
      %v1079 = vunpack.c.h.b16 %v1022
      %v1080 = vunpack.c.l.b16 %v1023
      %v1081 = vunpack.c.h.b16 %v1023
      %v1082 = vunpack.c.l.b16 %v1024
      %v1083 = vunpack.c.h.b16 %v1024
      %v1084 = vunpack.c.l.b16 %v1025
      %v1085 = vunpack.c.h.b16 %v1025
      %v1086 = vunpack.c.l.b16 %v1026
      %v1087 = vunpack.c.h.b16 %v1026
      %v1088 = vunpack.c.l.b16 %v1027
      %v1089 = vunpack.c.h.b16 %v1027
      %v1090 = vunpack.c.l.b16 %v1028
      %v1091 = vpack.c.b16 %v1050, %v1050
      %v1092 = vpack.c.b16 %v1051, %v1051
      %v1093 = vpack.c.b16 %v1052, %v1052
      %v1094 = vpack.c.b16 %v1053, %v1053
      %v1095 = vpack.c.b16 %v1054, %v1054
      %v1096 = vpack.c.b16 %v1055, %v1055
      %v1097 = vpack.c.b16 %v1056, %v1056
      %v1098 = vpack.c.b16 %v1057, %v1057
      %v1099 = vpack.c.b16 %v1058, %v1058
      %v1100 = vpack.c.b16 %v1059, %v1059
      %v1101 = vpack.c.b16 %v1060, %v1060
      %v1102 = vpack.c.b16 %v1061, %v1061
      %v1103 = vpack.c.b16 %v1062, %v1062
      %v1104 = vpack.c.b16 %v1063, %v1063
      %v1105 = vpack.c.b16 %v1064, %v1064
      %v1106 = vpack.c.b16 %v1065, %v1065
      %v1107 = vpack.c.b16 %v1066, %v1066
      %v1108 = vpack.c.b16 %v1067, %v1067
      %v1109 = vpack.c.b16 %v1068, %v1068
      %v1110 = vpack.c.b16 %v1069, %v1069
      %v1111 = vpack.c.b16 %v1070, %v1070
      %v1112 = vpack.c.b16 %v1071, %v1071
      %v1113 = vpack.c.b16 %v1072, %v1072
      %v1114 = vpack.c.b16 %v1073, %v1073
      %v1115 = vpack.c.b16 %v1074, %v1074
      %v1116 = vpack.c.b16 %v1075, %v1075
      %v1117 = vpack.c.b16 %v1076, %v1076
      %v1118 = vpack.c.b16 %v1077, %v1077
      %v1119 = vpack.c.b16 %v1078, %v1078
      %v1120 = vpack.c.b16 %v1079, %v1079
      %v1121 = vpack.c.b16 %v1080, %v1080
      %v1122 = vpack.c.b16 %v1081, %v1081
      %v1123 = vpack.c.b16 %v1082, %v1082
      %v1124 = vpack.c.b16 %v1083, %v1083
      %v1125 = vpack.c.b16 %v1084, %v1084
      %v1126 = vpack.c.b16 %v1085, %v1085
      %v1127 = vpack.c.b16 %v1086, %v1086
      %v1128 = vpack.c.b16 %v1087, %v1087
      %v1129 = vpack.c.b16 %v1088, %v1088
      %v1130 = vpack.c.b16 %v1089, %v1089
      %v1131 = vpack.c.b16 %v1090, %v1090
      %1173 = vst [vmem:[#allocation2] sm:$0xf] %v1091
      %1174 = vst [vmem:[#allocation2 + $0x4] sm:$0xf] %v1092
      %1175 = vst [vmem:[#allocation2 + $0x8] sm:$0xf] %v1093
      %1176 = vst [vmem:[#allocation2 + $0xc] sm:$0xf] %v1094
      %1177 = vst [vmem:[#allocation2 + $0x10] sm:$0xf] %v1095
      %1178 = vst [vmem:[#allocation2 + $0x14] sm:$0xf] %v1096
      %1179 = vst [vmem:[#allocation2 + $0x18] sm:$0xf] %v1097
      %1180 = vst [vmem:[#allocation2 + $0x1c] sm:$0xf] %v1098
      %1181 = vst [vmem:[#allocation2 + $0x20] sm:$0xf] %v1099
      %1182 = vst [vmem:[#allocation2 + $0x24] sm:$0xf] %v1100
      %1183 = vst [vmem:[#allocation2 + $0x28] sm:$0xf] %v1101
      %1184 = vst [vmem:[#allocation2 + $0x2c] sm:$0xf] %v1102
      %1185 = vst [vmem:[#allocation2 + $0x30] sm:$0xf] %v1103
      %1186 = vst [vmem:[#allocation2 + $0x34] sm:$0xf] %v1104
      %1187 = vst [vmem:[#allocation2 + $0x38] sm:$0xf] %v1105
      %1188 = vst [vmem:[#allocation2 + $0x3c] sm:$0xf] %v1106
      %1189 = vst [vmem:[#allocation2 + $0x40] sm:$0xf] %v1107
      %1190 = vst [vmem:[#allocation2 + $0x44] sm:$0xf] %v1108
      %1191 = vst [vmem:[#allocation2 + $0x48] sm:$0xf] %v1109
      %1192 = vst [vmem:[#allocation2 + $0x4c] sm:$0xf] %v1110
      %1193 = vst [vmem:[#allocation2 + $0x50] sm:$0xf] %v1111
      %1194 = vst [vmem:[#allocation2 + $0x54] sm:$0xf] %v1112
      %1195 = vst [vmem:[#allocation2 + $0x58] sm:$0xf] %v1113
      %1196 = vst [vmem:[#allocation2 + $0x5c] sm:$0xf] %v1114
      %1197 = vst [vmem:[#allocation2 + $0x60] sm:$0xf] %v1115
      %1198 = vst [vmem:[#allocation2 + $0x64] sm:$0xf] %v1116
      %1199 = vst [vmem:[#allocation2 + $0x68] sm:$0xf] %v1117
      %1200 = vst [vmem:[#allocation2 + $0x6c] sm:$0xf] %v1118
      %1201 = vst [vmem:[#allocation2 + $0x70] sm:$0xf] %v1119
      %1202 = vst [vmem:[#allocation2 + $0x74] sm:$0xf] %v1120
      %1203 = vst [vmem:[#allocation2 + $0x78] sm:$0xf] %v1121
      %1204 = vst [vmem:[#allocation2 + $0x7c] sm:$0xf] %v1122
      %1205 = vst [vmem:[#allocation2 + $0x80] sm:$0xf] %v1123
      %1206 = vst [vmem:[#allocation2 + $0x84] sm:$0xf] %v1124
      %1207 = vst [vmem:[#allocation2 + $0x88] sm:$0xf] %v1125
      %1208 = vst [vmem:[#allocation2 + $0x8c] sm:$0xf] %v1126
      %1209 = vst [vmem:[#allocation2 + $0x90] sm:$0xf] %v1127
      %1210 = vst [vmem:[#allocation2 + $0x94] sm:$0xf] %v1128
      %1211 = vst [vmem:[#allocation2 + $0x98] sm:$0xf] %v1129
      %1212 = vst [vmem:[#allocation2 + $0x9c] sm:$0xf] %v1130
      %1213 = vst [vmem:[#allocation2 + $0xa0] sm:$0xf] %v1131
      %v1214 = vld [vmem:[#allocation2] sm:$0xf]
      %v1215 = vld [vmem:[#allocation2 + $0x4] sm:$0xf]
      %v1216 = vld [vmem:[#allocation2 + $0x8] sm:$0xf]
      %v1217 = vld [vmem:[#allocation2 + $0xc] sm:$0xf]
      %v1218 = vld [vmem:[#allocation2 + $0x10] sm:$0xf]
      %v1219 = vld [vmem:[#allocation2 + $0x14] sm:$0xf]
      %v1220 = vld [vmem:[#allocation2 + $0x18] sm:$0xf]
      %v1221 = vld [vmem:[#allocation2 + $0x1c] sm:$0xf]
      %v1222 = vld [vmem:[#allocation2 + $0x20] sm:$0xf]
      %v1223 = vld [vmem:[#allocation2 + $0x24] sm:$0xf]
      %v1224 = vld [vmem:[#allocation2 + $0x28] sm:$0xf]
      %v1225 = vld [vmem:[#allocation2 + $0x2c] sm:$0xf]
      %v1226 = vld [vmem:[#allocation2 + $0x30] sm:$0xf]
      %v1227 = vld [vmem:[#allocation2 + $0x34] sm:$0xf]
      %v1228 = vld [vmem:[#allocation2 + $0x38] sm:$0xf]
      %v1229 = vld [vmem:[#allocation2 + $0x3c] sm:$0xf]
      %v1230 = vld [vmem:[#allocation2 + $0x40] sm:$0xf]
      %v1231 = vld [vmem:[#allocation2 + $0x44] sm:$0xf]
      %v1232 = vld [vmem:[#allocation2 + $0x48] sm:$0xf]
      %v1233 = vld [vmem:[#allocation2 + $0x4c] sm:$0xf]
      %v1234 = vld [vmem:[#allocation2 + $0x50] sm:$0xf]
      %v1235 = vld [vmem:[#allocation2 + $0x54] sm:$0xf]
      %v1236 = vld [vmem:[#allocation2 + $0x58] sm:$0xf]
      %v1237 = vld [vmem:[#allocation2 + $0x5c] sm:$0xf]
      %v1238 = vld [vmem:[#allocation2 + $0x60] sm:$0xf]
      %v1239 = vld [vmem:[#allocation2 + $0x64] sm:$0xf]
      %v1240 = vld [vmem:[#allocation2 + $0x68] sm:$0xf]
      %v1241 = vld [vmem:[#allocation2 + $0x6c] sm:$0xf]
      %v1242 = vld [vmem:[#allocation2 + $0x70] sm:$0xf]
      %v1243 = vld [vmem:[#allocation2 + $0x74] sm:$0xf]
      %v1244 = vld [vmem:[#allocation2 + $0x78] sm:$0xf]
      %v1245 = vld [vmem:[#allocation2 + $0x7c] sm:$0xf]
      %v1246 = vld [vmem:[#allocation2 + $0x80] sm:$0xf]
      %v1247 = vld [vmem:[#allocation2 + $0x84] sm:$0xf]
      %v1248 = vld [vmem:[#allocation2 + $0x88] sm:$0xf]
      %v1249 = vld [vmem:[#allocation2 + $0x8c] sm:$0xf]
      %v1250 = vld [vmem:[%s4] sm:$0xf]
      %v1251 = vld [vmem:[%s4 + $0x4] sm:$0xf]
      %v1252 = vld [vmem:[%s4 + $0x8] sm:$0xf]
      %v1253 = vld [vmem:[%s4 + $0xc] sm:$0xf]
      %v1254 = vld [vmem:[%s4 + $0x10] sm:$0xf]
      %v1255 = vld [vmem:[%s4 + $0x14] sm:$0xf]
      %v1256 = vld [vmem:[%s4 + $0x18] sm:$0xf]
      %v1257 = vld [vmem:[%s4 + $0x1c] sm:$0xf]
      %v1258 = vld [vmem:[%s4 + $0x20] sm:$0xf]
      %v1259 = vld [vmem:[%s4 + $0x24] sm:$0xf]
      %v1260 = vld [vmem:[%s4 + $0x28] sm:$0xf]
      %v1261 = vld [vmem:[%s4 + $0x2c] sm:$0xf]
      %v1262 = vld [vmem:[%s4 + $0x30] sm:$0xf]
      %v1263 = vld [vmem:[%s4 + $0x34] sm:$0xf]
      %v1264 = vld [vmem:[%s4 + $0x38] sm:$0xf]
      %v1265 = vld [vmem:[%s4 + $0x3c] sm:$0xf]
      %v1266 = vld [vmem:[#allocation2 + $0x90] sm:$0x1]
      %s1267 = scalar_lea.vmem %s4, 64
      %v1268 = vld [vmem:[%s1267] sm:$0xf]
      %v1269 = vld [vmem:[%s1267 + $0x4] sm:$0xf]
      %v1270 = vld [vmem:[%s1267 + $0x8] sm:$0xf]
      %v1271 = vld [vmem:[%s1267 + $0xc] sm:$0xf]
      %v1272 = vld [vmem:[%s1267 + $0x10] sm:$0xf]
      %v1273 = vld [vmem:[%s1267 + $0x14] sm:$0xf]
      %v1274 = vld [vmem:[%s1267 + $0x18] sm:$0xf]
      %v1275 = vld [vmem:[%s1267 + $0x1c] sm:$0xf]
      %v1276 = vld [vmem:[%s1267 + $0x20] sm:$0xf]
      %v1277 = vld [vmem:[%s1267 + $0x24] sm:$0xf]
      %v1278 = vld [vmem:[%s1267 + $0x28] sm:$0xf]
      %v1279 = vld [vmem:[%s1267 + $0x2c] sm:$0xf]
      %v1280 = vld [vmem:[%s1267 + $0x30] sm:$0xf]
      %v1281 = vld [vmem:[%s1267 + $0x34] sm:$0xf]
      %v1282 = vld [vmem:[%s1267 + $0x38] sm:$0xf]
      %v1283 = vld [vmem:[%s1267 + $0x3c] sm:$0xf]
      %v1321 = vunpack.c.l.b16 %v1214
      %v1322 = vunpack.c.l.b16 %v1215
      %v1323 = vunpack.c.l.b16 %v1216
      %v1324 = vunpack.c.l.b16 %v1217
      %v1325 = vunpack.c.l.b16 %v1218
      %v1326 = vunpack.c.l.b16 %v1219
      %v1327 = vunpack.c.l.b16 %v1220
      %v1328 = vunpack.c.l.b16 %v1221
      %v1329 = vunpack.c.l.b16 %v1222
      %v1330 = vunpack.c.l.b16 %v1223
      %v1331 = vunpack.c.l.b16 %v1224
      %v1332 = vunpack.c.l.b16 %v1225
      %v1333 = vunpack.c.l.b16 %v1226
      %v1334 = vunpack.c.l.b16 %v1227
      %v1335 = vunpack.c.l.b16 %v1228
      %v1336 = vunpack.c.l.b16 %v1229
      %v1337 = vunpack.c.l.b16 %v1230
      %v1338 = vunpack.c.l.b16 %v1231
      %v1339 = vunpack.c.l.b16 %v1232
      %v1340 = vunpack.c.l.b16 %v1233
      %v1341 = vunpack.c.l.b16 %v1234
      %v1342 = vunpack.c.l.b16 %v1235
      %v1343 = vunpack.c.l.b16 %v1236
      %v1344 = vunpack.c.l.b16 %v1237
      %v1345 = vunpack.c.l.b16 %v1238
      %v1346 = vunpack.c.l.b16 %v1239
      %v1347 = vunpack.c.l.b16 %v1240
      %v1348 = vunpack.c.l.b16 %v1241
      %v1349 = vunpack.c.l.b16 %v1242
      %v1350 = vunpack.c.l.b16 %v1243
      %v1351 = vunpack.c.l.b16 %v1244
      %v1352 = vunpack.c.l.b16 %v1245
      %v1353 = vunpack.c.l.b16 %v1246
      %v1354 = vunpack.c.l.b16 %v1247
      %v1355 = vunpack.c.l.b16 %v1248
      %v1356 = vunpack.c.l.b16 %v1249
      %v1357 = vunpack.c.l.b16 %v1266
      %v1358 = vpack.c.b16 %v1322, %v1321
      %v1359 = vpack.c.b16 %v1324, %v1323
      %v1360 = vpack.c.b16 %v1326, %v1325
      %v1361 = vpack.c.b16 %v1328, %v1327
      %v1362 = vpack.c.b16 %v1330, %v1329
      %v1363 = vpack.c.b16 %v1332, %v1331
      %v1364 = vpack.c.b16 %v1334, %v1333
      %v1365 = vpack.c.b16 %v1336, %v1335
      %v1366 = vpack.c.b16 %v1338, %v1337
      %v1367 = vpack.c.b16 %v1340, %v1339
      %v1368 = vpack.c.b16 %v1342, %v1341
      %v1369 = vpack.c.b16 %v1344, %v1343
      %v1370 = vpack.c.b16 %v1346, %v1345
      %v1371 = vpack.c.b16 %v1348, %v1347
      %v1372 = vpack.c.b16 %v1350, %v1349
      %v1373 = vpack.c.b16 %v1352, %v1351
      %v1374 = vpack.c.b16 %v1354, %v1353
      %v1375 = vpack.c.b16 %v1356, %v1355
      %v1376 = vpack.c.b16 %v1357, %v1357
      %vm1377 = vsmask.f32 7424
      %v1379 = vshrl.u32 %v1358, 16
      %v1381 = vshll.u32 %v1358, 16
      %v1383 = vrot.slane %v1381, 1
      %v1384 = vor.u32 %v1379, %v1383
      %v1386 = vshll.u32 %v1359, 16
      %v1388 = vrot.slane %v1386, 1
      %v1389 = vsel %vm1377, %v1384, %v1388
      %v1390 = vshrl.u32 %v1359, 16
      %v1392 = vor.u32 %v1390, %v1388
      %v1394 = vshll.u32 %v1360, 16
      %v1396 = vrot.slane %v1394, 1
      %v1397 = vsel %vm1377, %v1392, %v1396
      %v1398 = vshrl.u32 %v1360, 16
      %v1400 = vor.u32 %v1398, %v1396
      %v1402 = vshll.u32 %v1361, 16
      %v1404 = vrot.slane %v1402, 1
      %v1405 = vsel %vm1377, %v1400, %v1404
      %v1406 = vshrl.u32 %v1361, 16
      %v1408 = vor.u32 %v1406, %v1404
      %v1410 = vshll.u32 %v1362, 16
      %v1412 = vrot.slane %v1410, 1
      %v1413 = vsel %vm1377, %v1408, %v1412
      %v1414 = vshrl.u32 %v1362, 16
      %v1416 = vor.u32 %v1414, %v1412
      %v1418 = vshll.u32 %v1363, 16
      %v1420 = vrot.slane %v1418, 1
      %v1421 = vsel %vm1377, %v1416, %v1420
      %v1422 = vshrl.u32 %v1363, 16
      %v1424 = vor.u32 %v1422, %v1420
      %v1426 = vshll.u32 %v1364, 16
      %v1428 = vrot.slane %v1426, 1
      %v1429 = vsel %vm1377, %v1424, %v1428
      %v1430 = vshrl.u32 %v1364, 16
      %v1432 = vor.u32 %v1430, %v1428
      %v1434 = vshll.u32 %v1365, 16
      %v1436 = vrot.slane %v1434, 1
      %v1437 = vsel %vm1377, %v1432, %v1436
      %v1438 = vshrl.u32 %v1365, 16
      %v1440 = vor.u32 %v1438, %v1436
      %v1442 = vshll.u32 %v1366, 16
      %v1444 = vrot.slane %v1442, 1
      %v1445 = vsel %vm1377, %v1440, %v1444
      %v1446 = vshrl.u32 %v1366, 16
      %v1448 = vor.u32 %v1446, %v1444
      %v1450 = vshll.u32 %v1367, 16
      %v1452 = vrot.slane %v1450, 1
      %v1453 = vsel %vm1377, %v1448, %v1452
      %v1454 = vshrl.u32 %v1367, 16
      %v1456 = vor.u32 %v1454, %v1452
      %v1458 = vshll.u32 %v1368, 16
      %v1460 = vrot.slane %v1458, 1
      %v1461 = vsel %vm1377, %v1456, %v1460
      %v1462 = vshrl.u32 %v1368, 16
      %v1464 = vor.u32 %v1462, %v1460
      %v1466 = vshll.u32 %v1369, 16
      %v1468 = vrot.slane %v1466, 1
      %v1469 = vsel %vm1377, %v1464, %v1468
      %v1470 = vshrl.u32 %v1369, 16
      %v1472 = vor.u32 %v1470, %v1468
      %v1474 = vshll.u32 %v1370, 16
      %v1476 = vrot.slane %v1474, 1
      %v1477 = vsel %vm1377, %v1472, %v1476
      %v1478 = vshrl.u32 %v1370, 16
      %v1480 = vor.u32 %v1478, %v1476
      %v1482 = vshll.u32 %v1371, 16
      %v1484 = vrot.slane %v1482, 1
      %v1485 = vsel %vm1377, %v1480, %v1484
      %v1486 = vshrl.u32 %v1371, 16
      %v1488 = vor.u32 %v1486, %v1484
      %v1490 = vshll.u32 %v1372, 16
      %v1492 = vrot.slane %v1490, 1
      %v1493 = vsel %vm1377, %v1488, %v1492
      %v1494 = vshrl.u32 %v1372, 16
      %v1496 = vor.u32 %v1494, %v1492
      %v1498 = vshll.u32 %v1373, 16
      %v1500 = vrot.slane %v1498, 1
      %v1501 = vsel %vm1377, %v1496, %v1500
      %v1502 = vshrl.u32 %v1373, 16
      %v1504 = vor.u32 %v1502, %v1500
      %v1506 = vshll.u32 %v1374, 16
      %v1508 = vrot.slane %v1506, 1
      %v1509 = vsel %vm1377, %v1504, %v1508
      %v1510 = vshrl.u32 %v1374, 16
      %v1512 = vor.u32 %v1510, %v1508
      %v1514 = vshll.u32 %v1375, 16
      %v1516 = vrot.slane %v1514, 1
      %v1517 = vsel %vm1377, %v1512, %v1516
      %v1518 = vshrl.u32 %v1375, 16
      %v1520 = vor.u32 %v1518, %v1516
      %v1522 = vshll.u32 %v1376, 16
      %v1524 = vrot.slane %v1522, 1
      %v1525 = vsel %vm1377, %v1520, %v1524
      %v1560 = vunpack.c.l.b16 %v1268
      %v1561 = vunpack.c.l.b16 %v1269
      %v1562 = vunpack.c.l.b16 %v1270
      %v1563 = vunpack.c.l.b16 %v1271
      %v1564 = vunpack.c.l.b16 %v1272
      %v1565 = vunpack.c.l.b16 %v1273
      %v1566 = vunpack.c.l.b16 %v1274
      %v1567 = vunpack.c.l.b16 %v1275
      %v1568 = vunpack.c.l.b16 %v1276
      %v1569 = vunpack.c.l.b16 %v1277
      %v1570 = vunpack.c.l.b16 %v1278
      %v1571 = vunpack.c.l.b16 %v1279
      %v1572 = vunpack.c.l.b16 %v1280
      %v1573 = vunpack.c.l.b16 %v1281
      %v1574 = vunpack.c.l.b16 %v1282
      %v1575 = vunpack.c.l.b16 %v1283
      %v1576 = vpack.c.b16 %v1561, %v1560
      %v1577 = vpack.c.b16 %v1563, %v1562
      %v1578 = vpack.c.b16 %v1565, %v1564
      %v1579 = vpack.c.b16 %v1567, %v1566
      %v1580 = vpack.c.b16 %v1569, %v1568
      %v1581 = vpack.c.b16 %v1571, %v1570
      %v1582 = vpack.c.b16 %v1573, %v1572
      %v1583 = vpack.c.b16 %v1575, %v1574
      %1592 = vmatprep.subr.bf16.mxu0 0
      %1593 = vmatpush1.bf16.msra.mxu0 %v1576
      %1594 = vmatprep.subr.bf16.mxu0 0
      %1595 = vmatpush1.bf16.msra.mxu0 %v1577
      %1596 = vmatprep.subr.bf16.mxu0 0
      %1597 = vmatpush1.bf16.msra.mxu0 %v1578
      %1598 = vmatprep.subr.bf16.mxu0 0
      %1599 = vmatpush1.bf16.msra.mxu0 %v1579
      %1600 = vmatprep.subr.bf16.mxu0 0
      %1601 = vmatpush1.bf16.msra.mxu0 %v1580
      %1602 = vmatprep.subr.bf16.mxu0 0
      %1603 = vmatpush1.bf16.msra.mxu0 %v1581
      %1604 = vmatprep.subr.bf16.mxu0 0
      %1605 = vmatpush1.bf16.msra.mxu0 %v1582
      %1606 = vmatprep.subr.bf16.mxu0 0
      %1607 = vmatpush1.bf16.msra.mxu0 %v1583
      %1608 = vmatprep.subr.bf16.mxu0 0
      %1609 = vmatpush1.bf16.msra.mxu0 0
      %1610 = vmatprep.subr.bf16.mxu0 0
      %1611 = vmatpush1.bf16.msra.mxu0 0
      %1612 = vmatprep.subr.bf16.mxu0 0
      %1613 = vmatpush1.bf16.msra.mxu0 0
      %1614 = vmatprep.subr.bf16.mxu0 0
      %1615 = vmatpush1.bf16.msra.mxu0 0
      %1616 = vmatprep.subr.bf16.mxu0 0
      %1617 = vmatpush1.bf16.msra.mxu0 0
      %1618 = vmatprep.subr.bf16.mxu0 0
      %1619 = vmatpush1.bf16.msra.mxu0 0
      %1620 = vmatprep.subr.bf16.mxu0 0
      %1621 = vmatpush1.bf16.msra.mxu0 0
      %1622 = vmatprep.subr.bf16.mxu0 0
      %1623 = vmatpush1.bf16.msra.mxu0 0
      %1624 = vmatprep.mubr.bf16.mxu0 0
      %1625 = vmatmul.mubr.bf16.gmra.mrb[0].mxu0 %v1389
      %v1626 = vpop.f32.mrb[0].mxu0
      %v1627 = vadd.f32 0.0, %v1626
      %v1628 = vpop.f32.mrb[0].mxu0
      %v1629 = vpop.f32.mrb[0].mxu0
      %v1630 = vadd.f32 0.0, %v1629
      %v1631 = vpop.f32.mrb[0].mxu0
      %1632 = vmatprep.mubr.bf16.mxu0 0
      %1633 = vmatmul.mubr.bf16.gmra.mrb[0].mxu0 %v1397
      %v1634 = vpop.f32.mrb[0].mxu0
      %v1635 = vadd.f32 0.0, %v1634
      %v1636 = vpop.f32.mrb[0].mxu0
      %v1637 = vpop.f32.mrb[0].mxu0
      %v1638 = vadd.f32 0.0, %v1637
      %v1639 = vpop.f32.mrb[0].mxu0
      %1640 = vmatprep.mubr.bf16.mxu0 0
      %1641 = vmatmul.mubr.bf16.gmra.mrb[0].mxu0 %v1405
      %v1642 = vpop.f32.mrb[0].mxu0
      %v1643 = vadd.f32 0.0, %v1642
      %v1644 = vpop.f32.mrb[0].mxu0
      %v1645 = vpop.f32.mrb[0].mxu0
      %v1646 = vadd.f32 0.0, %v1645
      %v1647 = vpop.f32.mrb[0].mxu0
      %1648 = vmatprep.mubr.bf16.mxu0 0
      %1649 = vmatmul.mubr.bf16.gmra.mrb[0].mxu0 %v1413
      %v1650 = vpop.f32.mrb[0].mxu0
      %v1651 = vadd.f32 0.0, %v1650
      %v1652 = vpop.f32.mrb[0].mxu0
      %v1653 = vpop.f32.mrb[0].mxu0
      %v1654 = vadd.f32 0.0, %v1653
      %v1655 = vpop.f32.mrb[0].mxu0
      %1656 = vmatprep.mubr.bf16.mxu0 0
      %1657 = vmatmul.mubr.bf16.gmra.mrb[0].mxu0 %v1421
      %v1658 = vpop.f32.mrb[0].mxu0
      %v1659 = vadd.f32 0.0, %v1658
      %v1660 = vpop.f32.mrb[0].mxu0
      %v1661 = vpop.f32.mrb[0].mxu0
      %v1662 = vadd.f32 0.0, %v1661
      %v1663 = vpop.f32.mrb[0].mxu0
      %1664 = vmatprep.mubr.bf16.mxu0 0
      %1665 = vmatmul.mubr.bf16.gmra.mrb[0].mxu0 %v1429
      %v1666 = vpop.f32.mrb[0].mxu0
      %v1667 = vadd.f32 0.0, %v1666
      %v1668 = vpop.f32.mrb[0].mxu0
      %v1669 = vpop.f32.mrb[0].mxu0
      %v1670 = vadd.f32 0.0, %v1669
      %v1671 = vpop.f32.mrb[0].mxu0
      %1672 = vmatprep.mubr.bf16.mxu0 0
      %1673 = vmatmul.mubr.bf16.gmra.mrb[0].mxu0 %v1437
      %v1674 = vpop.f32.mrb[0].mxu0
      %v1675 = vadd.f32 0.0, %v1674
      %v1676 = vpop.f32.mrb[0].mxu0
      %v1677 = vpop.f32.mrb[0].mxu0
      %v1678 = vadd.f32 0.0, %v1677
      %v1679 = vpop.f32.mrb[0].mxu0
      %1680 = vmatprep.mubr.bf16.mxu0 0
      %1681 = vmatmul.mubr.bf16.gmra.mrb[0].mxu0 %v1445
      %v1682 = vpop.f32.mrb[0].mxu0
      %v1683 = vadd.f32 0.0, %v1682
      %v1684 = vpop.f32.mrb[0].mxu0
      %v1685 = vpop.f32.mrb[0].mxu0
      %v1686 = vadd.f32 0.0, %v1685
      %v1687 = vpop.f32.mrb[0].mxu0
      %1688 = vmatprep.mubr.bf16.mxu0 0
      %1689 = vmatmul.mubr.bf16.gmra.mrb[0].mxu0 %v1453
      %v1690 = vpop.f32.mrb[0].mxu0
      %v1691 = vadd.f32 0.0, %v1690
      %v1692 = vpop.f32.mrb[0].mxu0
      %v1693 = vpop.f32.mrb[0].mxu0
      %v1694 = vadd.f32 0.0, %v1693
      %v1695 = vpop.f32.mrb[0].mxu0
      %1696 = vmatprep.mubr.bf16.mxu0 0
      %1697 = vmatmul.mubr.bf16.gmra.mrb[0].mxu0 %v1461
      %v1698 = vpop.f32.mrb[0].mxu0
      %v1699 = vadd.f32 0.0, %v1698
      %v1700 = vpop.f32.mrb[0].mxu0
      %v1701 = vpop.f32.mrb[0].mxu0
      %v1702 = vadd.f32 0.0, %v1701
      %v1703 = vpop.f32.mrb[0].mxu0
      %1704 = vmatprep.mubr.bf16.mxu0 0
      %1705 = vmatmul.mubr.bf16.gmra.mrb[0].mxu0 %v1469
      %v1706 = vpop.f32.mrb[0].mxu0
      %v1707 = vadd.f32 0.0, %v1706
      %v1708 = vpop.f32.mrb[0].mxu0
      %v1709 = vpop.f32.mrb[0].mxu0
      %v1710 = vadd.f32 0.0, %v1709
      %v1711 = vpop.f32.mrb[0].mxu0
      %1712 = vmatprep.mubr.bf16.mxu0 0
      %1713 = vmatmul.mubr.bf16.gmra.mrb[0].mxu0 %v1477
      %v1714 = vpop.f32.mrb[0].mxu0
      %v1715 = vadd.f32 0.0, %v1714
      %v1716 = vpop.f32.mrb[0].mxu0
      %v1717 = vpop.f32.mrb[0].mxu0
      %v1718 = vadd.f32 0.0, %v1717
      %v1719 = vpop.f32.mrb[0].mxu0
      %1720 = vmatprep.mubr.bf16.mxu0 0
      %1721 = vmatmul.mubr.bf16.gmra.mrb[0].mxu0 %v1485
      %v1722 = vpop.f32.mrb[0].mxu0
      %v1723 = vadd.f32 0.0, %v1722
      %v1724 = vpop.f32.mrb[0].mxu0
      %v1725 = vpop.f32.mrb[0].mxu0
      %v1726 = vadd.f32 0.0, %v1725
      %v1727 = vpop.f32.mrb[0].mxu0
      %1728 = vmatprep.mubr.bf16.mxu0 0
      %1729 = vmatmul.mubr.bf16.gmra.mrb[0].mxu0 %v1493
      %v1730 = vpop.f32.mrb[0].mxu0
      %v1731 = vadd.f32 0.0, %v1730
      %v1732 = vpop.f32.mrb[0].mxu0
      %v1733 = vpop.f32.mrb[0].mxu0
      %v1734 = vadd.f32 0.0, %v1733
      %v1735 = vpop.f32.mrb[0].mxu0
      %1736 = vmatprep.mubr.bf16.mxu0 0
      %1737 = vmatmul.mubr.bf16.gmra.mrb[0].mxu0 %v1501
      %v1738 = vpop.f32.mrb[0].mxu0
      %v1739 = vadd.f32 0.0, %v1738
      %v1740 = vpop.f32.mrb[0].mxu0
      %v1741 = vpop.f32.mrb[0].mxu0
      %v1742 = vadd.f32 0.0, %v1741
      %v1743 = vpop.f32.mrb[0].mxu0
      %1744 = vmatprep.mubr.bf16.mxu0 0
      %1745 = vmatmul.mubr.bf16.gmra.mrb[0].mxu0 %v1509
      %v1746 = vpop.f32.mrb[0].mxu0
      %v1747 = vadd.f32 0.0, %v1746
      %v1748 = vpop.f32.mrb[0].mxu0
      %v1749 = vpop.f32.mrb[0].mxu0
      %v1750 = vadd.f32 0.0, %v1749
      %v1751 = vpop.f32.mrb[0].mxu0
      %1752 = vmatprep.mubr.bf16.mxu0 0
      %1753 = vmatmul.mubr.bf16.gmra.mrb[0].mxu0 %v1517
      %v1754 = vpop.f32.mrb[0].mxu0
      %v1755 = vadd.f32 0.0, %v1754
      %v1756 = vpop.f32.mrb[0].mxu0
      %v1757 = vpop.f32.mrb[0].mxu0
      %v1758 = vadd.f32 0.0, %v1757
      %v1759 = vpop.f32.mrb[0].mxu0
      %1760 = vmatprep.mubr.bf16.mxu0 0
      %1761 = vmatmul.mubr.bf16.gmra.mrb[0].mxu0 %v1525
      %v1762 = vpop.f32.mrb[0].mxu0
      %v1763 = vadd.f32 0.0, %v1762
      %v1764 = vpop.f32.mrb[0].mxu0
      %v1765 = vpop.f32.mrb[0].mxu0
      %v1766 = vadd.f32 0.0, %v1765
      %v1767 = vpop.f32.mrb[0].mxu0
      %1768 = vdwg.mxu0
      %v1803 = vunpack.c.l.b16 %v1250
      %v1804 = vunpack.c.l.b16 %v1251
      %v1805 = vunpack.c.l.b16 %v1252
      %v1806 = vunpack.c.l.b16 %v1253
      %v1807 = vunpack.c.l.b16 %v1254
      %v1808 = vunpack.c.l.b16 %v1255
      %v1809 = vunpack.c.l.b16 %v1256
      %v1810 = vunpack.c.l.b16 %v1257
      %v1811 = vunpack.c.l.b16 %v1258
      %v1812 = vunpack.c.l.b16 %v1259
      %v1813 = vunpack.c.l.b16 %v1260
      %v1814 = vunpack.c.l.b16 %v1261
      %v1815 = vunpack.c.l.b16 %v1262
      %v1816 = vunpack.c.l.b16 %v1263
      %v1817 = vunpack.c.l.b16 %v1264
      %v1818 = vunpack.c.l.b16 %v1265
      %v1819 = vpack.c.b16 %v1804, %v1803
      %v1820 = vpack.c.b16 %v1806, %v1805
      %v1821 = vpack.c.b16 %v1808, %v1807
      %v1822 = vpack.c.b16 %v1810, %v1809
      %v1823 = vpack.c.b16 %v1812, %v1811
      %v1824 = vpack.c.b16 %v1814, %v1813
      %v1825 = vpack.c.b16 %v1816, %v1815
      %v1826 = vpack.c.b16 %v1818, %v1817
      %1835 = vmatprep.subr.bf16.mxu0 0
      %1836 = vmatpush1.bf16.msra.mxu0 %v1819
      %1837 = vmatprep.subr.bf16.mxu0 0
      %1838 = vmatpush1.bf16.msra.mxu0 %v1820
      %1839 = vmatprep.subr.bf16.mxu0 0
      %1840 = vmatpush1.bf16.msra.mxu0 %v1821
      %1841 = vmatprep.subr.bf16.mxu0 0
      %1842 = vmatpush1.bf16.msra.mxu0 %v1822
      %1843 = vmatprep.subr.bf16.mxu0 0
      %1844 = vmatpush1.bf16.msra.mxu0 %v1823
      %1845 = vmatprep.subr.bf16.mxu0 0
      %1846 = vmatpush1.bf16.msra.mxu0 %v1824
      %1847 = vmatprep.subr.bf16.mxu0 0
      %1848 = vmatpush1.bf16.msra.mxu0 %v1825
      %1849 = vmatprep.subr.bf16.mxu0 0
      %1850 = vmatpush1.bf16.msra.mxu0 %v1826
      %1851 = vmatprep.subr.bf16.mxu0 0
      %1852 = vmatpush1.bf16.msra.mxu0 0
      %1853 = vmatprep.subr.bf16.mxu0 0
      %1854 = vmatpush1.bf16.msra.mxu0 0
      %1855 = vmatprep.subr.bf16.mxu0 0
      %1856 = vmatpush1.bf16.msra.mxu0 0
      %1857 = vmatprep.subr.bf16.mxu0 0
      %1858 = vmatpush1.bf16.msra.mxu0 0
      %1859 = vmatprep.subr.bf16.mxu0 0
      %1860 = vmatpush1.bf16.msra.mxu0 0
      %1861 = vmatprep.subr.bf16.mxu0 0
      %1862 = vmatpush1.bf16.msra.mxu0 0
      %1863 = vmatprep.subr.bf16.mxu0 0
      %1864 = vmatpush1.bf16.msra.mxu0 0
      %1865 = vmatprep.subr.bf16.mxu0 0
      %1866 = vmatpush1.bf16.msra.mxu0 0
      %1867 = vmatprep.mubr.bf16.mxu0 0
      %1868 = vmatmul.mubr.bf16.gmra.mrb[0].mxu0 %v1358
      %v1869 = vpop.f32.mrb[0].mxu0
      %v1870 = vadd.f32 %v1627, %v1869
      %v1871 = vpop.f32.mrb[0].mxu0
      %v1872 = vpop.f32.mrb[0].mxu0
      %v1873 = vadd.f32 %v1630, %v1872
      %v1874 = vpop.f32.mrb[0].mxu0
      %1875 = vmatprep.mubr.bf16.mxu0 0
      %1876 = vmatmul.mubr.bf16.gmra.mrb[0].mxu0 %v1359
      %v1877 = vpop.f32.mrb[0].mxu0
      %v1878 = vadd.f32 %v1635, %v1877
      %v1879 = vpop.f32.mrb[0].mxu0
      %v1880 = vpop.f32.mrb[0].mxu0
      %v1881 = vadd.f32 %v1638, %v1880
      %v1882 = vpop.f32.mrb[0].mxu0
      %1883 = vmatprep.mubr.bf16.mxu0 0
      %1884 = vmatmul.mubr.bf16.gmra.mrb[0].mxu0 %v1360
      %v1885 = vpop.f32.mrb[0].mxu0
      %v1886 = vadd.f32 %v1643, %v1885
      %v1887 = vpop.f32.mrb[0].mxu0
      %v1888 = vpop.f32.mrb[0].mxu0
      %v1889 = vadd.f32 %v1646, %v1888
      %v1890 = vpop.f32.mrb[0].mxu0
      %1891 = vmatprep.mubr.bf16.mxu0 0
      %1892 = vmatmul.mubr.bf16.gmra.mrb[0].mxu0 %v1361
      %v1893 = vpop.f32.mrb[0].mxu0
      %v1894 = vadd.f32 %v1651, %v1893
      %v1895 = vpop.f32.mrb[0].mxu0
      %v1896 = vpop.f32.mrb[0].mxu0
      %v1897 = vadd.f32 %v1654, %v1896
      %v1898 = vpop.f32.mrb[0].mxu0
      %1899 = vmatprep.mubr.bf16.mxu0 0
      %1900 = vmatmul.mubr.bf16.gmra.mrb[0].mxu0 %v1362
      %v1901 = vpop.f32.mrb[0].mxu0
      %v1902 = vadd.f32 %v1659, %v1901
      %v1903 = vpop.f32.mrb[0].mxu0
      %v1904 = vpop.f32.mrb[0].mxu0
      %v1905 = vadd.f32 %v1662, %v1904
      %v1906 = vpop.f32.mrb[0].mxu0
      %1907 = vmatprep.mubr.bf16.mxu0 0
      %1908 = vmatmul.mubr.bf16.gmra.mrb[0].mxu0 %v1363
      %v1909 = vpop.f32.mrb[0].mxu0
      %v1910 = vadd.f32 %v1667, %v1909
      %v1911 = vpop.f32.mrb[0].mxu0
      %v1912 = vpop.f32.mrb[0].mxu0
      %v1913 = vadd.f32 %v1670, %v1912
      %v1914 = vpop.f32.mrb[0].mxu0
      %1915 = vmatprep.mubr.bf16.mxu0 0
      %1916 = vmatmul.mubr.bf16.gmra.mrb[0].mxu0 %v1364
      %v1917 = vpop.f32.mrb[0].mxu0
      %v1918 = vadd.f32 %v1675, %v1917
      %v1919 = vpop.f32.mrb[0].mxu0
      %v1920 = vpop.f32.mrb[0].mxu0
      %v1921 = vadd.f32 %v1678, %v1920
      %v1922 = vpop.f32.mrb[0].mxu0
      %1923 = vmatprep.mubr.bf16.mxu0 0
      %1924 = vmatmul.mubr.bf16.gmra.mrb[0].mxu0 %v1365
      %v1925 = vpop.f32.mrb[0].mxu0
      %v1926 = vadd.f32 %v1683, %v1925
      %v1927 = vpop.f32.mrb[0].mxu0
      %v1928 = vpop.f32.mrb[0].mxu0
      %v1929 = vadd.f32 %v1686, %v1928
      %v1930 = vpop.f32.mrb[0].mxu0
      %1931 = vmatprep.mubr.bf16.mxu0 0
      %1932 = vmatmul.mubr.bf16.gmra.mrb[0].mxu0 %v1366
      %v1933 = vpop.f32.mrb[0].mxu0
      %v1934 = vadd.f32 %v1691, %v1933
      %v1935 = vpop.f32.mrb[0].mxu0
      %v1936 = vpop.f32.mrb[0].mxu0
      %v1937 = vadd.f32 %v1694, %v1936
      %v1938 = vpop.f32.mrb[0].mxu0
      %1939 = vmatprep.mubr.bf16.mxu0 0
      %1940 = vmatmul.mubr.bf16.gmra.mrb[0].mxu0 %v1367
      %v1941 = vpop.f32.mrb[0].mxu0
      %v1942 = vadd.f32 %v1699, %v1941
      %v1943 = vpop.f32.mrb[0].mxu0
      %v1944 = vpop.f32.mrb[0].mxu0
      %v1945 = vadd.f32 %v1702, %v1944
      %v1946 = vpop.f32.mrb[0].mxu0
      %1947 = vmatprep.mubr.bf16.mxu0 0
      %1948 = vmatmul.mubr.bf16.gmra.mrb[0].mxu0 %v1368
      %v1949 = vpop.f32.mrb[0].mxu0
      %v1950 = vadd.f32 %v1707, %v1949
      %v1951 = vpop.f32.mrb[0].mxu0
      %v1952 = vpop.f32.mrb[0].mxu0
      %v1953 = vadd.f32 %v1710, %v1952
      %v1954 = vpop.f32.mrb[0].mxu0
      %1955 = vmatprep.mubr.bf16.mxu0 0
      %1956 = vmatmul.mubr.bf16.gmra.mrb[0].mxu0 %v1369
      %v1957 = vpop.f32.mrb[0].mxu0
      %v1958 = vadd.f32 %v1715, %v1957
      %v1959 = vpop.f32.mrb[0].mxu0
      %v1960 = vpop.f32.mrb[0].mxu0
      %v1961 = vadd.f32 %v1718, %v1960
      %v1962 = vpop.f32.mrb[0].mxu0
      %1963 = vmatprep.mubr.bf16.mxu0 0
      %1964 = vmatmul.mubr.bf16.gmra.mrb[0].mxu0 %v1370
      %v1965 = vpop.f32.mrb[0].mxu0
      %v1966 = vadd.f32 %v1723, %v1965
      %v1967 = vpop.f32.mrb[0].mxu0
      %v1968 = vpop.f32.mrb[0].mxu0
      %v1969 = vadd.f32 %v1726, %v1968
      %v1970 = vpop.f32.mrb[0].mxu0
      %1971 = vmatprep.mubr.bf16.mxu0 0
      %1972 = vmatmul.mubr.bf16.gmra.mrb[0].mxu0 %v1371
      %v1973 = vpop.f32.mrb[0].mxu0
      %v1974 = vadd.f32 %v1731, %v1973
      %v1975 = vpop.f32.mrb[0].mxu0
      %v1976 = vpop.f32.mrb[0].mxu0
      %v1977 = vadd.f32 %v1734, %v1976
      %v1978 = vpop.f32.mrb[0].mxu0
      %1979 = vmatprep.mubr.bf16.mxu0 0
      %1980 = vmatmul.mubr.bf16.gmra.mrb[0].mxu0 %v1372
      %v1981 = vpop.f32.mrb[0].mxu0
      %v1982 = vadd.f32 %v1739, %v1981
      %v1983 = vpop.f32.mrb[0].mxu0
      %v1984 = vpop.f32.mrb[0].mxu0
      %v1985 = vadd.f32 %v1742, %v1984
      %v1986 = vpop.f32.mrb[0].mxu0
      %1987 = vmatprep.mubr.bf16.mxu0 0
      %1988 = vmatmul.mubr.bf16.gmra.mrb[0].mxu0 %v1373
      %v1989 = vpop.f32.mrb[0].mxu0
      %v1990 = vadd.f32 %v1747, %v1989
      %v1991 = vpop.f32.mrb[0].mxu0
      %v1992 = vpop.f32.mrb[0].mxu0
      %v1993 = vadd.f32 %v1750, %v1992
      %v1994 = vpop.f32.mrb[0].mxu0
      %1995 = vmatprep.mubr.bf16.mxu0 0
      %1996 = vmatmul.mubr.bf16.gmra.mrb[0].mxu0 %v1374
      %v1997 = vpop.f32.mrb[0].mxu0
      %v1998 = vadd.f32 %v1755, %v1997
      %v1999 = vpop.f32.mrb[0].mxu0
      %v2000 = vpop.f32.mrb[0].mxu0
      %v2001 = vadd.f32 %v1758, %v2000
      %v2002 = vpop.f32.mrb[0].mxu0
      %2003 = vmatprep.mubr.bf16.mxu0 0
      %2004 = vmatmul.mubr.bf16.gmra.mrb[0].mxu0 %v1375
      %v2005 = vpop.f32.mrb[0].mxu0
      %v2006 = vadd.f32 %v1763, %v2005
      %v2007 = vpop.f32.mrb[0].mxu0
      %v2008 = vpop.f32.mrb[0].mxu0
      %v2009 = vadd.f32 %v1766, %v2008
      %v2010 = vpop.f32.mrb[0].mxu0
      %2011 = vdwg.mxu0
      %v2012 = vld [vmem:[#allocation2] sm:$0xe]
      %s2013 = scalar_lea.vmem %s4, 128
      %v2014 = vld [vmem:[%s2013] sm:$0xf]
      %v2015 = vld [vmem:[%s2013 + $0x4] sm:$0xf]
      %v2016 = vld [vmem:[%s2013 + $0x8] sm:$0xf]
      %v2017 = vld [vmem:[%s2013 + $0xc] sm:$0xf]
      %v2018 = vld [vmem:[%s2013 + $0x10] sm:$0xf]
      %v2019 = vld [vmem:[%s2013 + $0x14] sm:$0xf]
      %v2020 = vld [vmem:[%s2013 + $0x18] sm:$0xf]
      %v2021 = vld [vmem:[%s2013 + $0x1c] sm:$0xf]
      %v2022 = vld [vmem:[%s2013 + $0x20] sm:$0xf]
      %v2023 = vld [vmem:[%s2013 + $0x24] sm:$0xf]
      %v2024 = vld [vmem:[%s2013 + $0x28] sm:$0xf]
      %v2025 = vld [vmem:[%s2013 + $0x2c] sm:$0xf]
      %v2026 = vld [vmem:[%s2013 + $0x30] sm:$0xf]
      %v2027 = vld [vmem:[%s2013 + $0x34] sm:$0xf]
      %v2028 = vld [vmem:[%s2013 + $0x38] sm:$0xf]
      %v2029 = vld [vmem:[%s2013 + $0x3c] sm:$0xf]
      %v2031 = vunpack.c.l.b16 %v2012
      %v2032 = vpack.c.b16 %v1322, %v2031
      %vm2033 = vcmask 1046528
      %v2034 = vrot.slane %v2032, 1
      %v2035 = vrot.slane %v1359, 1
      %v2036 = vsel %vm2033, %v2034, %v2035
      %v2037 = vrot.slane %v1360, 1
      %v2038 = vsel %vm2033, %v2035, %v2037
      %v2039 = vrot.slane %v1361, 1
      %v2040 = vsel %vm2033, %v2037, %v2039
      %v2041 = vrot.slane %v1362, 1
      %v2042 = vsel %vm2033, %v2039, %v2041
      %v2043 = vrot.slane %v1363, 1
      %v2044 = vsel %vm2033, %v2041, %v2043
      %v2045 = vrot.slane %v1364, 1
      %v2046 = vsel %vm2033, %v2043, %v2045
      %v2047 = vrot.slane %v1365, 1
      %v2048 = vsel %vm2033, %v2045, %v2047
      %v2049 = vrot.slane %v1366, 1
      %v2050 = vsel %vm2033, %v2047, %v2049
      %v2051 = vrot.slane %v1367, 1
      %v2052 = vsel %vm2033, %v2049, %v2051
      %v2053 = vrot.slane %v1368, 1
      %v2054 = vsel %vm2033, %v2051, %v2053
      %v2055 = vrot.slane %v1369, 1
      %v2056 = vsel %vm2033, %v2053, %v2055
      %v2057 = vrot.slane %v1370, 1
      %v2058 = vsel %vm2033, %v2055, %v2057
      %v2059 = vrot.slane %v1371, 1
      %v2060 = vsel %vm2033, %v2057, %v2059
      %v2061 = vrot.slane %v1372, 1
      %v2062 = vsel %vm2033, %v2059, %v2061
      %v2063 = vrot.slane %v1373, 1
      %v2064 = vsel %vm2033, %v2061, %v2063
      %v2065 = vrot.slane %v1374, 1
      %v2066 = vsel %vm2033, %v2063, %v2065
      %v2067 = vrot.slane %v1375, 1
      %v2068 = vsel %vm2033, %v2065, %v2067
      %v2069 = vrot.slane %v1376, 1
      %v2070 = vsel %vm2033, %v2067, %v2069
      %v2105 = vunpack.c.l.b16 %v2014
      %v2106 = vunpack.c.l.b16 %v2015
      %v2107 = vunpack.c.l.b16 %v2016
      %v2108 = vunpack.c.l.b16 %v2017
      %v2109 = vunpack.c.l.b16 %v2018
      %v2110 = vunpack.c.l.b16 %v2019
      %v2111 = vunpack.c.l.b16 %v2020
      %v2112 = vunpack.c.l.b16 %v2021
      %v2113 = vunpack.c.l.b16 %v2022
      %v2114 = vunpack.c.l.b16 %v2023
      %v2115 = vunpack.c.l.b16 %v2024
      %v2116 = vunpack.c.l.b16 %v2025
      %v2117 = vunpack.c.l.b16 %v2026
      %v2118 = vunpack.c.l.b16 %v2027
      %v2119 = vunpack.c.l.b16 %v2028
      %v2120 = vunpack.c.l.b16 %v2029
      %v2121 = vpack.c.b16 %v2106, %v2105
      %v2122 = vpack.c.b16 %v2108, %v2107
      %v2123 = vpack.c.b16 %v2110, %v2109
      %v2124 = vpack.c.b16 %v2112, %v2111
      %v2125 = vpack.c.b16 %v2114, %v2113
      %v2126 = vpack.c.b16 %v2116, %v2115
      %v2127 = vpack.c.b16 %v2118, %v2117
      %v2128 = vpack.c.b16 %v2120, %v2119
      %2137 = vmatprep.subr.bf16.mxu0 0
      %2138 = vmatpush1.bf16.msra.mxu0 %v2121
      %2139 = vmatprep.subr.bf16.mxu0 0
      %2140 = vmatpush1.bf16.msra.mxu0 %v2122
      %2141 = vmatprep.subr.bf16.mxu0 0
      %2142 = vmatpush1.bf16.msra.mxu0 %v2123
      %2143 = vmatprep.subr.bf16.mxu0 0
      %2144 = vmatpush1.bf16.msra.mxu0 %v2124
      %2145 = vmatprep.subr.bf16.mxu0 0
      %2146 = vmatpush1.bf16.msra.mxu0 %v2125
      %2147 = vmatprep.subr.bf16.mxu0 0
      %2148 = vmatpush1.bf16.msra.mxu0 %v2126
      %2149 = vmatprep.subr.bf16.mxu0 0
      %2150 = vmatpush1.bf16.msra.mxu0 %v2127
      %2151 = vmatprep.subr.bf16.mxu0 0
      %2152 = vmatpush1.bf16.msra.mxu0 %v2128
      %2153 = vmatprep.subr.bf16.mxu0 0
      %2154 = vmatpush1.bf16.msra.mxu0 0
      %2155 = vmatprep.subr.bf16.mxu0 0
      %2156 = vmatpush1.bf16.msra.mxu0 0
      %2157 = vmatprep.subr.bf16.mxu0 0
      %2158 = vmatpush1.bf16.msra.mxu0 0
      %2159 = vmatprep.subr.bf16.mxu0 0
      %2160 = vmatpush1.bf16.msra.mxu0 0
      %2161 = vmatprep.subr.bf16.mxu0 0
      %2162 = vmatpush1.bf16.msra.mxu0 0
      %2163 = vmatprep.subr.bf16.mxu0 0
      %2164 = vmatpush1.bf16.msra.mxu0 0
      %2165 = vmatprep.subr.bf16.mxu0 0
      %2166 = vmatpush1.bf16.msra.mxu0 0
      %2167 = vmatprep.subr.bf16.mxu0 0
      %2168 = vmatpush1.bf16.msra.mxu0 0
      %2169 = vmatprep.mubr.bf16.mxu0 0
      %2170 = vmatmul.mubr.bf16.gmra.mrb[0].mxu0 %v2036
      %v2171 = vpop.f32.mrb[0].mxu0
      %v2172 = vadd.f32 0.0, %v2171
      %v2173 = vpop.f32.mrb[0].mxu0
      %v2174 = vpop.f32.mrb[0].mxu0
      %v2175 = vadd.f32 0.0, %v2174
      %v2176 = vpop.f32.mrb[0].mxu0
      %2177 = vmatprep.mubr.bf16.mxu0 0
      %2178 = vmatmul.mubr.bf16.gmra.mrb[0].mxu0 %v2038
      %v2179 = vpop.f32.mrb[0].mxu0
      %v2180 = vadd.f32 0.0, %v2179
      %v2181 = vpop.f32.mrb[0].mxu0
      %v2182 = vpop.f32.mrb[0].mxu0
      %v2183 = vadd.f32 0.0, %v2182
      %v2184 = vpop.f32.mrb[0].mxu0
      %2185 = vmatprep.mubr.bf16.mxu0 0
      %2186 = vmatmul.mubr.bf16.gmra.mrb[0].mxu0 %v2040
      %v2187 = vpop.f32.mrb[0].mxu0
      %v2188 = vadd.f32 0.0, %v2187
      %v2189 = vpop.f32.mrb[0].mxu0
      %v2190 = vpop.f32.mrb[0].mxu0
      %v2191 = vadd.f32 0.0, %v2190
      %v2192 = vpop.f32.mrb[0].mxu0
      %2193 = vmatprep.mubr.bf16.mxu0 0
      %2194 = vmatmul.mubr.bf16.gmra.mrb[0].mxu0 %v2042
      %v2195 = vpop.f32.mrb[0].mxu0
      %v2196 = vadd.f32 0.0, %v2195
      %v2197 = vpop.f32.mrb[0].mxu0
      %v2198 = vpop.f32.mrb[0].mxu0
      %v2199 = vadd.f32 0.0, %v2198
      %v2200 = vpop.f32.mrb[0].mxu0
      %2201 = vmatprep.mubr.bf16.mxu0 0
      %2202 = vmatmul.mubr.bf16.gmra.mrb[0].mxu0 %v2044
      %v2203 = vpop.f32.mrb[0].mxu0
      %v2204 = vadd.f32 0.0, %v2203
      %v2205 = vpop.f32.mrb[0].mxu0
      %v2206 = vpop.f32.mrb[0].mxu0
      %v2207 = vadd.f32 0.0, %v2206
      %v2208 = vpop.f32.mrb[0].mxu0
      %2209 = vmatprep.mubr.bf16.mxu0 0
      %2210 = vmatmul.mubr.bf16.gmra.mrb[0].mxu0 %v2046
      %v2211 = vpop.f32.mrb[0].mxu0
      %v2212 = vadd.f32 0.0, %v2211
      %v2213 = vpop.f32.mrb[0].mxu0
      %v2214 = vpop.f32.mrb[0].mxu0
      %v2215 = vadd.f32 0.0, %v2214
      %v2216 = vpop.f32.mrb[0].mxu0
      %2217 = vmatprep.mubr.bf16.mxu0 0
      %2218 = vmatmul.mubr.bf16.gmra.mrb[0].mxu0 %v2048
      %v2219 = vpop.f32.mrb[0].mxu0
      %v2220 = vadd.f32 0.0, %v2219
      %v2221 = vpop.f32.mrb[0].mxu0
      %v2222 = vpop.f32.mrb[0].mxu0
      %v2223 = vadd.f32 0.0, %v2222
      %v2224 = vpop.f32.mrb[0].mxu0
      %2225 = vmatprep.mubr.bf16.mxu0 0
      %2226 = vmatmul.mubr.bf16.gmra.mrb[0].mxu0 %v2050
      %v2227 = vpop.f32.mrb[0].mxu0
      %v2228 = vadd.f32 0.0, %v2227
      %v2229 = vpop.f32.mrb[0].mxu0
      %v2230 = vpop.f32.mrb[0].mxu0
      %v2231 = vadd.f32 0.0, %v2230
      %v2232 = vpop.f32.mrb[0].mxu0
      %2233 = vmatprep.mubr.bf16.mxu0 0
      %2234 = vmatmul.mubr.bf16.gmra.mrb[0].mxu0 %v2052
      %v2235 = vpop.f32.mrb[0].mxu0
      %v2236 = vadd.f32 0.0, %v2235
      %v2237 = vpop.f32.mrb[0].mxu0
      %v2238 = vpop.f32.mrb[0].mxu0
      %v2239 = vadd.f32 0.0, %v2238
      %v2240 = vpop.f32.mrb[0].mxu0
      %2241 = vmatprep.mubr.bf16.mxu0 0
      %2242 = vmatmul.mubr.bf16.gmra.mrb[0].mxu0 %v2054
      %v2243 = vpop.f32.mrb[0].mxu0
      %v2244 = vadd.f32 0.0, %v2243
      %v2245 = vpop.f32.mrb[0].mxu0
      %v2246 = vpop.f32.mrb[0].mxu0
      %v2247 = vadd.f32 0.0, %v2246
      %v2248 = vpop.f32.mrb[0].mxu0
      %2249 = vmatprep.mubr.bf16.mxu0 0
      %2250 = vmatmul.mubr.bf16.gmra.mrb[0].mxu0 %v2056
      %v2251 = vpop.f32.mrb[0].mxu0
      %v2252 = vadd.f32 0.0, %v2251
      %v2253 = vpop.f32.mrb[0].mxu0
      %v2254 = vpop.f32.mrb[0].mxu0
      %v2255 = vadd.f32 0.0, %v2254
      %v2256 = vpop.f32.mrb[0].mxu0
      %2257 = vmatprep.mubr.bf16.mxu0 0
      %2258 = vmatmul.mubr.bf16.gmra.mrb[0].mxu0 %v2058
      %v2259 = vpop.f32.mrb[0].mxu0
      %v2260 = vadd.f32 0.0, %v2259
      %v2261 = vpop.f32.mrb[0].mxu0
      %v2262 = vpop.f32.mrb[0].mxu0
      %v2263 = vadd.f32 0.0, %v2262
      %v2264 = vpop.f32.mrb[0].mxu0
      %2265 = vmatprep.mubr.bf16.mxu0 0
      %2266 = vmatmul.mubr.bf16.gmra.mrb[0].mxu0 %v2060
      %v2267 = vpop.f32.mrb[0].mxu0
      %v2268 = vadd.f32 0.0, %v2267
      %v2269 = vpop.f32.mrb[0].mxu0
      %v2270 = vpop.f32.mrb[0].mxu0
      %v2271 = vadd.f32 0.0, %v2270
      %v2272 = vpop.f32.mrb[0].mxu0
      %2273 = vmatprep.mubr.bf16.mxu0 0
      %2274 = vmatmul.mubr.bf16.gmra.mrb[0].mxu0 %v2062
      %v2275 = vpop.f32.mrb[0].mxu0
      %v2276 = vadd.f32 0.0, %v2275
      %v2277 = vpop.f32.mrb[0].mxu0
      %v2278 = vpop.f32.mrb[0].mxu0
      %v2279 = vadd.f32 0.0, %v2278
      %v2280 = vpop.f32.mrb[0].mxu0
      %2281 = vmatprep.mubr.bf16.mxu0 0
      %2282 = vmatmul.mubr.bf16.gmra.mrb[0].mxu0 %v2064
      %v2283 = vpop.f32.mrb[0].mxu0
      %v2284 = vadd.f32 0.0, %v2283
      %v2285 = vpop.f32.mrb[0].mxu0
      %v2286 = vpop.f32.mrb[0].mxu0
      %v2287 = vadd.f32 0.0, %v2286
      %v2288 = vpop.f32.mrb[0].mxu0
      %2289 = vmatprep.mubr.bf16.mxu0 0
      %2290 = vmatmul.mubr.bf16.gmra.mrb[0].mxu0 %v2066
      %v2291 = vpop.f32.mrb[0].mxu0
      %v2292 = vadd.f32 0.0, %v2291
      %v2293 = vpop.f32.mrb[0].mxu0
      %v2294 = vpop.f32.mrb[0].mxu0
      %v2295 = vadd.f32 0.0, %v2294
      %v2296 = vpop.f32.mrb[0].mxu0
      %2297 = vmatprep.mubr.bf16.mxu0 0
      %2298 = vmatmul.mubr.bf16.gmra.mrb[0].mxu0 %v2068
      %v2299 = vpop.f32.mrb[0].mxu0
      %v2300 = vadd.f32 0.0, %v2299
      %v2301 = vpop.f32.mrb[0].mxu0
      %v2302 = vpop.f32.mrb[0].mxu0
      %v2303 = vadd.f32 0.0, %v2302
      %v2304 = vpop.f32.mrb[0].mxu0
      %2305 = vmatprep.mubr.bf16.mxu0 0
      %2306 = vmatmul.mubr.bf16.gmra.mrb[0].mxu0 %v2070
      %v2307 = vpop.f32.mrb[0].mxu0
      %v2308 = vadd.f32 0.0, %v2307
      %v2309 = vpop.f32.mrb[0].mxu0
      %v2310 = vpop.f32.mrb[0].mxu0
      %v2311 = vadd.f32 0.0, %v2310
      %v2312 = vpop.f32.mrb[0].mxu0
      %2313 = vdwg.mxu0
      %v2314 = vadd.f32 %v1870, %v2172
      %v2315 = vadd.f32 %v1873, %v2175
      %v2316 = vadd.f32 %v1878, %v2180
      %v2317 = vadd.f32 %v1881, %v2183
      %v2318 = vadd.f32 %v1886, %v2188
      %v2319 = vadd.f32 %v1889, %v2191
      %v2320 = vadd.f32 %v1894, %v2196
      %v2321 = vadd.f32 %v1897, %v2199
      %v2322 = vadd.f32 %v1902, %v2204
      %v2323 = vadd.f32 %v1905, %v2207
      %v2324 = vadd.f32 %v1910, %v2212
      %v2325 = vadd.f32 %v1913, %v2215
      %v2326 = vadd.f32 %v1918, %v2220
      %v2327 = vadd.f32 %v1921, %v2223
      %v2328 = vadd.f32 %v1926, %v2228
      %v2329 = vadd.f32 %v1929, %v2231
      %v2330 = vadd.f32 %v1934, %v2236
      %v2331 = vadd.f32 %v1937, %v2239
      %v2332 = vadd.f32 %v1942, %v2244
      %v2333 = vadd.f32 %v1945, %v2247
      %v2334 = vadd.f32 %v1950, %v2252
      %v2335 = vadd.f32 %v1953, %v2255
      %v2336 = vadd.f32 %v1958, %v2260
      %v2337 = vadd.f32 %v1961, %v2263
      %v2338 = vadd.f32 %v1966, %v2268
      %v2339 = vadd.f32 %v1969, %v2271
      %v2340 = vadd.f32 %v1974, %v2276
      %v2341 = vadd.f32 %v1977, %v2279
      %v2342 = vadd.f32 %v1982, %v2284
      %v2343 = vadd.f32 %v1985, %v2287
      %v2344 = vadd.f32 %v1990, %v2292
      %v2345 = vadd.f32 %v1993, %v2295
      %v2346 = vadd.f32 %v1998, %v2300
      %v2347 = vadd.f32 %v2001, %v2303
      %v2348 = vadd.f32 %v2006, %v2308
      %v2349 = vadd.f32 %v2009, %v2311
      %v2350 = vld [vmem:[#allocation2 + $0x8] sm:$0xe]
      %v2351 = vld [vmem:[#allocation2 + $0xc] sm:$0xf]
      %v2352 = vld [vmem:[#allocation2 + $0x10] sm:$0xf]
      %v2353 = vld [vmem:[#allocation2 + $0x14] sm:$0xf]
      %v2354 = vld [vmem:[#allocation2 + $0x18] sm:$0xf]
      %v2355 = vld [vmem:[#allocation2 + $0x1c] sm:$0xf]
      %v2356 = vld [vmem:[#allocation2 + $0x20] sm:$0xf]
      %v2357 = vld [vmem:[#allocation2 + $0x24] sm:$0xf]
      %v2358 = vld [vmem:[#allocation2 + $0x28] sm:$0xf]
      %v2359 = vld [vmem:[#allocation2 + $0x2c] sm:$0xf]
      %v2360 = vld [vmem:[#allocation2 + $0x30] sm:$0xf]
      %v2361 = vld [vmem:[#allocation2 + $0x34] sm:$0xf]
      %v2362 = vld [vmem:[#allocation2 + $0x38] sm:$0xf]
      %v2363 = vld [vmem:[#allocation2 + $0x3c] sm:$0xf]
      %v2364 = vld [vmem:[#allocation2 + $0x40] sm:$0xf]
      %v2365 = vld [vmem:[#allocation2 + $0x44] sm:$0xf]
      %v2366 = vld [vmem:[#allocation2 + $0x48] sm:$0xf]
      %v2367 = vld [vmem:[#allocation2 + $0x4c] sm:$0xf]
      %v2368 = vld [vmem:[#allocation2 + $0x50] sm:$0xf]
      %v2369 = vld [vmem:[#allocation2 + $0x54] sm:$0xf]
      %v2370 = vld [vmem:[#allocation2 + $0x58] sm:$0xf]
      %v2371 = vld [vmem:[#allocation2 + $0x5c] sm:$0xf]
      %v2372 = vld [vmem:[#allocation2 + $0x60] sm:$0xf]
      %v2373 = vld [vmem:[#allocation2 + $0x64] sm:$0xf]
      %v2374 = vld [vmem:[#allocation2 + $0x68] sm:$0xf]
      %v2375 = vld [vmem:[#allocation2 + $0x6c] sm:$0xf]
      %v2376 = vld [vmem:[#allocation2 + $0x70] sm:$0xf]
      %v2377 = vld [vmem:[#allocation2 + $0x74] sm:$0xf]
      %v2378 = vld [vmem:[#allocation2 + $0x78] sm:$0xf]
      %v2379 = vld [vmem:[#allocation2 + $0x7c] sm:$0xf]
      %v2380 = vld [vmem:[#allocation2 + $0x80] sm:$0xf]
      %v2381 = vld [vmem:[#allocation2 + $0x84] sm:$0xf]
      %v2382 = vld [vmem:[#allocation2 + $0x88] sm:$0xf]
      %v2383 = vld [vmem:[#allocation2 + $0x8c] sm:$0xf]
      %v2384 = vld [vmem:[#allocation2 + $0x90] sm:$0xf]
      %v2385 = vld [vmem:[#allocation2 + $0x94] sm:$0xf]
      %v2386 = vld [vmem:[#allocation2 + $0x98] sm:$0x1]
      %s2387 = scalar_lea.vmem %s4, 192
      %v2388 = vld [vmem:[%s2387] sm:$0xf]
      %v2389 = vld [vmem:[%s2387 + $0x4] sm:$0xf]
      %v2390 = vld [vmem:[%s2387 + $0x8] sm:$0xf]
      %v2391 = vld [vmem:[%s2387 + $0xc] sm:$0xf]
      %v2392 = vld [vmem:[%s2387 + $0x10] sm:$0xf]
      %v2393 = vld [vmem:[%s2387 + $0x14] sm:$0xf]
      %v2394 = vld [vmem:[%s2387 + $0x18] sm:$0xf]
      %v2395 = vld [vmem:[%s2387 + $0x1c] sm:$0xf]
      %v2396 = vld [vmem:[%s2387 + $0x20] sm:$0xf]
      %v2397 = vld [vmem:[%s2387 + $0x24] sm:$0xf]
      %v2398 = vld [vmem:[%s2387 + $0x28] sm:$0xf]
      %v2399 = vld [vmem:[%s2387 + $0x2c] sm:$0xf]
      %v2400 = vld [vmem:[%s2387 + $0x30] sm:$0xf]
      %v2401 = vld [vmem:[%s2387 + $0x34] sm:$0xf]
      %v2402 = vld [vmem:[%s2387 + $0x38] sm:$0xf]
      %v2403 = vld [vmem:[%s2387 + $0x3c] sm:$0xf]
      %v2441 = vunpack.c.l.b16 %v2350
      %v2442 = vunpack.c.l.b16 %v2351
      %v2443 = vunpack.c.l.b16 %v2352
      %v2444 = vunpack.c.l.b16 %v2353
      %v2445 = vunpack.c.l.b16 %v2354
      %v2446 = vunpack.c.l.b16 %v2355
      %v2447 = vunpack.c.l.b16 %v2356
      %v2448 = vunpack.c.l.b16 %v2357
      %v2449 = vunpack.c.l.b16 %v2358
      %v2450 = vunpack.c.l.b16 %v2359
      %v2451 = vunpack.c.l.b16 %v2360
      %v2452 = vunpack.c.l.b16 %v2361
      %v2453 = vunpack.c.l.b16 %v2362
      %v2454 = vunpack.c.l.b16 %v2363
      %v2455 = vunpack.c.l.b16 %v2364
      %v2456 = vunpack.c.l.b16 %v2365
      %v2457 = vunpack.c.l.b16 %v2366
      %v2458 = vunpack.c.l.b16 %v2367
      %v2459 = vunpack.c.l.b16 %v2368
      %v2460 = vunpack.c.l.b16 %v2369
      %v2461 = vunpack.c.l.b16 %v2370
      %v2462 = vunpack.c.l.b16 %v2371
      %v2463 = vunpack.c.l.b16 %v2372
      %v2464 = vunpack.c.l.b16 %v2373
      %v2465 = vunpack.c.l.b16 %v2374
      %v2466 = vunpack.c.l.b16 %v2375
      %v2467 = vunpack.c.l.b16 %v2376
      %v2468 = vunpack.c.l.b16 %v2377
      %v2469 = vunpack.c.l.b16 %v2378
      %v2470 = vunpack.c.l.b16 %v2379
      %v2471 = vunpack.c.l.b16 %v2380
      %v2472 = vunpack.c.l.b16 %v2381
      %v2473 = vunpack.c.l.b16 %v2382
      %v2474 = vunpack.c.l.b16 %v2383
      %v2475 = vunpack.c.l.b16 %v2384
      %v2476 = vunpack.c.l.b16 %v2385
      %v2477 = vunpack.c.l.b16 %v2386
      %v2478 = vpack.c.b16 %v2442, %v2441
      %v2479 = vpack.c.b16 %v2444, %v2443
      %v2480 = vpack.c.b16 %v2446, %v2445
      %v2481 = vpack.c.b16 %v2448, %v2447
      %v2482 = vpack.c.b16 %v2450, %v2449
      %v2483 = vpack.c.b16 %v2452, %v2451
      %v2484 = vpack.c.b16 %v2454, %v2453
      %v2485 = vpack.c.b16 %v2456, %v2455
      %v2486 = vpack.c.b16 %v2458, %v2457
      %v2487 = vpack.c.b16 %v2460, %v2459
      %v2488 = vpack.c.b16 %v2462, %v2461
      %v2489 = vpack.c.b16 %v2464, %v2463
      %v2490 = vpack.c.b16 %v2466, %v2465
      %v2491 = vpack.c.b16 %v2468, %v2467
      %v2492 = vpack.c.b16 %v2470, %v2469
      %v2493 = vpack.c.b16 %v2472, %v2471
      %v2494 = vpack.c.b16 %v2474, %v2473
      %v2495 = vpack.c.b16 %v2476, %v2475
      %v2496 = vpack.c.b16 %v2477, %v2477
      %v2497 = vrot.slane %v2478, 1
      %v2498 = vrot.slane %v2479, 1
      %v2499 = vsel %vm2033, %v2497, %v2498
      %v2500 = vrot.slane %v2480, 1
      %v2501 = vsel %vm2033, %v2498, %v2500
      %v2502 = vrot.slane %v2481, 1
      %v2503 = vsel %vm2033, %v2500, %v2502
      %v2504 = vrot.slane %v2482, 1
      %v2505 = vsel %vm2033, %v2502, %v2504
      %v2506 = vrot.slane %v2483, 1
      %v2507 = vsel %vm2033, %v2504, %v2506
      %v2508 = vrot.slane %v2484, 1
      %v2509 = vsel %vm2033, %v2506, %v2508
      %v2510 = vrot.slane %v2485, 1
      %v2511 = vsel %vm2033, %v2508, %v2510
      %v2512 = vrot.slane %v2486, 1
      %v2513 = vsel %vm2033, %v2510, %v2512
      %v2514 = vrot.slane %v2487, 1
      %v2515 = vsel %vm2033, %v2512, %v2514
      %v2516 = vrot.slane %v2488, 1
      %v2517 = vsel %vm2033, %v2514, %v2516
      %v2518 = vrot.slane %v2489, 1
      %v2519 = vsel %vm2033, %v2516, %v2518
      %v2520 = vrot.slane %v2490, 1
      %v2521 = vsel %vm2033, %v2518, %v2520
      %v2522 = vrot.slane %v2491, 1
      %v2523 = vsel %vm2033, %v2520, %v2522
      %v2524 = vrot.slane %v2492, 1
      %v2525 = vsel %vm2033, %v2522, %v2524
      %v2526 = vrot.slane %v2493, 1
      %v2527 = vsel %vm2033, %v2524, %v2526
      %v2528 = vrot.slane %v2494, 1
      %v2529 = vsel %vm2033, %v2526, %v2528
      %v2530 = vrot.slane %v2495, 1
      %v2531 = vsel %vm2033, %v2528, %v2530
      %v2532 = vrot.slane %v2496, 1
      %v2533 = vsel %vm2033, %v2530, %v2532
      %v2568 = vunpack.c.l.b16 %v2388
      %v2569 = vunpack.c.l.b16 %v2389
      %v2570 = vunpack.c.l.b16 %v2390
      %v2571 = vunpack.c.l.b16 %v2391
      %v2572 = vunpack.c.l.b16 %v2392
      %v2573 = vunpack.c.l.b16 %v2393
      %v2574 = vunpack.c.l.b16 %v2394
      %v2575 = vunpack.c.l.b16 %v2395
      %v2576 = vunpack.c.l.b16 %v2396
      %v2577 = vunpack.c.l.b16 %v2397
      %v2578 = vunpack.c.l.b16 %v2398
      %v2579 = vunpack.c.l.b16 %v2399
      %v2580 = vunpack.c.l.b16 %v2400
      %v2581 = vunpack.c.l.b16 %v2401
      %v2582 = vunpack.c.l.b16 %v2402
      %v2583 = vunpack.c.l.b16 %v2403
      %v2584 = vpack.c.b16 %v2569, %v2568
      %v2585 = vpack.c.b16 %v2571, %v2570
      %v2586 = vpack.c.b16 %v2573, %v2572
      %v2587 = vpack.c.b16 %v2575, %v2574
      %v2588 = vpack.c.b16 %v2577, %v2576
      %v2589 = vpack.c.b16 %v2579, %v2578
      %v2590 = vpack.c.b16 %v2581, %v2580
      %v2591 = vpack.c.b16 %v2583, %v2582
      %2600 = vmatprep.subr.bf16.mxu0 0
      %2601 = vmatpush1.bf16.msra.mxu0 %v2584
      %2602 = vmatprep.subr.bf16.mxu0 0
      %2603 = vmatpush1.bf16.msra.mxu0 %v2585
      %2604 = vmatprep.subr.bf16.mxu0 0
      %2605 = vmatpush1.bf16.msra.mxu0 %v2586
      %2606 = vmatprep.subr.bf16.mxu0 0
      %2607 = vmatpush1.bf16.msra.mxu0 %v2587
      %2608 = vmatprep.subr.bf16.mxu0 0
      %2609 = vmatpush1.bf16.msra.mxu0 %v2588
      %2610 = vmatprep.subr.bf16.mxu0 0
      %2611 = vmatpush1.bf16.msra.mxu0 %v2589
      %2612 = vmatprep.subr.bf16.mxu0 0
      %2613 = vmatpush1.bf16.msra.mxu0 %v2590
      %2614 = vmatprep.subr.bf16.mxu0 0
      %2615 = vmatpush1.bf16.msra.mxu0 %v2591
      %2616 = vmatprep.subr.bf16.mxu0 0
      %2617 = vmatpush1.bf16.msra.mxu0 0
      %2618 = vmatprep.subr.bf16.mxu0 0
      %2619 = vmatpush1.bf16.msra.mxu0 0
      %2620 = vmatprep.subr.bf16.mxu0 0
      %2621 = vmatpush1.bf16.msra.mxu0 0
      %2622 = vmatprep.subr.bf16.mxu0 0
      %2623 = vmatpush1.bf16.msra.mxu0 0
      %2624 = vmatprep.subr.bf16.mxu0 0
      %2625 = vmatpush1.bf16.msra.mxu0 0
      %2626 = vmatprep.subr.bf16.mxu0 0
      %2627 = vmatpush1.bf16.msra.mxu0 0
      %2628 = vmatprep.subr.bf16.mxu0 0
      %2629 = vmatpush1.bf16.msra.mxu0 0
      %2630 = vmatprep.subr.bf16.mxu0 0
      %2631 = vmatpush1.bf16.msra.mxu0 0
      %2632 = vmatprep.mubr.bf16.mxu0 0
      %2633 = vmatmul.mubr.bf16.gmra.mrb[0].mxu0 %v2499
      %v2634 = vpop.f32.mrb[0].mxu0
      %v2635 = vadd.f32 0.0, %v2634
      %v2636 = vpop.f32.mrb[0].mxu0
      %v2637 = vpop.f32.mrb[0].mxu0
      %v2638 = vadd.f32 0.0, %v2637
      %v2639 = vpop.f32.mrb[0].mxu0
      %2640 = vmatprep.mubr.bf16.mxu0 0
      %2641 = vmatmul.mubr.bf16.gmra.mrb[0].mxu0 %v2501
      %v2642 = vpop.f32.mrb[0].mxu0
      %v2643 = vadd.f32 0.0, %v2642
      %v2644 = vpop.f32.mrb[0].mxu0
      %v2645 = vpop.f32.mrb[0].mxu0
      %v2646 = vadd.f32 0.0, %v2645
      %v2647 = vpop.f32.mrb[0].mxu0
      %2648 = vmatprep.mubr.bf16.mxu0 0
      %2649 = vmatmul.mubr.bf16.gmra.mrb[0].mxu0 %v2503
      %v2650 = vpop.f32.mrb[0].mxu0
      %v2651 = vadd.f32 0.0, %v2650
      %v2652 = vpop.f32.mrb[0].mxu0
      %v2653 = vpop.f32.mrb[0].mxu0
      %v2654 = vadd.f32 0.0, %v2653
      %v2655 = vpop.f32.mrb[0].mxu0
      %2656 = vmatprep.mubr.bf16.mxu0 0
      %2657 = vmatmul.mubr.bf16.gmra.mrb[0].mxu0 %v2505
      %v2658 = vpop.f32.mrb[0].mxu0
      %v2659 = vadd.f32 0.0, %v2658
      %v2660 = vpop.f32.mrb[0].mxu0
      %v2661 = vpop.f32.mrb[0].mxu0
      %v2662 = vadd.f32 0.0, %v2661
      %v2663 = vpop.f32.mrb[0].mxu0
      %2664 = vmatprep.mubr.bf16.mxu0 0
      %2665 = vmatmul.mubr.bf16.gmra.mrb[0].mxu0 %v2507
      %v2666 = vpop.f32.mrb[0].mxu0
      %v2667 = vadd.f32 0.0, %v2666
      %v2668 = vpop.f32.mrb[0].mxu0
      %v2669 = vpop.f32.mrb[0].mxu0
      %v2670 = vadd.f32 0.0, %v2669
      %v2671 = vpop.f32.mrb[0].mxu0
      %2672 = vmatprep.mubr.bf16.mxu0 0
      %2673 = vmatmul.mubr.bf16.gmra.mrb[0].mxu0 %v2509
      %v2674 = vpop.f32.mrb[0].mxu0
      %v2675 = vadd.f32 0.0, %v2674
      %v2676 = vpop.f32.mrb[0].mxu0
      %v2677 = vpop.f32.mrb[0].mxu0
      %v2678 = vadd.f32 0.0, %v2677
      %v2679 = vpop.f32.mrb[0].mxu0
      %2680 = vmatprep.mubr.bf16.mxu0 0
      %2681 = vmatmul.mubr.bf16.gmra.mrb[0].mxu0 %v2511
      %v2682 = vpop.f32.mrb[0].mxu0
      %v2683 = vadd.f32 0.0, %v2682
      %v2684 = vpop.f32.mrb[0].mxu0
      %v2685 = vpop.f32.mrb[0].mxu0
      %v2686 = vadd.f32 0.0, %v2685
      %v2687 = vpop.f32.mrb[0].mxu0
      %2688 = vmatprep.mubr.bf16.mxu0 0
      %2689 = vmatmul.mubr.bf16.gmra.mrb[0].mxu0 %v2513
      %v2690 = vpop.f32.mrb[0].mxu0
      %v2691 = vadd.f32 0.0, %v2690
      %v2692 = vpop.f32.mrb[0].mxu0
      %v2693 = vpop.f32.mrb[0].mxu0
      %v2694 = vadd.f32 0.0, %v2693
      %v2695 = vpop.f32.mrb[0].mxu0
      %2696 = vmatprep.mubr.bf16.mxu0 0
      %2697 = vmatmul.mubr.bf16.gmra.mrb[0].mxu0 %v2515
      %v2698 = vpop.f32.mrb[0].mxu0
      %v2699 = vadd.f32 0.0, %v2698
      %v2700 = vpop.f32.mrb[0].mxu0
      %v2701 = vpop.f32.mrb[0].mxu0
      %v2702 = vadd.f32 0.0, %v2701
      %v2703 = vpop.f32.mrb[0].mxu0
      %2704 = vmatprep.mubr.bf16.mxu0 0
      %2705 = vmatmul.mubr.bf16.gmra.mrb[0].mxu0 %v2517
      %v2706 = vpop.f32.mrb[0].mxu0
      %v2707 = vadd.f32 0.0, %v2706
      %v2708 = vpop.f32.mrb[0].mxu0
      %v2709 = vpop.f32.mrb[0].mxu0
      %v2710 = vadd.f32 0.0, %v2709
      %v2711 = vpop.f32.mrb[0].mxu0
      %2712 = vmatprep.mubr.bf16.mxu0 0
      %2713 = vmatmul.mubr.bf16.gmra.mrb[0].mxu0 %v2519
      %v2714 = vpop.f32.mrb[0].mxu0
      %v2715 = vadd.f32 0.0, %v2714
      %v2716 = vpop.f32.mrb[0].mxu0
      %v2717 = vpop.f32.mrb[0].mxu0
      %v2718 = vadd.f32 0.0, %v2717
      %v2719 = vpop.f32.mrb[0].mxu0
      %2720 = vmatprep.mubr.bf16.mxu0 0
      %2721 = vmatmul.mubr.bf16.gmra.mrb[0].mxu0 %v2521
      %v2722 = vpop.f32.mrb[0].mxu0
      %v2723 = vadd.f32 0.0, %v2722
      %v2724 = vpop.f32.mrb[0].mxu0
      %v2725 = vpop.f32.mrb[0].mxu0
      %v2726 = vadd.f32 0.0, %v2725
      %v2727 = vpop.f32.mrb[0].mxu0
      %2728 = vmatprep.mubr.bf16.mxu0 0
      %2729 = vmatmul.mubr.bf16.gmra.mrb[0].mxu0 %v2523
      %v2730 = vpop.f32.mrb[0].mxu0
      %v2731 = vadd.f32 0.0, %v2730
      %v2732 = vpop.f32.mrb[0].mxu0
      %v2733 = vpop.f32.mrb[0].mxu0
      %v2734 = vadd.f32 0.0, %v2733
      %v2735 = vpop.f32.mrb[0].mxu0
      %2736 = vmatprep.mubr.bf16.mxu0 0
      %2737 = vmatmul.mubr.bf16.gmra.mrb[0].mxu0 %v2525
      %v2738 = vpop.f32.mrb[0].mxu0
      %v2739 = vadd.f32 0.0, %v2738
      %v2740 = vpop.f32.mrb[0].mxu0
      %v2741 = vpop.f32.mrb[0].mxu0
      %v2742 = vadd.f32 0.0, %v2741
      %v2743 = vpop.f32.mrb[0].mxu0
      %2744 = vmatprep.mubr.bf16.mxu0 0
      %2745 = vmatmul.mubr.bf16.gmra.mrb[0].mxu0 %v2527
      %v2746 = vpop.f32.mrb[0].mxu0
      %v2747 = vadd.f32 0.0, %v2746
      %v2748 = vpop.f32.mrb[0].mxu0
      %v2749 = vpop.f32.mrb[0].mxu0
      %v2750 = vadd.f32 0.0, %v2749
      %v2751 = vpop.f32.mrb[0].mxu0
      %2752 = vmatprep.mubr.bf16.mxu0 0
      %2753 = vmatmul.mubr.bf16.gmra.mrb[0].mxu0 %v2529
      %v2754 = vpop.f32.mrb[0].mxu0
      %v2755 = vadd.f32 0.0, %v2754
      %v2756 = vpop.f32.mrb[0].mxu0
      %v2757 = vpop.f32.mrb[0].mxu0
      %v2758 = vadd.f32 0.0, %v2757
      %v2759 = vpop.f32.mrb[0].mxu0
      %2760 = vmatprep.mubr.bf16.mxu0 0
      %2761 = vmatmul.mubr.bf16.gmra.mrb[0].mxu0 %v2531
      %v2762 = vpop.f32.mrb[0].mxu0
      %v2763 = vadd.f32 0.0, %v2762
      %v2764 = vpop.f32.mrb[0].mxu0
      %v2765 = vpop.f32.mrb[0].mxu0
      %v2766 = vadd.f32 0.0, %v2765
      %v2767 = vpop.f32.mrb[0].mxu0
      %2768 = vmatprep.mubr.bf16.mxu0 0
      %2769 = vmatmul.mubr.bf16.gmra.mrb[0].mxu0 %v2533
      %v2770 = vpop.f32.mrb[0].mxu0
      %v2771 = vadd.f32 0.0, %v2770
      %v2772 = vpop.f32.mrb[0].mxu0
      %v2773 = vpop.f32.mrb[0].mxu0
      %v2774 = vadd.f32 0.0, %v2773
      %v2775 = vpop.f32.mrb[0].mxu0
      %2776 = vdwg.mxu0
      %v2777 = vadd.f32 %v2314, %v2635
      %v2778 = vadd.f32 %v2315, %v2638
      %v2779 = vadd.f32 %v2316, %v2643
      %v2780 = vadd.f32 %v2317, %v2646
      %v2781 = vadd.f32 %v2318, %v2651
      %v2782 = vadd.f32 %v2319, %v2654
      %v2783 = vadd.f32 %v2320, %v2659
      %v2784 = vadd.f32 %v2321, %v2662
      %v2785 = vadd.f32 %v2322, %v2667
      %v2786 = vadd.f32 %v2323, %v2670
      %v2787 = vadd.f32 %v2324, %v2675
      %v2788 = vadd.f32 %v2325, %v2678
      %v2789 = vadd.f32 %v2326, %v2683
      %v2790 = vadd.f32 %v2327, %v2686
      %v2791 = vadd.f32 %v2328, %v2691
      %v2792 = vadd.f32 %v2329, %v2694
      %v2793 = vadd.f32 %v2330, %v2699
      %v2794 = vadd.f32 %v2331, %v2702
      %v2795 = vadd.f32 %v2332, %v2707
      %v2796 = vadd.f32 %v2333, %v2710
      %v2797 = vadd.f32 %v2334, %v2715
      %v2798 = vadd.f32 %v2335, %v2718
      %v2799 = vadd.f32 %v2336, %v2723
      %v2800 = vadd.f32 %v2337, %v2726
      %v2801 = vadd.f32 %v2338, %v2731
      %v2802 = vadd.f32 %v2339, %v2734
      %v2803 = vadd.f32 %v2340, %v2739
      %v2804 = vadd.f32 %v2341, %v2742
      %v2805 = vadd.f32 %v2342, %v2747
      %v2806 = vadd.f32 %v2343, %v2750
      %v2807 = vadd.f32 %v2344, %v2755
      %v2808 = vadd.f32 %v2345, %v2758
      %v2809 = vadd.f32 %v2346, %v2763
      %v2810 = vadd.f32 %v2347, %v2766
      %v2811 = vadd.f32 %v2348, %v2771
      %v2812 = vadd.f32 %v2349, %v2774
      %v2813 = vld [vmem:[#allocation2 + $0x98] sm:$0x3]
      %s2814 = scalar_lea.vmem %s4, 256
      %v2815 = vld [vmem:[%s2814] sm:$0xf]
      %v2816 = vld [vmem:[%s2814 + $0x4] sm:$0xf]
      %v2817 = vld [vmem:[%s2814 + $0x8] sm:$0xf]
      %v2818 = vld [vmem:[%s2814 + $0xc] sm:$0xf]
      %v2819 = vld [vmem:[%s2814 + $0x10] sm:$0xf]
      %v2820 = vld [vmem:[%s2814 + $0x14] sm:$0xf]
      %v2821 = vld [vmem:[%s2814 + $0x18] sm:$0xf]
      %v2822 = vld [vmem:[%s2814 + $0x1c] sm:$0xf]
      %v2823 = vld [vmem:[%s2814 + $0x20] sm:$0xf]
      %v2824 = vld [vmem:[%s2814 + $0x24] sm:$0xf]
      %v2825 = vld [vmem:[%s2814 + $0x28] sm:$0xf]
      %v2826 = vld [vmem:[%s2814 + $0x2c] sm:$0xf]
      %v2827 = vld [vmem:[%s2814 + $0x30] sm:$0xf]
      %v2828 = vld [vmem:[%s2814 + $0x34] sm:$0xf]
      %v2829 = vld [vmem:[%s2814 + $0x38] sm:$0xf]
      %v2830 = vld [vmem:[%s2814 + $0x3c] sm:$0xf]
      %v2832 = vunpack.c.l.b16 %v2813
      %v2833 = vpack.c.b16 %v2832, %v2832
      %vm2834 = vsmask.f32 6400
      %v2836 = vshrl.u32 %v2478, 16
      %v2838 = vrot.slane %v2836, 1
      %v2839 = vshll.u32 %v2478, 16
      %v2841 = vrot.slane %v2839, 2
      %v2842 = vor.u32 %v2838, %v2841
      %v2844 = vshrl.u32 %v2479, 16
      %v2846 = vrot.slane %v2844, 1
      %v2847 = vshll.u32 %v2479, 16
      %v2849 = vrot.slane %v2847, 2
      %v2850 = vor.u32 %v2846, %v2849
      %v2851 = vsel %vm2834, %v2842, %v2850
      %v2853 = vshrl.u32 %v2480, 16
      %v2855 = vrot.slane %v2853, 1
      %v2856 = vshll.u32 %v2480, 16
      %v2858 = vrot.slane %v2856, 2
      %v2859 = vor.u32 %v2855, %v2858
      %v2860 = vsel %vm2834, %v2850, %v2859
      %v2862 = vshrl.u32 %v2481, 16
      %v2864 = vrot.slane %v2862, 1
      %v2865 = vshll.u32 %v2481, 16
      %v2867 = vrot.slane %v2865, 2
      %v2868 = vor.u32 %v2864, %v2867
      %v2869 = vsel %vm2834, %v2859, %v2868
      %v2871 = vshrl.u32 %v2482, 16
      %v2873 = vrot.slane %v2871, 1
      %v2874 = vshll.u32 %v2482, 16
      %v2876 = vrot.slane %v2874, 2
      %v2877 = vor.u32 %v2873, %v2876
      %v2878 = vsel %vm2834, %v2868, %v2877
      %v2880 = vshrl.u32 %v2483, 16
      %v2882 = vrot.slane %v2880, 1
      %v2883 = vshll.u32 %v2483, 16
      %v2885 = vrot.slane %v2883, 2
      %v2886 = vor.u32 %v2882, %v2885
      %v2887 = vsel %vm2834, %v2877, %v2886
      %v2889 = vshrl.u32 %v2484, 16
      %v2891 = vrot.slane %v2889, 1
      %v2892 = vshll.u32 %v2484, 16
      %v2894 = vrot.slane %v2892, 2
      %v2895 = vor.u32 %v2891, %v2894
      %v2896 = vsel %vm2834, %v2886, %v2895
      %v2898 = vshrl.u32 %v2485, 16
      %v2900 = vrot.slane %v2898, 1
      %v2901 = vshll.u32 %v2485, 16
      %v2903 = vrot.slane %v2901, 2
      %v2904 = vor.u32 %v2900, %v2903
      %v2905 = vsel %vm2834, %v2895, %v2904
      %v2907 = vshrl.u32 %v2486, 16
      %v2909 = vrot.slane %v2907, 1
      %v2910 = vshll.u32 %v2486, 16
      %v2912 = vrot.slane %v2910, 2
      %v2913 = vor.u32 %v2909, %v2912
      %v2914 = vsel %vm2834, %v2904, %v2913
      %v2916 = vshrl.u32 %v2487, 16
      %v2918 = vrot.slane %v2916, 1
      %v2919 = vshll.u32 %v2487, 16
      %v2921 = vrot.slane %v2919, 2
      %v2922 = vor.u32 %v2918, %v2921
      %v2923 = vsel %vm2834, %v2913, %v2922
      %v2925 = vshrl.u32 %v2488, 16
      %v2927 = vrot.slane %v2925, 1
      %v2928 = vshll.u32 %v2488, 16
      %v2930 = vrot.slane %v2928, 2
      %v2931 = vor.u32 %v2927, %v2930
      %v2932 = vsel %vm2834, %v2922, %v2931
      %v2934 = vshrl.u32 %v2489, 16
      %v2936 = vrot.slane %v2934, 1
      %v2937 = vshll.u32 %v2489, 16
      %v2939 = vrot.slane %v2937, 2
      %v2940 = vor.u32 %v2936, %v2939
      %v2941 = vsel %vm2834, %v2931, %v2940
      %v2943 = vshrl.u32 %v2490, 16
      %v2945 = vrot.slane %v2943, 1
      %v2946 = vshll.u32 %v2490, 16
      %v2948 = vrot.slane %v2946, 2
      %v2949 = vor.u32 %v2945, %v2948
      %v2950 = vsel %vm2834, %v2940, %v2949
      %v2952 = vshrl.u32 %v2491, 16
      %v2954 = vrot.slane %v2952, 1
      %v2955 = vshll.u32 %v2491, 16
      %v2957 = vrot.slane %v2955, 2
      %v2958 = vor.u32 %v2954, %v2957
      %v2959 = vsel %vm2834, %v2949, %v2958
      %v2961 = vshrl.u32 %v2492, 16
      %v2963 = vrot.slane %v2961, 1
      %v2964 = vshll.u32 %v2492, 16
      %v2966 = vrot.slane %v2964, 2
      %v2967 = vor.u32 %v2963, %v2966
      %v2968 = vsel %vm2834, %v2958, %v2967
      %v2970 = vshrl.u32 %v2493, 16
      %v2972 = vrot.slane %v2970, 1
      %v2973 = vshll.u32 %v2493, 16
      %v2975 = vrot.slane %v2973, 2
      %v2976 = vor.u32 %v2972, %v2975
      %v2977 = vsel %vm2834, %v2967, %v2976
      %v2979 = vshrl.u32 %v2494, 16
      %v2981 = vrot.slane %v2979, 1
      %v2982 = vshll.u32 %v2494, 16
      %v2984 = vrot.slane %v2982, 2
      %v2985 = vor.u32 %v2981, %v2984
      %v2986 = vsel %vm2834, %v2976, %v2985
      %v2988 = vshrl.u32 %v2495, 16
      %v2990 = vrot.slane %v2988, 1
      %v2991 = vshll.u32 %v2495, 16
      %v2993 = vrot.slane %v2991, 2
      %v2994 = vor.u32 %v2990, %v2993
      %v2995 = vsel %vm2834, %v2985, %v2994
      %v2997 = vshrl.u32 %v2833, 16
      %v2999 = vrot.slane %v2997, 1
      %v3000 = vshll.u32 %v2833, 16
      %v3002 = vrot.slane %v3000, 2
      %v3003 = vor.u32 %v2999, %v3002
      %v3004 = vsel %vm2834, %v2994, %v3003
      %v3039 = vunpack.c.l.b16 %v2815
      %v3040 = vunpack.c.l.b16 %v2816
      %v3041 = vunpack.c.l.b16 %v2817
      %v3042 = vunpack.c.l.b16 %v2818
      %v3043 = vunpack.c.l.b16 %v2819
      %v3044 = vunpack.c.l.b16 %v2820
      %v3045 = vunpack.c.l.b16 %v2821
      %v3046 = vunpack.c.l.b16 %v2822
      %v3047 = vunpack.c.l.b16 %v2823
      %v3048 = vunpack.c.l.b16 %v2824
      %v3049 = vunpack.c.l.b16 %v2825
      %v3050 = vunpack.c.l.b16 %v2826
      %v3051 = vunpack.c.l.b16 %v2827
      %v3052 = vunpack.c.l.b16 %v2828
      %v3053 = vunpack.c.l.b16 %v2829
      %v3054 = vunpack.c.l.b16 %v2830
      %v3055 = vpack.c.b16 %v3040, %v3039
      %v3056 = vpack.c.b16 %v3042, %v3041
      %v3057 = vpack.c.b16 %v3044, %v3043
      %v3058 = vpack.c.b16 %v3046, %v3045
      %v3059 = vpack.c.b16 %v3048, %v3047
      %v3060 = vpack.c.b16 %v3050, %v3049
      %v3061 = vpack.c.b16 %v3052, %v3051
      %v3062 = vpack.c.b16 %v3054, %v3053
      %3071 = vmatprep.subr.bf16.mxu0 0
      %3072 = vmatpush1.bf16.msra.mxu0 %v3055
      %3073 = vmatprep.subr.bf16.mxu0 0
      %3074 = vmatpush1.bf16.msra.mxu0 %v3056
      %3075 = vmatprep.subr.bf16.mxu0 0
      %3076 = vmatpush1.bf16.msra.mxu0 %v3057
      %3077 = vmatprep.subr.bf16.mxu0 0
      %3078 = vmatpush1.bf16.msra.mxu0 %v3058
      %3079 = vmatprep.subr.bf16.mxu0 0
      %3080 = vmatpush1.bf16.msra.mxu0 %v3059
      %3081 = vmatprep.subr.bf16.mxu0 0
      %3082 = vmatpush1.bf16.msra.mxu0 %v3060
      %3083 = vmatprep.subr.bf16.mxu0 0
      %3084 = vmatpush1.bf16.msra.mxu0 %v3061
      %3085 = vmatprep.subr.bf16.mxu0 0
      %3086 = vmatpush1.bf16.msra.mxu0 %v3062
      %3087 = vmatprep.subr.bf16.mxu0 0
      %3088 = vmatpush1.bf16.msra.mxu0 0
      %3089 = vmatprep.subr.bf16.mxu0 0
      %3090 = vmatpush1.bf16.msra.mxu0 0
      %3091 = vmatprep.subr.bf16.mxu0 0
      %3092 = vmatpush1.bf16.msra.mxu0 0
      %3093 = vmatprep.subr.bf16.mxu0 0
      %3094 = vmatpush1.bf16.msra.mxu0 0
      %3095 = vmatprep.subr.bf16.mxu0 0
      %3096 = vmatpush1.bf16.msra.mxu0 0
      %3097 = vmatprep.subr.bf16.mxu0 0
      %3098 = vmatpush1.bf16.msra.mxu0 0
      %3099 = vmatprep.subr.bf16.mxu0 0
      %3100 = vmatpush1.bf16.msra.mxu0 0
      %3101 = vmatprep.subr.bf16.mxu0 0
      %3102 = vmatpush1.bf16.msra.mxu0 0
      %3103 = vmatprep.mubr.bf16.mxu0 0
      %3104 = vmatmul.mubr.bf16.gmra.mrb[0].mxu0 %v2851
      %v3105 = vpop.f32.mrb[0].mxu0
      %v3106 = vadd.f32 0.0, %v3105
      %v3107 = vpop.f32.mrb[0].mxu0
      %v3108 = vpop.f32.mrb[0].mxu0
      %v3109 = vadd.f32 0.0, %v3108
      %v3110 = vpop.f32.mrb[0].mxu0
      %3111 = vmatprep.mubr.bf16.mxu0 0
      %3112 = vmatmul.mubr.bf16.gmra.mrb[0].mxu0 %v2860
      %v3113 = vpop.f32.mrb[0].mxu0
      %v3114 = vadd.f32 0.0, %v3113
      %v3115 = vpop.f32.mrb[0].mxu0
      %v3116 = vpop.f32.mrb[0].mxu0
      %v3117 = vadd.f32 0.0, %v3116
      %v3118 = vpop.f32.mrb[0].mxu0
      %3119 = vmatprep.mubr.bf16.mxu0 0
      %3120 = vmatmul.mubr.bf16.gmra.mrb[0].mxu0 %v2869
      %v3121 = vpop.f32.mrb[0].mxu0
      %v3122 = vadd.f32 0.0, %v3121
      %v3123 = vpop.f32.mrb[0].mxu0
      %v3124 = vpop.f32.mrb[0].mxu0
      %v3125 = vadd.f32 0.0, %v3124
      %v3126 = vpop.f32.mrb[0].mxu0
      %3127 = vmatprep.mubr.bf16.mxu0 0
      %3128 = vmatmul.mubr.bf16.gmra.mrb[0].mxu0 %v2878
      %v3129 = vpop.f32.mrb[0].mxu0
      %v3130 = vadd.f32 0.0, %v3129
      %v3131 = vpop.f32.mrb[0].mxu0
      %v3132 = vpop.f32.mrb[0].mxu0
      %v3133 = vadd.f32 0.0, %v3132
      %v3134 = vpop.f32.mrb[0].mxu0
      %3135 = vmatprep.mubr.bf16.mxu0 0
      %3136 = vmatmul.mubr.bf16.gmra.mrb[0].mxu0 %v2887
      %v3137 = vpop.f32.mrb[0].mxu0
      %v3138 = vadd.f32 0.0, %v3137
      %v3139 = vpop.f32.mrb[0].mxu0
      %v3140 = vpop.f32.mrb[0].mxu0
      %v3141 = vadd.f32 0.0, %v3140
      %v3142 = vpop.f32.mrb[0].mxu0
      %3143 = vmatprep.mubr.bf16.mxu0 0
      %3144 = vmatmul.mubr.bf16.gmra.mrb[0].mxu0 %v2896
      %v3145 = vpop.f32.mrb[0].mxu0
      %v3146 = vadd.f32 0.0, %v3145
      %v3147 = vpop.f32.mrb[0].mxu0
      %v3148 = vpop.f32.mrb[0].mxu0
      %v3149 = vadd.f32 0.0, %v3148
      %v3150 = vpop.f32.mrb[0].mxu0
      %3151 = vmatprep.mubr.bf16.mxu0 0
      %3152 = vmatmul.mubr.bf16.gmra.mrb[0].mxu0 %v2905
      %v3153 = vpop.f32.mrb[0].mxu0
      %v3154 = vadd.f32 0.0, %v3153
      %v3155 = vpop.f32.mrb[0].mxu0
      %v3156 = vpop.f32.mrb[0].mxu0
      %v3157 = vadd.f32 0.0, %v3156
      %v3158 = vpop.f32.mrb[0].mxu0
      %3159 = vmatprep.mubr.bf16.mxu0 0
      %3160 = vmatmul.mubr.bf16.gmra.mrb[0].mxu0 %v2914
      %v3161 = vpop.f32.mrb[0].mxu0
      %v3162 = vadd.f32 0.0, %v3161
      %v3163 = vpop.f32.mrb[0].mxu0
      %v3164 = vpop.f32.mrb[0].mxu0
      %v3165 = vadd.f32 0.0, %v3164
      %v3166 = vpop.f32.mrb[0].mxu0
      %3167 = vmatprep.mubr.bf16.mxu0 0
      %3168 = vmatmul.mubr.bf16.gmra.mrb[0].mxu0 %v2923
      %v3169 = vpop.f32.mrb[0].mxu0
      %v3170 = vadd.f32 0.0, %v3169
      %v3171 = vpop.f32.mrb[0].mxu0
      %v3172 = vpop.f32.mrb[0].mxu0
      %v3173 = vadd.f32 0.0, %v3172
      %v3174 = vpop.f32.mrb[0].mxu0
      %3175 = vmatprep.mubr.bf16.mxu0 0
      %3176 = vmatmul.mubr.bf16.gmra.mrb[0].mxu0 %v2932
      %v3177 = vpop.f32.mrb[0].mxu0
      %v3178 = vadd.f32 0.0, %v3177
      %v3179 = vpop.f32.mrb[0].mxu0
      %v3180 = vpop.f32.mrb[0].mxu0
      %v3181 = vadd.f32 0.0, %v3180
      %v3182 = vpop.f32.mrb[0].mxu0
      %3183 = vmatprep.mubr.bf16.mxu0 0
      %3184 = vmatmul.mubr.bf16.gmra.mrb[0].mxu0 %v2941
      %v3185 = vpop.f32.mrb[0].mxu0
      %v3186 = vadd.f32 0.0, %v3185
      %v3187 = vpop.f32.mrb[0].mxu0
      %v3188 = vpop.f32.mrb[0].mxu0
      %v3189 = vadd.f32 0.0, %v3188
      %v3190 = vpop.f32.mrb[0].mxu0
      %3191 = vmatprep.mubr.bf16.mxu0 0
      %3192 = vmatmul.mubr.bf16.gmra.mrb[0].mxu0 %v2950
      %v3193 = vpop.f32.mrb[0].mxu0
      %v3194 = vadd.f32 0.0, %v3193
      %v3195 = vpop.f32.mrb[0].mxu0
      %v3196 = vpop.f32.mrb[0].mxu0
      %v3197 = vadd.f32 0.0, %v3196
      %v3198 = vpop.f32.mrb[0].mxu0
      %3199 = vmatprep.mubr.bf16.mxu0 0
      %3200 = vmatmul.mubr.bf16.gmra.mrb[0].mxu0 %v2959
      %v3201 = vpop.f32.mrb[0].mxu0
      %v3202 = vadd.f32 0.0, %v3201
      %v3203 = vpop.f32.mrb[0].mxu0
      %v3204 = vpop.f32.mrb[0].mxu0
      %v3205 = vadd.f32 0.0, %v3204
      %v3206 = vpop.f32.mrb[0].mxu0
      %3207 = vmatprep.mubr.bf16.mxu0 0
      %3208 = vmatmul.mubr.bf16.gmra.mrb[0].mxu0 %v2968
      %v3209 = vpop.f32.mrb[0].mxu0
      %v3210 = vadd.f32 0.0, %v3209
      %v3211 = vpop.f32.mrb[0].mxu0
      %v3212 = vpop.f32.mrb[0].mxu0
      %v3213 = vadd.f32 0.0, %v3212
      %v3214 = vpop.f32.mrb[0].mxu0
      %3215 = vmatprep.mubr.bf16.mxu0 0
      %3216 = vmatmul.mubr.bf16.gmra.mrb[0].mxu0 %v2977
      %v3217 = vpop.f32.mrb[0].mxu0
      %v3218 = vadd.f32 0.0, %v3217
      %v3219 = vpop.f32.mrb[0].mxu0
      %v3220 = vpop.f32.mrb[0].mxu0
      %v3221 = vadd.f32 0.0, %v3220
      %v3222 = vpop.f32.mrb[0].mxu0
      %3223 = vmatprep.mubr.bf16.mxu0 0
      %3224 = vmatmul.mubr.bf16.gmra.mrb[0].mxu0 %v2986
      %v3225 = vpop.f32.mrb[0].mxu0
      %v3226 = vadd.f32 0.0, %v3225
      %v3227 = vpop.f32.mrb[0].mxu0
      %v3228 = vpop.f32.mrb[0].mxu0
      %v3229 = vadd.f32 0.0, %v3228
      %v3230 = vpop.f32.mrb[0].mxu0
      %3231 = vmatprep.mubr.bf16.mxu0 0
      %3232 = vmatmul.mubr.bf16.gmra.mrb[0].mxu0 %v2995
      %v3233 = vpop.f32.mrb[0].mxu0
      %v3234 = vadd.f32 0.0, %v3233
      %v3235 = vpop.f32.mrb[0].mxu0
      %v3236 = vpop.f32.mrb[0].mxu0
      %v3237 = vadd.f32 0.0, %v3236
      %v3238 = vpop.f32.mrb[0].mxu0
      %3239 = vmatprep.mubr.bf16.mxu0 0
      %3240 = vmatmul.mubr.bf16.gmra.mrb[0].mxu0 %v3004
      %v3241 = vpop.f32.mrb[0].mxu0
      %v3242 = vadd.f32 0.0, %v3241
      %v3243 = vpop.f32.mrb[0].mxu0
      %v3244 = vpop.f32.mrb[0].mxu0
      %v3245 = vadd.f32 0.0, %v3244
      %v3246 = vpop.f32.mrb[0].mxu0
      %3247 = vdwg.mxu0
      %v3248 = vadd.f32 %v2777, %v3106
      %v3249 = vadd.f32 %v2778, %v3109
      %v3250 = vadd.f32 %v2779, %v3114
      %v3251 = vadd.f32 %v2780, %v3117
      %v3252 = vadd.f32 %v2781, %v3122
      %v3253 = vadd.f32 %v2782, %v3125
      %v3254 = vadd.f32 %v2783, %v3130
      %v3255 = vadd.f32 %v2784, %v3133
      %v3256 = vadd.f32 %v2785, %v3138
      %v3257 = vadd.f32 %v2786, %v3141
      %v3258 = vadd.f32 %v2787, %v3146
      %v3259 = vadd.f32 %v2788, %v3149
      %v3260 = vadd.f32 %v2789, %v3154
      %v3261 = vadd.f32 %v2790, %v3157
      %v3262 = vadd.f32 %v2791, %v3162
      %v3263 = vadd.f32 %v2792, %v3165
      %v3264 = vadd.f32 %v2793, %v3170
      %v3265 = vadd.f32 %v2794, %v3173
      %v3266 = vadd.f32 %v2795, %v3178
      %v3267 = vadd.f32 %v2796, %v3181
      %v3268 = vadd.f32 %v2797, %v3186
      %v3269 = vadd.f32 %v2798, %v3189
      %v3270 = vadd.f32 %v2799, %v3194
      %v3271 = vadd.f32 %v2800, %v3197
      %v3272 = vadd.f32 %v2801, %v3202
      %v3273 = vadd.f32 %v2802, %v3205
      %v3274 = vadd.f32 %v2803, %v3210
      %v3275 = vadd.f32 %v2804, %v3213
      %v3276 = vadd.f32 %v2805, %v3218
      %v3277 = vadd.f32 %v2806, %v3221
      %v3278 = vadd.f32 %v2807, %v3226
      %v3279 = vadd.f32 %v2808, %v3229
      %v3280 = vadd.f32 %v2809, %v3234
      %v3281 = vadd.f32 %v2810, %v3237
      %v3282 = vadd.f32 %v2811, %v3242
      %v3283 = vadd.f32 %v2812, %v3245
      %v3284 = vld [vmem:[#allocation2 + $0x8] sm:$0xc]
      %s3285 = scalar_lea.vmem %s4, 320
      %v3286 = vld [vmem:[%s3285] sm:$0xf]
      %v3287 = vld [vmem:[%s3285 + $0x4] sm:$0xf]
      %v3288 = vld [vmem:[%s3285 + $0x8] sm:$0xf]
      %v3289 = vld [vmem:[%s3285 + $0xc] sm:$0xf]
      %v3290 = vld [vmem:[%s3285 + $0x10] sm:$0xf]
      %v3291 = vld [vmem:[%s3285 + $0x14] sm:$0xf]
      %v3292 = vld [vmem:[%s3285 + $0x18] sm:$0xf]
      %v3293 = vld [vmem:[%s3285 + $0x1c] sm:$0xf]
      %v3294 = vld [vmem:[%s3285 + $0x20] sm:$0xf]
      %v3295 = vld [vmem:[%s3285 + $0x24] sm:$0xf]
      %v3296 = vld [vmem:[%s3285 + $0x28] sm:$0xf]
      %v3297 = vld [vmem:[%s3285 + $0x2c] sm:$0xf]
      %v3298 = vld [vmem:[%s3285 + $0x30] sm:$0xf]
      %v3299 = vld [vmem:[%s3285 + $0x34] sm:$0xf]
      %v3300 = vld [vmem:[%s3285 + $0x38] sm:$0xf]
      %v3301 = vld [vmem:[%s3285 + $0x3c] sm:$0xf]
      %v3303 = vunpack.c.l.b16 %v3284
      %v3304 = vpack.c.b16 %v2442, %v3303
      %vm3305 = vcmask 1045504
      %v3306 = vrot.slane %v3304, 2
      %v3307 = vrot.slane %v2479, 2
      %v3308 = vsel %vm3305, %v3306, %v3307
      %v3309 = vrot.slane %v2480, 2
      %v3310 = vsel %vm3305, %v3307, %v3309
      %v3311 = vrot.slane %v2481, 2
      %v3312 = vsel %vm3305, %v3309, %v3311
      %v3313 = vrot.slane %v2482, 2
      %v3314 = vsel %vm3305, %v3311, %v3313
      %v3315 = vrot.slane %v2483, 2
      %v3316 = vsel %vm3305, %v3313, %v3315
      %v3317 = vrot.slane %v2484, 2
      %v3318 = vsel %vm3305, %v3315, %v3317
      %v3319 = vrot.slane %v2485, 2
      %v3320 = vsel %vm3305, %v3317, %v3319
      %v3321 = vrot.slane %v2486, 2
      %v3322 = vsel %vm3305, %v3319, %v3321
      %v3323 = vrot.slane %v2487, 2
      %v3324 = vsel %vm3305, %v3321, %v3323
      %v3325 = vrot.slane %v2488, 2
      %v3326 = vsel %vm3305, %v3323, %v3325
      %v3327 = vrot.slane %v2489, 2
      %v3328 = vsel %vm3305, %v3325, %v3327
      %v3329 = vrot.slane %v2490, 2
      %v3330 = vsel %vm3305, %v3327, %v3329
      %v3331 = vrot.slane %v2491, 2
      %v3332 = vsel %vm3305, %v3329, %v3331
      %v3333 = vrot.slane %v2492, 2
      %v3334 = vsel %vm3305, %v3331, %v3333
      %v3335 = vrot.slane %v2493, 2
      %v3336 = vsel %vm3305, %v3333, %v3335
      %v3337 = vrot.slane %v2494, 2
      %v3338 = vsel %vm3305, %v3335, %v3337
      %v3339 = vrot.slane %v2495, 2
      %v3340 = vsel %vm3305, %v3337, %v3339
      %v3341 = vrot.slane %v2833, 2
      %v3342 = vsel %vm3305, %v3339, %v3341
      %v3377 = vunpack.c.l.b16 %v3286
      %v3378 = vunpack.c.l.b16 %v3287
      %v3379 = vunpack.c.l.b16 %v3288
      %v3380 = vunpack.c.l.b16 %v3289
      %v3381 = vunpack.c.l.b16 %v3290
      %v3382 = vunpack.c.l.b16 %v3291
      %v3383 = vunpack.c.l.b16 %v3292
      %v3384 = vunpack.c.l.b16 %v3293
      %v3385 = vunpack.c.l.b16 %v3294
      %v3386 = vunpack.c.l.b16 %v3295
      %v3387 = vunpack.c.l.b16 %v3296
      %v3388 = vunpack.c.l.b16 %v3297
      %v3389 = vunpack.c.l.b16 %v3298
      %v3390 = vunpack.c.l.b16 %v3299
      %v3391 = vunpack.c.l.b16 %v3300
      %v3392 = vunpack.c.l.b16 %v3301
      %v3393 = vpack.c.b16 %v3378, %v3377
      %v3394 = vpack.c.b16 %v3380, %v3379
      %v3395 = vpack.c.b16 %v3382, %v3381
      %v3396 = vpack.c.b16 %v3384, %v3383
      %v3397 = vpack.c.b16 %v3386, %v3385
      %v3398 = vpack.c.b16 %v3388, %v3387
      %v3399 = vpack.c.b16 %v3390, %v3389
      %v3400 = vpack.c.b16 %v3392, %v3391
      %3409 = vmatprep.subr.bf16.mxu0 0
      %3410 = vmatpush1.bf16.msra.mxu0 %v3393
      %3411 = vmatprep.subr.bf16.mxu0 0
      %3412 = vmatpush1.bf16.msra.mxu0 %v3394
      %3413 = vmatprep.subr.bf16.mxu0 0
      %3414 = vmatpush1.bf16.msra.mxu0 %v3395
      %3415 = vmatprep.subr.bf16.mxu0 0
      %3416 = vmatpush1.bf16.msra.mxu0 %v3396
      %3417 = vmatprep.subr.bf16.mxu0 0
      %3418 = vmatpush1.bf16.msra.mxu0 %v3397
      %3419 = vmatprep.subr.bf16.mxu0 0
      %3420 = vmatpush1.bf16.msra.mxu0 %v3398
      %3421 = vmatprep.subr.bf16.mxu0 0
      %3422 = vmatpush1.bf16.msra.mxu0 %v3399
      %3423 = vmatprep.subr.bf16.mxu0 0
      %3424 = vmatpush1.bf16.msra.mxu0 %v3400
      %3425 = vmatprep.subr.bf16.mxu0 0
      %3426 = vmatpush1.bf16.msra.mxu0 0
      %3427 = vmatprep.subr.bf16.mxu0 0
      %3428 = vmatpush1.bf16.msra.mxu0 0
      %3429 = vmatprep.subr.bf16.mxu0 0
      %3430 = vmatpush1.bf16.msra.mxu0 0
      %3431 = vmatprep.subr.bf16.mxu0 0
      %3432 = vmatpush1.bf16.msra.mxu0 0
      %3433 = vmatprep.subr.bf16.mxu0 0
      %3434 = vmatpush1.bf16.msra.mxu0 0
      %3435 = vmatprep.subr.bf16.mxu0 0
      %3436 = vmatpush1.bf16.msra.mxu0 0
      %3437 = vmatprep.subr.bf16.mxu0 0
      %3438 = vmatpush1.bf16.msra.mxu0 0
      %3439 = vmatprep.subr.bf16.mxu0 0
      %3440 = vmatpush1.bf16.msra.mxu0 0
      %3441 = vmatprep.mubr.bf16.mxu0 0
      %3442 = vmatmul.mubr.bf16.gmra.mrb[0].mxu0 %v3308
      %v3443 = vpop.f32.mrb[0].mxu0
      %v3444 = vadd.f32 0.0, %v3443
      %v3445 = vpop.f32.mrb[0].mxu0
      %v3446 = vpop.f32.mrb[0].mxu0
      %v3447 = vadd.f32 0.0, %v3446
      %v3448 = vpop.f32.mrb[0].mxu0
      %3449 = vmatprep.mubr.bf16.mxu0 0
      %3450 = vmatmul.mubr.bf16.gmra.mrb[0].mxu0 %v3310
      %v3451 = vpop.f32.mrb[0].mxu0
      %v3452 = vadd.f32 0.0, %v3451
      %v3453 = vpop.f32.mrb[0].mxu0
      %v3454 = vpop.f32.mrb[0].mxu0
      %v3455 = vadd.f32 0.0, %v3454
      %v3456 = vpop.f32.mrb[0].mxu0
      %3457 = vmatprep.mubr.bf16.mxu0 0
      %3458 = vmatmul.mubr.bf16.gmra.mrb[0].mxu0 %v3312
      %v3459 = vpop.f32.mrb[0].mxu0
      %v3460 = vadd.f32 0.0, %v3459
      %v3461 = vpop.f32.mrb[0].mxu0
      %v3462 = vpop.f32.mrb[0].mxu0
      %v3463 = vadd.f32 0.0, %v3462
      %v3464 = vpop.f32.mrb[0].mxu0
      %3465 = vmatprep.mubr.bf16.mxu0 0
      %3466 = vmatmul.mubr.bf16.gmra.mrb[0].mxu0 %v3314
      %v3467 = vpop.f32.mrb[0].mxu0
      %v3468 = vadd.f32 0.0, %v3467
      %v3469 = vpop.f32.mrb[0].mxu0
      %v3470 = vpop.f32.mrb[0].mxu0
      %v3471 = vadd.f32 0.0, %v3470
      %v3472 = vpop.f32.mrb[0].mxu0
      %3473 = vmatprep.mubr.bf16.mxu0 0
      %3474 = vmatmul.mubr.bf16.gmra.mrb[0].mxu0 %v3316
      %v3475 = vpop.f32.mrb[0].mxu0
      %v3476 = vadd.f32 0.0, %v3475
      %v3477 = vpop.f32.mrb[0].mxu0
      %v3478 = vpop.f32.mrb[0].mxu0
      %v3479 = vadd.f32 0.0, %v3478
      %v3480 = vpop.f32.mrb[0].mxu0
      %3481 = vmatprep.mubr.bf16.mxu0 0
      %3482 = vmatmul.mubr.bf16.gmra.mrb[0].mxu0 %v3318
      %v3483 = vpop.f32.mrb[0].mxu0
      %v3484 = vadd.f32 0.0, %v3483
      %v3485 = vpop.f32.mrb[0].mxu0
      %v3486 = vpop.f32.mrb[0].mxu0
      %v3487 = vadd.f32 0.0, %v3486
      %v3488 = vpop.f32.mrb[0].mxu0
      %3489 = vmatprep.mubr.bf16.mxu0 0
      %3490 = vmatmul.mubr.bf16.gmra.mrb[0].mxu0 %v3320
      %v3491 = vpop.f32.mrb[0].mxu0
      %v3492 = vadd.f32 0.0, %v3491
      %v3493 = vpop.f32.mrb[0].mxu0
      %v3494 = vpop.f32.mrb[0].mxu0
      %v3495 = vadd.f32 0.0, %v3494
      %v3496 = vpop.f32.mrb[0].mxu0
      %3497 = vmatprep.mubr.bf16.mxu0 0
      %3498 = vmatmul.mubr.bf16.gmra.mrb[0].mxu0 %v3322
      %v3499 = vpop.f32.mrb[0].mxu0
      %v3500 = vadd.f32 0.0, %v3499
      %v3501 = vpop.f32.mrb[0].mxu0
      %v3502 = vpop.f32.mrb[0].mxu0
      %v3503 = vadd.f32 0.0, %v3502
      %v3504 = vpop.f32.mrb[0].mxu0
      %3505 = vmatprep.mubr.bf16.mxu0 0
      %3506 = vmatmul.mubr.bf16.gmra.mrb[0].mxu0 %v3324
      %v3507 = vpop.f32.mrb[0].mxu0
      %v3508 = vadd.f32 0.0, %v3507
      %v3509 = vpop.f32.mrb[0].mxu0
      %v3510 = vpop.f32.mrb[0].mxu0
      %v3511 = vadd.f32 0.0, %v3510
      %v3512 = vpop.f32.mrb[0].mxu0
      %3513 = vmatprep.mubr.bf16.mxu0 0
      %3514 = vmatmul.mubr.bf16.gmra.mrb[0].mxu0 %v3326
      %v3515 = vpop.f32.mrb[0].mxu0
      %v3516 = vadd.f32 0.0, %v3515
      %v3517 = vpop.f32.mrb[0].mxu0
      %v3518 = vpop.f32.mrb[0].mxu0
      %v3519 = vadd.f32 0.0, %v3518
      %v3520 = vpop.f32.mrb[0].mxu0
      %3521 = vmatprep.mubr.bf16.mxu0 0
      %3522 = vmatmul.mubr.bf16.gmra.mrb[0].mxu0 %v3328
      %v3523 = vpop.f32.mrb[0].mxu0
      %v3524 = vadd.f32 0.0, %v3523
      %v3525 = vpop.f32.mrb[0].mxu0
      %v3526 = vpop.f32.mrb[0].mxu0
      %v3527 = vadd.f32 0.0, %v3526
      %v3528 = vpop.f32.mrb[0].mxu0
      %3529 = vmatprep.mubr.bf16.mxu0 0
      %3530 = vmatmul.mubr.bf16.gmra.mrb[0].mxu0 %v3330
      %v3531 = vpop.f32.mrb[0].mxu0
      %v3532 = vadd.f32 0.0, %v3531
      %v3533 = vpop.f32.mrb[0].mxu0
      %v3534 = vpop.f32.mrb[0].mxu0
      %v3535 = vadd.f32 0.0, %v3534
      %v3536 = vpop.f32.mrb[0].mxu0
      %3537 = vmatprep.mubr.bf16.mxu0 0
      %3538 = vmatmul.mubr.bf16.gmra.mrb[0].mxu0 %v3332
      %v3539 = vpop.f32.mrb[0].mxu0
      %v3540 = vadd.f32 0.0, %v3539
      %v3541 = vpop.f32.mrb[0].mxu0
      %v3542 = vpop.f32.mrb[0].mxu0
      %v3543 = vadd.f32 0.0, %v3542
      %v3544 = vpop.f32.mrb[0].mxu0
      %3545 = vmatprep.mubr.bf16.mxu0 0
      %3546 = vmatmul.mubr.bf16.gmra.mrb[0].mxu0 %v3334
      %v3547 = vpop.f32.mrb[0].mxu0
      %v3548 = vadd.f32 0.0, %v3547
      %v3549 = vpop.f32.mrb[0].mxu0
      %v3550 = vpop.f32.mrb[0].mxu0
      %v3551 = vadd.f32 0.0, %v3550
      %v3552 = vpop.f32.mrb[0].mxu0
      %3553 = vmatprep.mubr.bf16.mxu0 0
      %3554 = vmatmul.mubr.bf16.gmra.mrb[0].mxu0 %v3336
      %v3555 = vpop.f32.mrb[0].mxu0
      %v3556 = vadd.f32 0.0, %v3555
      %v3557 = vpop.f32.mrb[0].mxu0
      %v3558 = vpop.f32.mrb[0].mxu0
      %v3559 = vadd.f32 0.0, %v3558
      %v3560 = vpop.f32.mrb[0].mxu0
      %3561 = vmatprep.mubr.bf16.mxu0 0
      %3562 = vmatmul.mubr.bf16.gmra.mrb[0].mxu0 %v3338
      %v3563 = vpop.f32.mrb[0].mxu0
      %v3564 = vadd.f32 0.0, %v3563
      %v3565 = vpop.f32.mrb[0].mxu0
      %v3566 = vpop.f32.mrb[0].mxu0
      %v3567 = vadd.f32 0.0, %v3566
      %v3568 = vpop.f32.mrb[0].mxu0
      %3569 = vmatprep.mubr.bf16.mxu0 0
      %3570 = vmatmul.mubr.bf16.gmra.mrb[0].mxu0 %v3340
      %v3571 = vpop.f32.mrb[0].mxu0
      %v3572 = vadd.f32 0.0, %v3571
      %v3573 = vpop.f32.mrb[0].mxu0
      %v3574 = vpop.f32.mrb[0].mxu0
      %v3575 = vadd.f32 0.0, %v3574
      %v3576 = vpop.f32.mrb[0].mxu0
      %3577 = vmatprep.mubr.bf16.mxu0 0
      %3578 = vmatmul.mubr.bf16.gmra.mrb[0].mxu0 %v3342
      %v3579 = vpop.f32.mrb[0].mxu0
      %v3580 = vadd.f32 0.0, %v3579
      %v3581 = vpop.f32.mrb[0].mxu0
      %v3582 = vpop.f32.mrb[0].mxu0
      %v3583 = vadd.f32 0.0, %v3582
      %v3584 = vpop.f32.mrb[0].mxu0
      %3585 = vdwg.mxu0
      %v3586 = vadd.f32 %v3248, %v3444
      %v3587 = vadd.f32 %v3249, %v3447
      %v3588 = vadd.f32 %v3250, %v3452
      %v3589 = vadd.f32 %v3251, %v3455
      %v3590 = vadd.f32 %v3252, %v3460
      %v3591 = vadd.f32 %v3253, %v3463
      %v3592 = vadd.f32 %v3254, %v3468
      %v3593 = vadd.f32 %v3255, %v3471
      %v3594 = vadd.f32 %v3256, %v3476
      %v3595 = vadd.f32 %v3257, %v3479
      %v3596 = vadd.f32 %v3258, %v3484
      %v3597 = vadd.f32 %v3259, %v3487
      %v3598 = vadd.f32 %v3260, %v3492
      %v3599 = vadd.f32 %v3261, %v3495
      %v3600 = vadd.f32 %v3262, %v3500
      %v3601 = vadd.f32 %v3263, %v3503
      %v3602 = vadd.f32 %v3264, %v3508
      %v3603 = vadd.f32 %v3265, %v3511
      %v3604 = vadd.f32 %v3266, %v3516
      %v3605 = vadd.f32 %v3267, %v3519
      %v3606 = vadd.f32 %v3268, %v3524
      %v3607 = vadd.f32 %v3269, %v3527
      %v3608 = vadd.f32 %v3270, %v3532
      %v3609 = vadd.f32 %v3271, %v3535
      %v3610 = vadd.f32 %v3272, %v3540
      %v3611 = vadd.f32 %v3273, %v3543
      %v3612 = vadd.f32 %v3274, %v3548
      %v3613 = vadd.f32 %v3275, %v3551
      %v3614 = vadd.f32 %v3276, %v3556
      %v3615 = vadd.f32 %v3277, %v3559
      %v3616 = vadd.f32 %v3278, %v3564
      %v3617 = vadd.f32 %v3279, %v3567
      %v3618 = vadd.f32 %v3280, %v3572
      %v3619 = vadd.f32 %v3281, %v3575
      %v3620 = vadd.f32 %v3282, %v3580
      %v3621 = vadd.f32 %v3283, %v3583
      %v3622 = vld [vmem:[#allocation2 + $0x10] sm:$0xc]
      %v3623 = vld [vmem:[#allocation2 + $0x14] sm:$0xf]
      %v3624 = vld [vmem:[#allocation2 + $0x18] sm:$0xf]
      %v3625 = vld [vmem:[#allocation2 + $0x1c] sm:$0xf]
      %v3626 = vld [vmem:[#allocation2 + $0x20] sm:$0xf]
      %v3627 = vld [vmem:[#allocation2 + $0x24] sm:$0xf]
      %v3628 = vld [vmem:[#allocation2 + $0x28] sm:$0xf]
      %v3629 = vld [vmem:[#allocation2 + $0x2c] sm:$0xf]
      %v3630 = vld [vmem:[#allocation2 + $0x30] sm:$0xf]
      %v3631 = vld [vmem:[#allocation2 + $0x34] sm:$0xf]
      %v3632 = vld [vmem:[#allocation2 + $0x38] sm:$0xf]
      %v3633 = vld [vmem:[#allocation2 + $0x3c] sm:$0xf]
      %v3634 = vld [vmem:[#allocation2 + $0x40] sm:$0xf]
      %v3635 = vld [vmem:[#allocation2 + $0x44] sm:$0xf]
      %v3636 = vld [vmem:[#allocation2 + $0x48] sm:$0xf]
      %v3637 = vld [vmem:[#allocation2 + $0x4c] sm:$0xf]
      %v3638 = vld [vmem:[#allocation2 + $0x50] sm:$0xf]
      %v3639 = vld [vmem:[#allocation2 + $0x54] sm:$0xf]
      %v3640 = vld [vmem:[#allocation2 + $0x58] sm:$0xf]
      %v3641 = vld [vmem:[#allocation2 + $0x5c] sm:$0xf]
      %v3642 = vld [vmem:[#allocation2 + $0x60] sm:$0xf]
      %v3643 = vld [vmem:[#allocation2 + $0x64] sm:$0xf]
      %v3644 = vld [vmem:[#allocation2 + $0x68] sm:$0xf]
      %v3645 = vld [vmem:[#allocation2 + $0x6c] sm:$0xf]
      %v3646 = vld [vmem:[#allocation2 + $0x70] sm:$0xf]
      %v3647 = vld [vmem:[#allocation2 + $0x74] sm:$0xf]
      %v3648 = vld [vmem:[#allocation2 + $0x78] sm:$0xf]
      %v3649 = vld [vmem:[#allocation2 + $0x7c] sm:$0xf]
      %v3650 = vld [vmem:[#allocation2 + $0x80] sm:$0xf]
      %v3651 = vld [vmem:[#allocation2 + $0x84] sm:$0xf]
      %v3652 = vld [vmem:[#allocation2 + $0x88] sm:$0xf]
      %v3653 = vld [vmem:[#allocation2 + $0x8c] sm:$0xf]
      %v3654 = vld [vmem:[#allocation2 + $0x90] sm:$0xf]
      %v3655 = vld [vmem:[#allocation2 + $0x94] sm:$0xf]
      %v3656 = vld [vmem:[#allocation2 + $0x98] sm:$0xf]
      %v3657 = vld [vmem:[#allocation2 + $0x9c] sm:$0xf]
      %v3658 = vld [vmem:[#allocation2 + $0xa0] sm:$0x3]
      %s3659 = scalar_lea.vmem %s4, 384
      %v3660 = vld [vmem:[%s3659] sm:$0xf]
      %v3661 = vld [vmem:[%s3659 + $0x4] sm:$0xf]
      %v3662 = vld [vmem:[%s3659 + $0x8] sm:$0xf]
      %v3663 = vld [vmem:[%s3659 + $0xc] sm:$0xf]
      %v3664 = vld [vmem:[%s3659 + $0x10] sm:$0xf]
      %v3665 = vld [vmem:[%s3659 + $0x14] sm:$0xf]
      %v3666 = vld [vmem:[%s3659 + $0x18] sm:$0xf]
      %v3667 = vld [vmem:[%s3659 + $0x1c] sm:$0xf]
      %v3668 = vld [vmem:[%s3659 + $0x20] sm:$0xf]
      %v3669 = vld [vmem:[%s3659 + $0x24] sm:$0xf]
      %v3670 = vld [vmem:[%s3659 + $0x28] sm:$0xf]
      %v3671 = vld [vmem:[%s3659 + $0x2c] sm:$0xf]
      %v3672 = vld [vmem:[%s3659 + $0x30] sm:$0xf]
      %v3673 = vld [vmem:[%s3659 + $0x34] sm:$0xf]
      %v3674 = vld [vmem:[%s3659 + $0x38] sm:$0xf]
      %v3675 = vld [vmem:[%s3659 + $0x3c] sm:$0xf]
      %v3713 = vunpack.c.l.b16 %v3622
      %v3714 = vunpack.c.l.b16 %v3623
      %v3715 = vunpack.c.l.b16 %v3624
      %v3716 = vunpack.c.l.b16 %v3625
      %v3717 = vunpack.c.l.b16 %v3626
      %v3718 = vunpack.c.l.b16 %v3627
      %v3719 = vunpack.c.l.b16 %v3628
      %v3720 = vunpack.c.l.b16 %v3629
      %v3721 = vunpack.c.l.b16 %v3630
      %v3722 = vunpack.c.l.b16 %v3631
      %v3723 = vunpack.c.l.b16 %v3632
      %v3724 = vunpack.c.l.b16 %v3633
      %v3725 = vunpack.c.l.b16 %v3634
      %v3726 = vunpack.c.l.b16 %v3635
      %v3727 = vunpack.c.l.b16 %v3636
      %v3728 = vunpack.c.l.b16 %v3637
      %v3729 = vunpack.c.l.b16 %v3638
      %v3730 = vunpack.c.l.b16 %v3639
      %v3731 = vunpack.c.l.b16 %v3640
      %v3732 = vunpack.c.l.b16 %v3641
      %v3733 = vunpack.c.l.b16 %v3642
      %v3734 = vunpack.c.l.b16 %v3643
      %v3735 = vunpack.c.l.b16 %v3644
      %v3736 = vunpack.c.l.b16 %v3645
      %v3737 = vunpack.c.l.b16 %v3646
      %v3738 = vunpack.c.l.b16 %v3647
      %v3739 = vunpack.c.l.b16 %v3648
      %v3740 = vunpack.c.l.b16 %v3649
      %v3741 = vunpack.c.l.b16 %v3650
      %v3742 = vunpack.c.l.b16 %v3651
      %v3743 = vunpack.c.l.b16 %v3652
      %v3744 = vunpack.c.l.b16 %v3653
      %v3745 = vunpack.c.l.b16 %v3654
      %v3746 = vunpack.c.l.b16 %v3655
      %v3747 = vunpack.c.l.b16 %v3656
      %v3748 = vunpack.c.l.b16 %v3657
      %v3749 = vunpack.c.l.b16 %v3658
      %v3750 = vpack.c.b16 %v3714, %v3713
      %v3751 = vpack.c.b16 %v3716, %v3715
      %v3752 = vpack.c.b16 %v3718, %v3717
      %v3753 = vpack.c.b16 %v3720, %v3719
      %v3754 = vpack.c.b16 %v3722, %v3721
      %v3755 = vpack.c.b16 %v3724, %v3723
      %v3756 = vpack.c.b16 %v3726, %v3725
      %v3757 = vpack.c.b16 %v3728, %v3727
      %v3758 = vpack.c.b16 %v3730, %v3729
      %v3759 = vpack.c.b16 %v3732, %v3731
      %v3760 = vpack.c.b16 %v3734, %v3733
      %v3761 = vpack.c.b16 %v3736, %v3735
      %v3762 = vpack.c.b16 %v3738, %v3737
      %v3763 = vpack.c.b16 %v3740, %v3739
      %v3764 = vpack.c.b16 %v3742, %v3741
      %v3765 = vpack.c.b16 %v3744, %v3743
      %v3766 = vpack.c.b16 %v3746, %v3745
      %v3767 = vpack.c.b16 %v3748, %v3747
      %v3768 = vpack.c.b16 %v3749, %v3749
      %v3769 = vrot.slane %v3750, 2
      %v3770 = vrot.slane %v3751, 2
      %v3771 = vsel %vm3305, %v3769, %v3770
      %v3772 = vrot.slane %v3752, 2
      %v3773 = vsel %vm3305, %v3770, %v3772
      %v3774 = vrot.slane %v3753, 2
      %v3775 = vsel %vm3305, %v3772, %v3774
      %v3776 = vrot.slane %v3754, 2
      %v3777 = vsel %vm3305, %v3774, %v3776
      %v3778 = vrot.slane %v3755, 2
      %v3779 = vsel %vm3305, %v3776, %v3778
      %v3780 = vrot.slane %v3756, 2
      %v3781 = vsel %vm3305, %v3778, %v3780
      %v3782 = vrot.slane %v3757, 2
      %v3783 = vsel %vm3305, %v3780, %v3782
      %v3784 = vrot.slane %v3758, 2
      %v3785 = vsel %vm3305, %v3782, %v3784
      %v3786 = vrot.slane %v3759, 2
      %v3787 = vsel %vm3305, %v3784, %v3786
      %v3788 = vrot.slane %v3760, 2
      %v3789 = vsel %vm3305, %v3786, %v3788
      %v3790 = vrot.slane %v3761, 2
      %v3791 = vsel %vm3305, %v3788, %v3790
      %v3792 = vrot.slane %v3762, 2
      %v3793 = vsel %vm3305, %v3790, %v3792
      %v3794 = vrot.slane %v3763, 2
      %v3795 = vsel %vm3305, %v3792, %v3794
      %v3796 = vrot.slane %v3764, 2
      %v3797 = vsel %vm3305, %v3794, %v3796
      %v3798 = vrot.slane %v3765, 2
      %v3799 = vsel %vm3305, %v3796, %v3798
      %v3800 = vrot.slane %v3766, 2
      %v3801 = vsel %vm3305, %v3798, %v3800
      %v3802 = vrot.slane %v3767, 2
      %v3803 = vsel %vm3305, %v3800, %v3802
      %v3804 = vrot.slane %v3768, 2
      %v3805 = vsel %vm3305, %v3802, %v3804
      %v3840 = vunpack.c.l.b16 %v3660
      %v3841 = vunpack.c.l.b16 %v3661
      %v3842 = vunpack.c.l.b16 %v3662
      %v3843 = vunpack.c.l.b16 %v3663
      %v3844 = vunpack.c.l.b16 %v3664
      %v3845 = vunpack.c.l.b16 %v3665
      %v3846 = vunpack.c.l.b16 %v3666
      %v3847 = vunpack.c.l.b16 %v3667
      %v3848 = vunpack.c.l.b16 %v3668
      %v3849 = vunpack.c.l.b16 %v3669
      %v3850 = vunpack.c.l.b16 %v3670
      %v3851 = vunpack.c.l.b16 %v3671
      %v3852 = vunpack.c.l.b16 %v3672
      %v3853 = vunpack.c.l.b16 %v3673
      %v3854 = vunpack.c.l.b16 %v3674
      %v3855 = vunpack.c.l.b16 %v3675
      %v3856 = vpack.c.b16 %v3841, %v3840
      %v3857 = vpack.c.b16 %v3843, %v3842
      %v3858 = vpack.c.b16 %v3845, %v3844
      %v3859 = vpack.c.b16 %v3847, %v3846
      %v3860 = vpack.c.b16 %v3849, %v3848
      %v3861 = vpack.c.b16 %v3851, %v3850
      %v3862 = vpack.c.b16 %v3853, %v3852
      %v3863 = vpack.c.b16 %v3855, %v3854
      %3872 = vmatprep.subr.bf16.mxu0 0
      %3873 = vmatpush1.bf16.msra.mxu0 %v3856
      %3874 = vmatprep.subr.bf16.mxu0 0
      %3875 = vmatpush1.bf16.msra.mxu0 %v3857
      %3876 = vmatprep.subr.bf16.mxu0 0
      %3877 = vmatpush1.bf16.msra.mxu0 %v3858
      %3878 = vmatprep.subr.bf16.mxu0 0
      %3879 = vmatpush1.bf16.msra.mxu0 %v3859
      %3880 = vmatprep.subr.bf16.mxu0 0
      %3881 = vmatpush1.bf16.msra.mxu0 %v3860
      %3882 = vmatprep.subr.bf16.mxu0 0
      %3883 = vmatpush1.bf16.msra.mxu0 %v3861
      %3884 = vmatprep.subr.bf16.mxu0 0
      %3885 = vmatpush1.bf16.msra.mxu0 %v3862
      %3886 = vmatprep.subr.bf16.mxu0 0
      %3887 = vmatpush1.bf16.msra.mxu0 %v3863
      %3888 = vmatprep.subr.bf16.mxu0 0
      %3889 = vmatpush1.bf16.msra.mxu0 0
      %3890 = vmatprep.subr.bf16.mxu0 0
      %3891 = vmatpush1.bf16.msra.mxu0 0
      %3892 = vmatprep.subr.bf16.mxu0 0
      %3893 = vmatpush1.bf16.msra.mxu0 0
      %3894 = vmatprep.subr.bf16.mxu0 0
      %3895 = vmatpush1.bf16.msra.mxu0 0
      %3896 = vmatprep.subr.bf16.mxu0 0
      %3897 = vmatpush1.bf16.msra.mxu0 0
      %3898 = vmatprep.subr.bf16.mxu0 0
      %3899 = vmatpush1.bf16.msra.mxu0 0
      %3900 = vmatprep.subr.bf16.mxu0 0
      %3901 = vmatpush1.bf16.msra.mxu0 0
      %3902 = vmatprep.subr.bf16.mxu0 0
      %3903 = vmatpush1.bf16.msra.mxu0 0
      %3904 = vmatprep.mubr.bf16.mxu0 0
      %3905 = vmatmul.mubr.bf16.gmra.mrb[0].mxu0 %v3771
      %v3906 = vpop.f32.mrb[0].mxu0
      %v3907 = vadd.f32 0.0, %v3906
      %v3908 = vpop.f32.mrb[0].mxu0
      %v3909 = vpop.f32.mrb[0].mxu0
      %v3910 = vadd.f32 0.0, %v3909
      %v3911 = vpop.f32.mrb[0].mxu0
      %3912 = vmatprep.mubr.bf16.mxu0 0
      %3913 = vmatmul.mubr.bf16.gmra.mrb[0].mxu0 %v3773
      %v3914 = vpop.f32.mrb[0].mxu0
      %v3915 = vadd.f32 0.0, %v3914
      %v3916 = vpop.f32.mrb[0].mxu0
      %v3917 = vpop.f32.mrb[0].mxu0
      %v3918 = vadd.f32 0.0, %v3917
      %v3919 = vpop.f32.mrb[0].mxu0
      %3920 = vmatprep.mubr.bf16.mxu0 0
      %3921 = vmatmul.mubr.bf16.gmra.mrb[0].mxu0 %v3775
      %v3922 = vpop.f32.mrb[0].mxu0
      %v3923 = vadd.f32 0.0, %v3922
      %v3924 = vpop.f32.mrb[0].mxu0
      %v3925 = vpop.f32.mrb[0].mxu0
      %v3926 = vadd.f32 0.0, %v3925
      %v3927 = vpop.f32.mrb[0].mxu0
      %3928 = vmatprep.mubr.bf16.mxu0 0
      %3929 = vmatmul.mubr.bf16.gmra.mrb[0].mxu0 %v3777
      %v3930 = vpop.f32.mrb[0].mxu0
      %v3931 = vadd.f32 0.0, %v3930
      %v3932 = vpop.f32.mrb[0].mxu0
      %v3933 = vpop.f32.mrb[0].mxu0
      %v3934 = vadd.f32 0.0, %v3933
      %v3935 = vpop.f32.mrb[0].mxu0
      %3936 = vmatprep.mubr.bf16.mxu0 0
      %3937 = vmatmul.mubr.bf16.gmra.mrb[0].mxu0 %v3779
      %v3938 = vpop.f32.mrb[0].mxu0
      %v3939 = vadd.f32 0.0, %v3938
      %v3940 = vpop.f32.mrb[0].mxu0
      %v3941 = vpop.f32.mrb[0].mxu0
      %v3942 = vadd.f32 0.0, %v3941
      %v3943 = vpop.f32.mrb[0].mxu0
      %3944 = vmatprep.mubr.bf16.mxu0 0
      %3945 = vmatmul.mubr.bf16.gmra.mrb[0].mxu0 %v3781
      %v3946 = vpop.f32.mrb[0].mxu0
      %v3947 = vadd.f32 0.0, %v3946
      %v3948 = vpop.f32.mrb[0].mxu0
      %v3949 = vpop.f32.mrb[0].mxu0
      %v3950 = vadd.f32 0.0, %v3949
      %v3951 = vpop.f32.mrb[0].mxu0
      %3952 = vmatprep.mubr.bf16.mxu0 0
      %3953 = vmatmul.mubr.bf16.gmra.mrb[0].mxu0 %v3783
      %v3954 = vpop.f32.mrb[0].mxu0
      %v3955 = vadd.f32 0.0, %v3954
      %v3956 = vpop.f32.mrb[0].mxu0
      %v3957 = vpop.f32.mrb[0].mxu0
      %v3958 = vadd.f32 0.0, %v3957
      %v3959 = vpop.f32.mrb[0].mxu0
      %3960 = vmatprep.mubr.bf16.mxu0 0
      %3961 = vmatmul.mubr.bf16.gmra.mrb[0].mxu0 %v3785
      %v3962 = vpop.f32.mrb[0].mxu0
      %v3963 = vadd.f32 0.0, %v3962
      %v3964 = vpop.f32.mrb[0].mxu0
      %v3965 = vpop.f32.mrb[0].mxu0
      %v3966 = vadd.f32 0.0, %v3965
      %v3967 = vpop.f32.mrb[0].mxu0
      %3968 = vmatprep.mubr.bf16.mxu0 0
      %3969 = vmatmul.mubr.bf16.gmra.mrb[0].mxu0 %v3787
      %v3970 = vpop.f32.mrb[0].mxu0
      %v3971 = vadd.f32 0.0, %v3970
      %v3972 = vpop.f32.mrb[0].mxu0
      %v3973 = vpop.f32.mrb[0].mxu0
      %v3974 = vadd.f32 0.0, %v3973
      %v3975 = vpop.f32.mrb[0].mxu0
      %3976 = vmatprep.mubr.bf16.mxu0 0
      %3977 = vmatmul.mubr.bf16.gmra.mrb[0].mxu0 %v3789
      %v3978 = vpop.f32.mrb[0].mxu0
      %v3979 = vadd.f32 0.0, %v3978
      %v3980 = vpop.f32.mrb[0].mxu0
      %v3981 = vpop.f32.mrb[0].mxu0
      %v3982 = vadd.f32 0.0, %v3981
      %v3983 = vpop.f32.mrb[0].mxu0
      %3984 = vmatprep.mubr.bf16.mxu0 0
      %3985 = vmatmul.mubr.bf16.gmra.mrb[0].mxu0 %v3791
      %v3986 = vpop.f32.mrb[0].mxu0
      %v3987 = vadd.f32 0.0, %v3986
      %v3988 = vpop.f32.mrb[0].mxu0
      %v3989 = vpop.f32.mrb[0].mxu0
      %v3990 = vadd.f32 0.0, %v3989
      %v3991 = vpop.f32.mrb[0].mxu0
      %3992 = vmatprep.mubr.bf16.mxu0 0
      %3993 = vmatmul.mubr.bf16.gmra.mrb[0].mxu0 %v3793
      %v3994 = vpop.f32.mrb[0].mxu0
      %v3995 = vadd.f32 0.0, %v3994
      %v3996 = vpop.f32.mrb[0].mxu0
      %v3997 = vpop.f32.mrb[0].mxu0
      %v3998 = vadd.f32 0.0, %v3997
      %v3999 = vpop.f32.mrb[0].mxu0
      %4000 = vmatprep.mubr.bf16.mxu0 0
      %4001 = vmatmul.mubr.bf16.gmra.mrb[0].mxu0 %v3795
      %v4002 = vpop.f32.mrb[0].mxu0
      %v4003 = vadd.f32 0.0, %v4002
      %v4004 = vpop.f32.mrb[0].mxu0
      %v4005 = vpop.f32.mrb[0].mxu0
      %v4006 = vadd.f32 0.0, %v4005
      %v4007 = vpop.f32.mrb[0].mxu0
      %4008 = vmatprep.mubr.bf16.mxu0 0
      %4009 = vmatmul.mubr.bf16.gmra.mrb[0].mxu0 %v3797
      %v4010 = vpop.f32.mrb[0].mxu0
      %v4011 = vadd.f32 0.0, %v4010
      %v4012 = vpop.f32.mrb[0].mxu0
      %v4013 = vpop.f32.mrb[0].mxu0
      %v4014 = vadd.f32 0.0, %v4013
      %v4015 = vpop.f32.mrb[0].mxu0
      %4016 = vmatprep.mubr.bf16.mxu0 0
      %4017 = vmatmul.mubr.bf16.gmra.mrb[0].mxu0 %v3799
      %v4018 = vpop.f32.mrb[0].mxu0
      %v4019 = vadd.f32 0.0, %v4018
      %v4020 = vpop.f32.mrb[0].mxu0
      %v4021 = vpop.f32.mrb[0].mxu0
      %v4022 = vadd.f32 0.0, %v4021
      %v4023 = vpop.f32.mrb[0].mxu0
      %4024 = vmatprep.mubr.bf16.mxu0 0
      %4025 = vmatmul.mubr.bf16.gmra.mrb[0].mxu0 %v3801
      %v4026 = vpop.f32.mrb[0].mxu0
      %v4027 = vadd.f32 0.0, %v4026
      %v4028 = vpop.f32.mrb[0].mxu0
      %v4029 = vpop.f32.mrb[0].mxu0
      %v4030 = vadd.f32 0.0, %v4029
      %v4031 = vpop.f32.mrb[0].mxu0
      %4032 = vmatprep.mubr.bf16.mxu0 0
      %4033 = vmatmul.mubr.bf16.gmra.mrb[0].mxu0 %v3803
      %v4034 = vpop.f32.mrb[0].mxu0
      %v4035 = vadd.f32 0.0, %v4034
      %v4036 = vpop.f32.mrb[0].mxu0
      %v4037 = vpop.f32.mrb[0].mxu0
      %v4038 = vadd.f32 0.0, %v4037
      %v4039 = vpop.f32.mrb[0].mxu0
      %4040 = vmatprep.mubr.bf16.mxu0 0
      %4041 = vmatmul.mubr.bf16.gmra.mrb[0].mxu0 %v3805
      %v4042 = vpop.f32.mrb[0].mxu0
      %v4043 = vadd.f32 0.0, %v4042
      %v4044 = vpop.f32.mrb[0].mxu0
      %v4045 = vpop.f32.mrb[0].mxu0
      %v4046 = vadd.f32 0.0, %v4045
      %v4047 = vpop.f32.mrb[0].mxu0
      %4048 = vdwg.mxu0
      %v4049 = vadd.f32 %v3586, %v3907
      %v4050 = vadd.f32 %v3587, %v3910
      %v4051 = vadd.f32 %v3588, %v3915
      %v4052 = vadd.f32 %v3589, %v3918
      %v4053 = vadd.f32 %v3590, %v3923
      %v4054 = vadd.f32 %v3591, %v3926
      %v4055 = vadd.f32 %v3592, %v3931
      %v4056 = vadd.f32 %v3593, %v3934
      %v4057 = vadd.f32 %v3594, %v3939
      %v4058 = vadd.f32 %v3595, %v3942
      %v4059 = vadd.f32 %v3596, %v3947
      %v4060 = vadd.f32 %v3597, %v3950
      %v4061 = vadd.f32 %v3598, %v3955
      %v4062 = vadd.f32 %v3599, %v3958
      %v4063 = vadd.f32 %v3600, %v3963
      %v4064 = vadd.f32 %v3601, %v3966
      %v4065 = vadd.f32 %v3602, %v3971
      %v4066 = vadd.f32 %v3603, %v3974
      %v4067 = vadd.f32 %v3604, %v3979
      %v4068 = vadd.f32 %v3605, %v3982
      %v4069 = vadd.f32 %v3606, %v3987
      %v4070 = vadd.f32 %v3607, %v3990
      %v4071 = vadd.f32 %v3608, %v3995
      %v4072 = vadd.f32 %v3609, %v3998
      %v4073 = vadd.f32 %v3610, %v4003
      %v4074 = vadd.f32 %v3611, %v4006
      %v4075 = vadd.f32 %v3612, %v4011
      %v4076 = vadd.f32 %v3613, %v4014
      %v4077 = vadd.f32 %v3614, %v4019
      %v4078 = vadd.f32 %v3615, %v4022
      %v4079 = vadd.f32 %v3616, %v4027
      %v4080 = vadd.f32 %v3617, %v4030
      %v4081 = vadd.f32 %v3618, %v4035
      %v4082 = vadd.f32 %v3619, %v4038
      %v4083 = vadd.f32 %v3620, %v4043
      %v4084 = vadd.f32 %v3621, %v4046
      %v4085 = vld [vmem:[#allocation2 + $0xa0] sm:$0x7]
      %s4086 = scalar_lea.vmem %s4, 448
      %v4087 = vld [vmem:[%s4086] sm:$0xf]
      %v4088 = vld [vmem:[%s4086 + $0x4] sm:$0xf]
      %v4089 = vld [vmem:[%s4086 + $0x8] sm:$0xf]
      %v4090 = vld [vmem:[%s4086 + $0xc] sm:$0xf]
      %v4091 = vld [vmem:[%s4086 + $0x10] sm:$0xf]
      %v4092 = vld [vmem:[%s4086 + $0x14] sm:$0xf]
      %v4093 = vld [vmem:[%s4086 + $0x18] sm:$0xf]
      %v4094 = vld [vmem:[%s4086 + $0x1c] sm:$0xf]
      %v4095 = vld [vmem:[%s4086 + $0x20] sm:$0xf]
      %v4096 = vld [vmem:[%s4086 + $0x24] sm:$0xf]
      %v4097 = vld [vmem:[%s4086 + $0x28] sm:$0xf]
      %v4098 = vld [vmem:[%s4086 + $0x2c] sm:$0xf]
      %v4099 = vld [vmem:[%s4086 + $0x30] sm:$0xf]
      %v4100 = vld [vmem:[%s4086 + $0x34] sm:$0xf]
      %v4101 = vld [vmem:[%s4086 + $0x38] sm:$0xf]
      %v4102 = vld [vmem:[%s4086 + $0x3c] sm:$0xf]
      %v4104 = vunpack.c.l.b16 %v4085
      %v4105 = vpack.c.b16 %v4104, %v4104
      %vm4106 = vsmask.f32 5376
      %v4108 = vshrl.u32 %v3750, 16
      %v4110 = vrot.slane %v4108, 2
      %v4111 = vshll.u32 %v3750, 16
      %v4113 = vrot.slane %v4111, 3
      %v4114 = vor.u32 %v4110, %v4113
      %v4116 = vshrl.u32 %v3751, 16
      %v4118 = vrot.slane %v4116, 2
      %v4119 = vshll.u32 %v3751, 16
      %v4121 = vrot.slane %v4119, 3
      %v4122 = vor.u32 %v4118, %v4121
      %v4123 = vsel %vm4106, %v4114, %v4122
      %v4125 = vshrl.u32 %v3752, 16
      %v4127 = vrot.slane %v4125, 2
      %v4128 = vshll.u32 %v3752, 16
      %v4130 = vrot.slane %v4128, 3
      %v4131 = vor.u32 %v4127, %v4130
      %v4132 = vsel %vm4106, %v4122, %v4131
      %v4134 = vshrl.u32 %v3753, 16
      %v4136 = vrot.slane %v4134, 2
      %v4137 = vshll.u32 %v3753, 16
      %v4139 = vrot.slane %v4137, 3
      %v4140 = vor.u32 %v4136, %v4139
      %v4141 = vsel %vm4106, %v4131, %v4140
      %v4143 = vshrl.u32 %v3754, 16
      %v4145 = vrot.slane %v4143, 2
      %v4146 = vshll.u32 %v3754, 16
      %v4148 = vrot.slane %v4146, 3
      %v4149 = vor.u32 %v4145, %v4148
      %v4150 = vsel %vm4106, %v4140, %v4149
      %v4152 = vshrl.u32 %v3755, 16
      %v4154 = vrot.slane %v4152, 2
      %v4155 = vshll.u32 %v3755, 16
      %v4157 = vrot.slane %v4155, 3
      %v4158 = vor.u32 %v4154, %v4157
      %v4159 = vsel %vm4106, %v4149, %v4158
      %v4161 = vshrl.u32 %v3756, 16
      %v4163 = vrot.slane %v4161, 2
      %v4164 = vshll.u32 %v3756, 16
      %v4166 = vrot.slane %v4164, 3
      %v4167 = vor.u32 %v4163, %v4166
      %v4168 = vsel %vm4106, %v4158, %v4167
      %v4170 = vshrl.u32 %v3757, 16
      %v4172 = vrot.slane %v4170, 2
      %v4173 = vshll.u32 %v3757, 16
      %v4175 = vrot.slane %v4173, 3
      %v4176 = vor.u32 %v4172, %v4175
      %v4177 = vsel %vm4106, %v4167, %v4176
      %v4179 = vshrl.u32 %v3758, 16
      %v4181 = vrot.slane %v4179, 2
      %v4182 = vshll.u32 %v3758, 16
      %v4184 = vrot.slane %v4182, 3
      %v4185 = vor.u32 %v4181, %v4184
      %v4186 = vsel %vm4106, %v4176, %v4185
      %v4188 = vshrl.u32 %v3759, 16
      %v4190 = vrot.slane %v4188, 2
      %v4191 = vshll.u32 %v3759, 16
      %v4193 = vrot.slane %v4191, 3
      %v4194 = vor.u32 %v4190, %v4193
      %v4195 = vsel %vm4106, %v4185, %v4194
      %v4197 = vshrl.u32 %v3760, 16
      %v4199 = vrot.slane %v4197, 2
      %v4200 = vshll.u32 %v3760, 16
      %v4202 = vrot.slane %v4200, 3
      %v4203 = vor.u32 %v4199, %v4202
      %v4204 = vsel %vm4106, %v4194, %v4203
      %v4206 = vshrl.u32 %v3761, 16
      %v4208 = vrot.slane %v4206, 2
      %v4209 = vshll.u32 %v3761, 16
      %v4211 = vrot.slane %v4209, 3
      %v4212 = vor.u32 %v4208, %v4211
      %v4213 = vsel %vm4106, %v4203, %v4212
      %v4215 = vshrl.u32 %v3762, 16
      %v4217 = vrot.slane %v4215, 2
      %v4218 = vshll.u32 %v3762, 16
      %v4220 = vrot.slane %v4218, 3
      %v4221 = vor.u32 %v4217, %v4220
      %v4222 = vsel %vm4106, %v4212, %v4221
      %v4224 = vshrl.u32 %v3763, 16
      %v4226 = vrot.slane %v4224, 2
      %v4227 = vshll.u32 %v3763, 16
      %v4229 = vrot.slane %v4227, 3
      %v4230 = vor.u32 %v4226, %v4229
      %v4231 = vsel %vm4106, %v4221, %v4230
      %v4233 = vshrl.u32 %v3764, 16
      %v4235 = vrot.slane %v4233, 2
      %v4236 = vshll.u32 %v3764, 16
      %v4238 = vrot.slane %v4236, 3
      %v4239 = vor.u32 %v4235, %v4238
      %v4240 = vsel %vm4106, %v4230, %v4239
      %v4242 = vshrl.u32 %v3765, 16
      %v4244 = vrot.slane %v4242, 2
      %v4245 = vshll.u32 %v3765, 16
      %v4247 = vrot.slane %v4245, 3
      %v4248 = vor.u32 %v4244, %v4247
      %v4249 = vsel %vm4106, %v4239, %v4248
      %v4251 = vshrl.u32 %v3766, 16
      %v4253 = vrot.slane %v4251, 2
      %v4254 = vshll.u32 %v3766, 16
      %v4256 = vrot.slane %v4254, 3
      %v4257 = vor.u32 %v4253, %v4256
      %v4258 = vsel %vm4106, %v4248, %v4257
      %v4260 = vshrl.u32 %v3767, 16
      %v4262 = vrot.slane %v4260, 2
      %v4263 = vshll.u32 %v3767, 16
      %v4265 = vrot.slane %v4263, 3
      %v4266 = vor.u32 %v4262, %v4265
      %v4267 = vsel %vm4106, %v4257, %v4266
      %v4269 = vshrl.u32 %v4105, 16
      %v4271 = vrot.slane %v4269, 2
      %v4272 = vshll.u32 %v4105, 16
      %v4274 = vrot.slane %v4272, 3
      %v4275 = vor.u32 %v4271, %v4274
      %v4276 = vsel %vm4106, %v4266, %v4275
      %v4311 = vunpack.c.l.b16 %v4087
      %v4312 = vunpack.c.l.b16 %v4088
      %v4313 = vunpack.c.l.b16 %v4089
      %v4314 = vunpack.c.l.b16 %v4090
      %v4315 = vunpack.c.l.b16 %v4091
      %v4316 = vunpack.c.l.b16 %v4092
      %v4317 = vunpack.c.l.b16 %v4093
      %v4318 = vunpack.c.l.b16 %v4094
      %v4319 = vunpack.c.l.b16 %v4095
      %v4320 = vunpack.c.l.b16 %v4096
      %v4321 = vunpack.c.l.b16 %v4097
      %v4322 = vunpack.c.l.b16 %v4098
      %v4323 = vunpack.c.l.b16 %v4099
      %v4324 = vunpack.c.l.b16 %v4100
      %v4325 = vunpack.c.l.b16 %v4101
      %v4326 = vunpack.c.l.b16 %v4102
      %v4327 = vpack.c.b16 %v4312, %v4311
      %v4328 = vpack.c.b16 %v4314, %v4313
      %v4329 = vpack.c.b16 %v4316, %v4315
      %v4330 = vpack.c.b16 %v4318, %v4317
      %v4331 = vpack.c.b16 %v4320, %v4319
      %v4332 = vpack.c.b16 %v4322, %v4321
      %v4333 = vpack.c.b16 %v4324, %v4323
      %v4334 = vpack.c.b16 %v4326, %v4325
      %4343 = vmatprep.subr.bf16.mxu0 0
      %4344 = vmatpush1.bf16.msra.mxu0 %v4327
      %4345 = vmatprep.subr.bf16.mxu0 0
      %4346 = vmatpush1.bf16.msra.mxu0 %v4328
      %4347 = vmatprep.subr.bf16.mxu0 0
      %4348 = vmatpush1.bf16.msra.mxu0 %v4329
      %4349 = vmatprep.subr.bf16.mxu0 0
      %4350 = vmatpush1.bf16.msra.mxu0 %v4330
      %4351 = vmatprep.subr.bf16.mxu0 0
      %4352 = vmatpush1.bf16.msra.mxu0 %v4331
      %4353 = vmatprep.subr.bf16.mxu0 0
      %4354 = vmatpush1.bf16.msra.mxu0 %v4332
      %4355 = vmatprep.subr.bf16.mxu0 0
      %4356 = vmatpush1.bf16.msra.mxu0 %v4333
      %4357 = vmatprep.subr.bf16.mxu0 0
      %4358 = vmatpush1.bf16.msra.mxu0 %v4334
      %4359 = vmatprep.subr.bf16.mxu0 0
      %4360 = vmatpush1.bf16.msra.mxu0 0
      %4361 = vmatprep.subr.bf16.mxu0 0
      %4362 = vmatpush1.bf16.msra.mxu0 0
      %4363 = vmatprep.subr.bf16.mxu0 0
      %4364 = vmatpush1.bf16.msra.mxu0 0
      %4365 = vmatprep.subr.bf16.mxu0 0
      %4366 = vmatpush1.bf16.msra.mxu0 0
      %4367 = vmatprep.subr.bf16.mxu0 0
      %4368 = vmatpush1.bf16.msra.mxu0 0
      %4369 = vmatprep.subr.bf16.mxu0 0
      %4370 = vmatpush1.bf16.msra.mxu0 0
      %4371 = vmatprep.subr.bf16.mxu0 0
      %4372 = vmatpush1.bf16.msra.mxu0 0
      %4373 = vmatprep.subr.bf16.mxu0 0
      %4374 = vmatpush1.bf16.msra.mxu0 0
      %4375 = vmatprep.mubr.bf16.mxu0 0
      %4376 = vmatmul.mubr.bf16.gmra.mrb[0].mxu0 %v4123
      %v4377 = vpop.f32.mrb[0].mxu0
      %v4378 = vadd.f32 0.0, %v4377
      %v4379 = vpop.f32.mrb[0].mxu0
      %v4380 = vpop.f32.mrb[0].mxu0
      %v4381 = vadd.f32 0.0, %v4380
      %v4382 = vpop.f32.mrb[0].mxu0
      %4383 = vmatprep.mubr.bf16.mxu0 0
      %4384 = vmatmul.mubr.bf16.gmra.mrb[0].mxu0 %v4132
      %v4385 = vpop.f32.mrb[0].mxu0
      %v4386 = vadd.f32 0.0, %v4385
      %v4387 = vpop.f32.mrb[0].mxu0
      %v4388 = vpop.f32.mrb[0].mxu0
      %v4389 = vadd.f32 0.0, %v4388
      %v4390 = vpop.f32.mrb[0].mxu0
      %4391 = vmatprep.mubr.bf16.mxu0 0
      %4392 = vmatmul.mubr.bf16.gmra.mrb[0].mxu0 %v4141
      %v4393 = vpop.f32.mrb[0].mxu0
      %v4394 = vadd.f32 0.0, %v4393
      %v4395 = vpop.f32.mrb[0].mxu0
      %v4396 = vpop.f32.mrb[0].mxu0
      %v4397 = vadd.f32 0.0, %v4396
      %v4398 = vpop.f32.mrb[0].mxu0
      %4399 = vmatprep.mubr.bf16.mxu0 0
      %4400 = vmatmul.mubr.bf16.gmra.mrb[0].mxu0 %v4150
      %v4401 = vpop.f32.mrb[0].mxu0
      %v4402 = vadd.f32 0.0, %v4401
      %v4403 = vpop.f32.mrb[0].mxu0
      %v4404 = vpop.f32.mrb[0].mxu0
      %v4405 = vadd.f32 0.0, %v4404
      %v4406 = vpop.f32.mrb[0].mxu0
      %4407 = vmatprep.mubr.bf16.mxu0 0
      %4408 = vmatmul.mubr.bf16.gmra.mrb[0].mxu0 %v4159
      %v4409 = vpop.f32.mrb[0].mxu0
      %v4410 = vadd.f32 0.0, %v4409
      %v4411 = vpop.f32.mrb[0].mxu0
      %v4412 = vpop.f32.mrb[0].mxu0
      %v4413 = vadd.f32 0.0, %v4412
      %v4414 = vpop.f32.mrb[0].mxu0
      %4415 = vmatprep.mubr.bf16.mxu0 0
      %4416 = vmatmul.mubr.bf16.gmra.mrb[0].mxu0 %v4168
      %v4417 = vpop.f32.mrb[0].mxu0
      %v4418 = vadd.f32 0.0, %v4417
      %v4419 = vpop.f32.mrb[0].mxu0
      %v4420 = vpop.f32.mrb[0].mxu0
      %v4421 = vadd.f32 0.0, %v4420
      %v4422 = vpop.f32.mrb[0].mxu0
      %4423 = vmatprep.mubr.bf16.mxu0 0
      %4424 = vmatmul.mubr.bf16.gmra.mrb[0].mxu0 %v4177
      %v4425 = vpop.f32.mrb[0].mxu0
      %v4426 = vadd.f32 0.0, %v4425
      %v4427 = vpop.f32.mrb[0].mxu0
      %v4428 = vpop.f32.mrb[0].mxu0
      %v4429 = vadd.f32 0.0, %v4428
      %v4430 = vpop.f32.mrb[0].mxu0
      %4431 = vmatprep.mubr.bf16.mxu0 0
      %4432 = vmatmul.mubr.bf16.gmra.mrb[0].mxu0 %v4186
      %v4433 = vpop.f32.mrb[0].mxu0
      %v4434 = vadd.f32 0.0, %v4433
      %v4435 = vpop.f32.mrb[0].mxu0
      %v4436 = vpop.f32.mrb[0].mxu0
      %v4437 = vadd.f32 0.0, %v4436
      %v4438 = vpop.f32.mrb[0].mxu0
      %4439 = vmatprep.mubr.bf16.mxu0 0
      %4440 = vmatmul.mubr.bf16.gmra.mrb[0].mxu0 %v4195
      %v4441 = vpop.f32.mrb[0].mxu0
      %v4442 = vadd.f32 0.0, %v4441
      %v4443 = vpop.f32.mrb[0].mxu0
      %v4444 = vpop.f32.mrb[0].mxu0
      %v4445 = vadd.f32 0.0, %v4444
      %v4446 = vpop.f32.mrb[0].mxu0
      %4447 = vmatprep.mubr.bf16.mxu0 0
      %4448 = vmatmul.mubr.bf16.gmra.mrb[0].mxu0 %v4204
      %v4449 = vpop.f32.mrb[0].mxu0
      %v4450 = vadd.f32 0.0, %v4449
      %v4451 = vpop.f32.mrb[0].mxu0
      %v4452 = vpop.f32.mrb[0].mxu0
      %v4453 = vadd.f32 0.0, %v4452
      %v4454 = vpop.f32.mrb[0].mxu0
      %4455 = vmatprep.mubr.bf16.mxu0 0
      %4456 = vmatmul.mubr.bf16.gmra.mrb[0].mxu0 %v4213
      %v4457 = vpop.f32.mrb[0].mxu0
      %v4458 = vadd.f32 0.0, %v4457
      %v4459 = vpop.f32.mrb[0].mxu0
      %v4460 = vpop.f32.mrb[0].mxu0
      %v4461 = vadd.f32 0.0, %v4460
      %v4462 = vpop.f32.mrb[0].mxu0
      %4463 = vmatprep.mubr.bf16.mxu0 0
      %4464 = vmatmul.mubr.bf16.gmra.mrb[0].mxu0 %v4222
      %v4465 = vpop.f32.mrb[0].mxu0
      %v4466 = vadd.f32 0.0, %v4465
      %v4467 = vpop.f32.mrb[0].mxu0
      %v4468 = vpop.f32.mrb[0].mxu0
      %v4469 = vadd.f32 0.0, %v4468
      %v4470 = vpop.f32.mrb[0].mxu0
      %4471 = vmatprep.mubr.bf16.mxu0 0
      %4472 = vmatmul.mubr.bf16.gmra.mrb[0].mxu0 %v4231
      %v4473 = vpop.f32.mrb[0].mxu0
      %v4474 = vadd.f32 0.0, %v4473
      %v4475 = vpop.f32.mrb[0].mxu0
      %v4476 = vpop.f32.mrb[0].mxu0
      %v4477 = vadd.f32 0.0, %v4476
      %v4478 = vpop.f32.mrb[0].mxu0
      %4479 = vmatprep.mubr.bf16.mxu0 0
      %4480 = vmatmul.mubr.bf16.gmra.mrb[0].mxu0 %v4240
      %v4481 = vpop.f32.mrb[0].mxu0
      %v4482 = vadd.f32 0.0, %v4481
      %v4483 = vpop.f32.mrb[0].mxu0
      %v4484 = vpop.f32.mrb[0].mxu0
      %v4485 = vadd.f32 0.0, %v4484
      %v4486 = vpop.f32.mrb[0].mxu0
      %4487 = vmatprep.mubr.bf16.mxu0 0
      %4488 = vmatmul.mubr.bf16.gmra.mrb[0].mxu0 %v4249
      %v4489 = vpop.f32.mrb[0].mxu0
      %v4490 = vadd.f32 0.0, %v4489
      %v4491 = vpop.f32.mrb[0].mxu0
      %v4492 = vpop.f32.mrb[0].mxu0
      %v4493 = vadd.f32 0.0, %v4492
      %v4494 = vpop.f32.mrb[0].mxu0
      %4495 = vmatprep.mubr.bf16.mxu0 0
      %4496 = vmatmul.mubr.bf16.gmra.mrb[0].mxu0 %v4258
      %v4497 = vpop.f32.mrb[0].mxu0
      %v4498 = vadd.f32 0.0, %v4497
      %v4499 = vpop.f32.mrb[0].mxu0
      %v4500 = vpop.f32.mrb[0].mxu0
      %v4501 = vadd.f32 0.0, %v4500
      %v4502 = vpop.f32.mrb[0].mxu0
      %4503 = vmatprep.mubr.bf16.mxu0 0
      %4504 = vmatmul.mubr.bf16.gmra.mrb[0].mxu0 %v4267
      %v4505 = vpop.f32.mrb[0].mxu0
      %v4506 = vadd.f32 0.0, %v4505
      %v4507 = vpop.f32.mrb[0].mxu0
      %v4508 = vpop.f32.mrb[0].mxu0
      %v4509 = vadd.f32 0.0, %v4508
      %v4510 = vpop.f32.mrb[0].mxu0
      %4511 = vmatprep.mubr.bf16.mxu0 0
      %4512 = vmatmul.mubr.bf16.gmra.mrb[0].mxu0 %v4276
      %v4513 = vpop.f32.mrb[0].mxu0
      %v4514 = vadd.f32 0.0, %v4513
      %v4515 = vpop.f32.mrb[0].mxu0
      %v4516 = vpop.f32.mrb[0].mxu0
      %v4517 = vadd.f32 0.0, %v4516
      %v4518 = vpop.f32.mrb[0].mxu0
      %4519 = vdwg.mxu0
      %v4520 = vadd.f32 %v4049, %v4378
      %v4521 = vadd.f32 %v4050, %v4381
      %v4522 = vadd.f32 %v4051, %v4386
      %v4523 = vadd.f32 %v4052, %v4389
      %v4524 = vadd.f32 %v4053, %v4394
      %v4525 = vadd.f32 %v4054, %v4397
      %v4526 = vadd.f32 %v4055, %v4402
      %v4527 = vadd.f32 %v4056, %v4405
      %v4528 = vadd.f32 %v4057, %v4410
      %v4529 = vadd.f32 %v4058, %v4413
      %v4530 = vadd.f32 %v4059, %v4418
      %v4531 = vadd.f32 %v4060, %v4421
      %v4532 = vadd.f32 %v4061, %v4426
      %v4533 = vadd.f32 %v4062, %v4429
      %v4534 = vadd.f32 %v4063, %v4434
      %v4535 = vadd.f32 %v4064, %v4437
      %v4536 = vadd.f32 %v4065, %v4442
      %v4537 = vadd.f32 %v4066, %v4445
      %v4538 = vadd.f32 %v4067, %v4450
      %v4539 = vadd.f32 %v4068, %v4453
      %v4540 = vadd.f32 %v4069, %v4458
      %v4541 = vadd.f32 %v4070, %v4461
      %v4542 = vadd.f32 %v4071, %v4466
      %v4543 = vadd.f32 %v4072, %v4469
      %v4544 = vadd.f32 %v4073, %v4474
      %v4545 = vadd.f32 %v4074, %v4477
      %v4546 = vadd.f32 %v4075, %v4482
      %v4547 = vadd.f32 %v4076, %v4485
      %v4548 = vadd.f32 %v4077, %v4490
      %v4549 = vadd.f32 %v4078, %v4493
      %v4550 = vadd.f32 %v4079, %v4498
      %v4551 = vadd.f32 %v4080, %v4501
      %v4552 = vadd.f32 %v4081, %v4506
      %v4553 = vadd.f32 %v4082, %v4509
      %v4554 = vadd.f32 %v4083, %v4514
      %v4555 = vadd.f32 %v4084, %v4517
      %v4556 = vld [vmem:[#allocation2 + $0x10] sm:$0x8]
      %s4557 = scalar_lea.vmem %s4, 512
      %v4558 = vld [vmem:[%s4557] sm:$0xf]
      %v4559 = vld [vmem:[%s4557 + $0x4] sm:$0xf]
      %v4560 = vld [vmem:[%s4557 + $0x8] sm:$0xf]
      %v4561 = vld [vmem:[%s4557 + $0xc] sm:$0xf]
      %v4562 = vld [vmem:[%s4557 + $0x10] sm:$0xf]
      %v4563 = vld [vmem:[%s4557 + $0x14] sm:$0xf]
      %v4564 = vld [vmem:[%s4557 + $0x18] sm:$0xf]
      %v4565 = vld [vmem:[%s4557 + $0x1c] sm:$0xf]
      %v4566 = vld [vmem:[%s4557 + $0x20] sm:$0xf]
      %v4567 = vld [vmem:[%s4557 + $0x24] sm:$0xf]
      %v4568 = vld [vmem:[%s4557 + $0x28] sm:$0xf]
      %v4569 = vld [vmem:[%s4557 + $0x2c] sm:$0xf]
      %v4570 = vld [vmem:[%s4557 + $0x30] sm:$0xf]
      %v4571 = vld [vmem:[%s4557 + $0x34] sm:$0xf]
      %v4572 = vld [vmem:[%s4557 + $0x38] sm:$0xf]
      %v4573 = vld [vmem:[%s4557 + $0x3c] sm:$0xf]
      %v4575 = vunpack.c.l.b16 %v4556
      %v4576 = vpack.c.b16 %v3714, %v4575
      %vm4577 = vcmask 1044480
      %v4578 = vrot.slane %v4576, 3
      %v4579 = vrot.slane %v3751, 3
      %v4580 = vsel %vm4577, %v4578, %v4579
      %v4581 = vrot.slane %v3752, 3
      %v4582 = vsel %vm4577, %v4579, %v4581
      %v4583 = vrot.slane %v3753, 3
      %v4584 = vsel %vm4577, %v4581, %v4583
      %v4585 = vrot.slane %v3754, 3
      %v4586 = vsel %vm4577, %v4583, %v4585
      %v4587 = vrot.slane %v3755, 3
      %v4588 = vsel %vm4577, %v4585, %v4587
      %v4589 = vrot.slane %v3756, 3
      %v4590 = vsel %vm4577, %v4587, %v4589
      %v4591 = vrot.slane %v3757, 3
      %v4592 = vsel %vm4577, %v4589, %v4591
      %v4593 = vrot.slane %v3758, 3
      %v4594 = vsel %vm4577, %v4591, %v4593
      %v4595 = vrot.slane %v3759, 3
      %v4596 = vsel %vm4577, %v4593, %v4595
      %v4597 = vrot.slane %v3760, 3
      %v4598 = vsel %vm4577, %v4595, %v4597
      %v4599 = vrot.slane %v3761, 3
      %v4600 = vsel %vm4577, %v4597, %v4599
      %v4601 = vrot.slane %v3762, 3
      %v4602 = vsel %vm4577, %v4599, %v4601
      %v4603 = vrot.slane %v3763, 3
      %v4604 = vsel %vm4577, %v4601, %v4603
      %v4605 = vrot.slane %v3764, 3
      %v4606 = vsel %vm4577, %v4603, %v4605
      %v4607 = vrot.slane %v3765, 3
      %v4608 = vsel %vm4577, %v4605, %v4607
      %v4609 = vrot.slane %v3766, 3
      %v4610 = vsel %vm4577, %v4607, %v4609
      %v4611 = vrot.slane %v3767, 3
      %v4612 = vsel %vm4577, %v4609, %v4611
      %v4613 = vrot.slane %v4105, 3
      %v4614 = vsel %vm4577, %v4611, %v4613
      %v4649 = vunpack.c.l.b16 %v4558
      %v4650 = vunpack.c.l.b16 %v4559
      %v4651 = vunpack.c.l.b16 %v4560
      %v4652 = vunpack.c.l.b16 %v4561
      %v4653 = vunpack.c.l.b16 %v4562
      %v4654 = vunpack.c.l.b16 %v4563
      %v4655 = vunpack.c.l.b16 %v4564
      %v4656 = vunpack.c.l.b16 %v4565
      %v4657 = vunpack.c.l.b16 %v4566
      %v4658 = vunpack.c.l.b16 %v4567
      %v4659 = vunpack.c.l.b16 %v4568
      %v4660 = vunpack.c.l.b16 %v4569
      %v4661 = vunpack.c.l.b16 %v4570
      %v4662 = vunpack.c.l.b16 %v4571
      %v4663 = vunpack.c.l.b16 %v4572
      %v4664 = vunpack.c.l.b16 %v4573
      %v4665 = vpack.c.b16 %v4650, %v4649
      %v4666 = vpack.c.b16 %v4652, %v4651
      %v4667 = vpack.c.b16 %v4654, %v4653
      %v4668 = vpack.c.b16 %v4656, %v4655
      %v4669 = vpack.c.b16 %v4658, %v4657
      %v4670 = vpack.c.b16 %v4660, %v4659
      %v4671 = vpack.c.b16 %v4662, %v4661
      %v4672 = vpack.c.b16 %v4664, %v4663
      %4681 = vmatprep.subr.bf16.mxu0 0
      %4682 = vmatpush1.bf16.msra.mxu0 %v4665
      %4683 = vmatprep.subr.bf16.mxu0 0
      %4684 = vmatpush1.bf16.msra.mxu0 %v4666
      %4685 = vmatprep.subr.bf16.mxu0 0
      %4686 = vmatpush1.bf16.msra.mxu0 %v4667
      %4687 = vmatprep.subr.bf16.mxu0 0
      %4688 = vmatpush1.bf16.msra.mxu0 %v4668
      %4689 = vmatprep.subr.bf16.mxu0 0
      %4690 = vmatpush1.bf16.msra.mxu0 %v4669
      %4691 = vmatprep.subr.bf16.mxu0 0
      %4692 = vmatpush1.bf16.msra.mxu0 %v4670
      %4693 = vmatprep.subr.bf16.mxu0 0
      %4694 = vmatpush1.bf16.msra.mxu0 %v4671
      %4695 = vmatprep.subr.bf16.mxu0 0
      %4696 = vmatpush1.bf16.msra.mxu0 %v4672
      %4697 = vmatprep.subr.bf16.mxu0 0
      %4698 = vmatpush1.bf16.msra.mxu0 0
      %4699 = vmatprep.subr.bf16.mxu0 0
      %4700 = vmatpush1.bf16.msra.mxu0 0
      %4701 = vmatprep.subr.bf16.mxu0 0
      %4702 = vmatpush1.bf16.msra.mxu0 0
      %4703 = vmatprep.subr.bf16.mxu0 0
      %4704 = vmatpush1.bf16.msra.mxu0 0
      %4705 = vmatprep.subr.bf16.mxu0 0
      %4706 = vmatpush1.bf16.msra.mxu0 0
      %4707 = vmatprep.subr.bf16.mxu0 0
      %4708 = vmatpush1.bf16.msra.mxu0 0
      %4709 = vmatprep.subr.bf16.mxu0 0
      %4710 = vmatpush1.bf16.msra.mxu0 0
      %4711 = vmatprep.subr.bf16.mxu0 0
      %4712 = vmatpush1.bf16.msra.mxu0 0
      %4713 = vmatprep.mubr.bf16.mxu0 0
      %4714 = vmatmul.mubr.bf16.gmra.mrb[0].mxu0 %v4580
      %v4715 = vpop.f32.mrb[0].mxu0
      %v4716 = vadd.f32 0.0, %v4715
      %v4717 = vpop.f32.mrb[0].mxu0
      %v4718 = vpop.f32.mrb[0].mxu0
      %v4719 = vadd.f32 0.0, %v4718
      %v4720 = vpop.f32.mrb[0].mxu0
      %4721 = vmatprep.mubr.bf16.mxu0 0
      %4722 = vmatmul.mubr.bf16.gmra.mrb[0].mxu0 %v4582
      %v4723 = vpop.f32.mrb[0].mxu0
      %v4724 = vadd.f32 0.0, %v4723
      %v4725 = vpop.f32.mrb[0].mxu0
      %v4726 = vpop.f32.mrb[0].mxu0
      %v4727 = vadd.f32 0.0, %v4726
      %v4728 = vpop.f32.mrb[0].mxu0
      %4729 = vmatprep.mubr.bf16.mxu0 0
      %4730 = vmatmul.mubr.bf16.gmra.mrb[0].mxu0 %v4584
      %v4731 = vpop.f32.mrb[0].mxu0
      %v4732 = vadd.f32 0.0, %v4731
      %v4733 = vpop.f32.mrb[0].mxu0
      %v4734 = vpop.f32.mrb[0].mxu0
      %v4735 = vadd.f32 0.0, %v4734
      %v4736 = vpop.f32.mrb[0].mxu0
      %4737 = vmatprep.mubr.bf16.mxu0 0
      %4738 = vmatmul.mubr.bf16.gmra.mrb[0].mxu0 %v4586
      %v4739 = vpop.f32.mrb[0].mxu0
      %v4740 = vadd.f32 0.0, %v4739
      %v4741 = vpop.f32.mrb[0].mxu0
      %v4742 = vpop.f32.mrb[0].mxu0
      %v4743 = vadd.f32 0.0, %v4742
      %v4744 = vpop.f32.mrb[0].mxu0
      %4745 = vmatprep.mubr.bf16.mxu0 0
      %4746 = vmatmul.mubr.bf16.gmra.mrb[0].mxu0 %v4588
      %v4747 = vpop.f32.mrb[0].mxu0
      %v4748 = vadd.f32 0.0, %v4747
      %v4749 = vpop.f32.mrb[0].mxu0
      %v4750 = vpop.f32.mrb[0].mxu0
      %v4751 = vadd.f32 0.0, %v4750
      %v4752 = vpop.f32.mrb[0].mxu0
      %4753 = vmatprep.mubr.bf16.mxu0 0
      %4754 = vmatmul.mubr.bf16.gmra.mrb[0].mxu0 %v4590
      %v4755 = vpop.f32.mrb[0].mxu0
      %v4756 = vadd.f32 0.0, %v4755
      %v4757 = vpop.f32.mrb[0].mxu0
      %v4758 = vpop.f32.mrb[0].mxu0
      %v4759 = vadd.f32 0.0, %v4758
      %v4760 = vpop.f32.mrb[0].mxu0
      %4761 = vmatprep.mubr.bf16.mxu0 0
      %4762 = vmatmul.mubr.bf16.gmra.mrb[0].mxu0 %v4592
      %v4763 = vpop.f32.mrb[0].mxu0
      %v4764 = vadd.f32 0.0, %v4763
      %v4765 = vpop.f32.mrb[0].mxu0
      %v4766 = vpop.f32.mrb[0].mxu0
      %v4767 = vadd.f32 0.0, %v4766
      %v4768 = vpop.f32.mrb[0].mxu0
      %4769 = vmatprep.mubr.bf16.mxu0 0
      %4770 = vmatmul.mubr.bf16.gmra.mrb[0].mxu0 %v4594
      %v4771 = vpop.f32.mrb[0].mxu0
      %v4772 = vadd.f32 0.0, %v4771
      %v4773 = vpop.f32.mrb[0].mxu0
      %v4774 = vpop.f32.mrb[0].mxu0
      %v4775 = vadd.f32 0.0, %v4774
      %v4776 = vpop.f32.mrb[0].mxu0
      %4777 = vmatprep.mubr.bf16.mxu0 0
      %4778 = vmatmul.mubr.bf16.gmra.mrb[0].mxu0 %v4596
      %v4779 = vpop.f32.mrb[0].mxu0
      %v4780 = vadd.f32 0.0, %v4779
      %v4781 = vpop.f32.mrb[0].mxu0
      %v4782 = vpop.f32.mrb[0].mxu0
      %v4783 = vadd.f32 0.0, %v4782
      %v4784 = vpop.f32.mrb[0].mxu0
      %4785 = vmatprep.mubr.bf16.mxu0 0
      %4786 = vmatmul.mubr.bf16.gmra.mrb[0].mxu0 %v4598
      %v4787 = vpop.f32.mrb[0].mxu0
      %v4788 = vadd.f32 0.0, %v4787
      %v4789 = vpop.f32.mrb[0].mxu0
      %v4790 = vpop.f32.mrb[0].mxu0
      %v4791 = vadd.f32 0.0, %v4790
      %v4792 = vpop.f32.mrb[0].mxu0
      %4793 = vmatprep.mubr.bf16.mxu0 0
      %4794 = vmatmul.mubr.bf16.gmra.mrb[0].mxu0 %v4600
      %v4795 = vpop.f32.mrb[0].mxu0
      %v4796 = vadd.f32 0.0, %v4795
      %v4797 = vpop.f32.mrb[0].mxu0
      %v4798 = vpop.f32.mrb[0].mxu0
      %v4799 = vadd.f32 0.0, %v4798
      %v4800 = vpop.f32.mrb[0].mxu0
      %4801 = vmatprep.mubr.bf16.mxu0 0
      %4802 = vmatmul.mubr.bf16.gmra.mrb[0].mxu0 %v4602
      %v4803 = vpop.f32.mrb[0].mxu0
      %v4804 = vadd.f32 0.0, %v4803
      %v4805 = vpop.f32.mrb[0].mxu0
      %v4806 = vpop.f32.mrb[0].mxu0
      %v4807 = vadd.f32 0.0, %v4806
      %v4808 = vpop.f32.mrb[0].mxu0
      %4809 = vmatprep.mubr.bf16.mxu0 0
      %4810 = vmatmul.mubr.bf16.gmra.mrb[0].mxu0 %v4604
      %v4811 = vpop.f32.mrb[0].mxu0
      %v4812 = vadd.f32 0.0, %v4811
      %v4813 = vpop.f32.mrb[0].mxu0
      %v4814 = vpop.f32.mrb[0].mxu0
      %v4815 = vadd.f32 0.0, %v4814
      %v4816 = vpop.f32.mrb[0].mxu0
      %4817 = vmatprep.mubr.bf16.mxu0 0
      %4818 = vmatmul.mubr.bf16.gmra.mrb[0].mxu0 %v4606
      %v4819 = vpop.f32.mrb[0].mxu0
      %v4820 = vadd.f32 0.0, %v4819
      %v4821 = vpop.f32.mrb[0].mxu0
      %v4822 = vpop.f32.mrb[0].mxu0
      %v4823 = vadd.f32 0.0, %v4822
      %v4824 = vpop.f32.mrb[0].mxu0
      %4825 = vmatprep.mubr.bf16.mxu0 0
      %4826 = vmatmul.mubr.bf16.gmra.mrb[0].mxu0 %v4608
      %v4827 = vpop.f32.mrb[0].mxu0
      %v4828 = vadd.f32 0.0, %v4827
      %v4829 = vpop.f32.mrb[0].mxu0
      %v4830 = vpop.f32.mrb[0].mxu0
      %v4831 = vadd.f32 0.0, %v4830
      %v4832 = vpop.f32.mrb[0].mxu0
      %4833 = vmatprep.mubr.bf16.mxu0 0
      %4834 = vmatmul.mubr.bf16.gmra.mrb[0].mxu0 %v4610
      %v4835 = vpop.f32.mrb[0].mxu0
      %v4836 = vadd.f32 0.0, %v4835
      %v4837 = vpop.f32.mrb[0].mxu0
      %v4838 = vpop.f32.mrb[0].mxu0
      %v4839 = vadd.f32 0.0, %v4838
      %v4840 = vpop.f32.mrb[0].mxu0
      %4841 = vmatprep.mubr.bf16.mxu0 0
      %4842 = vmatmul.mubr.bf16.gmra.mrb[0].mxu0 %v4612
      %v4843 = vpop.f32.mrb[0].mxu0
      %v4844 = vadd.f32 0.0, %v4843
      %v4845 = vpop.f32.mrb[0].mxu0
      %v4846 = vpop.f32.mrb[0].mxu0
      %v4847 = vadd.f32 0.0, %v4846
      %v4848 = vpop.f32.mrb[0].mxu0
      %4849 = vmatprep.mubr.bf16.mxu0 0
      %4850 = vmatmul.mubr.bf16.gmra.mrb[0].mxu0 %v4614
      %v4851 = vpop.f32.mrb[0].mxu0
      %v4852 = vadd.f32 0.0, %v4851
      %v4853 = vpop.f32.mrb[0].mxu0
      %v4854 = vpop.f32.mrb[0].mxu0
      %v4855 = vadd.f32 0.0, %v4854
      %v4856 = vpop.f32.mrb[0].mxu0
      %4857 = vdwg.mxu0
      %v4858 = vadd.f32 %v4520, %v4716
      %v4859 = vadd.f32 %v4521, %v4719
      %v4860 = vadd.f32 %v4522, %v4724
      %v4861 = vadd.f32 %v4523, %v4727
      %v4862 = vadd.f32 %v4524, %v4732
      %v4863 = vadd.f32 %v4525, %v4735
      %v4864 = vadd.f32 %v4526, %v4740
      %v4865 = vadd.f32 %v4527, %v4743
      %v4866 = vadd.f32 %v4528, %v4748
      %v4867 = vadd.f32 %v4529, %v4751
      %v4868 = vadd.f32 %v4530, %v4756
      %v4869 = vadd.f32 %v4531, %v4759
      %v4870 = vadd.f32 %v4532, %v4764
      %v4871 = vadd.f32 %v4533, %v4767
      %v4872 = vadd.f32 %v4534, %v4772
      %v4873 = vadd.f32 %v4535, %v4775
      %v4874 = vadd.f32 %v4536, %v4780
      %v4875 = vadd.f32 %v4537, %v4783
      %v4876 = vadd.f32 %v4538, %v4788
      %v4877 = vadd.f32 %v4539, %v4791
      %v4878 = vadd.f32 %v4540, %v4796
      %v4879 = vadd.f32 %v4541, %v4799
      %v4880 = vadd.f32 %v4542, %v4804
      %v4881 = vadd.f32 %v4543, %v4807
      %v4882 = vadd.f32 %v4544, %v4812
      %v4883 = vadd.f32 %v4545, %v4815
      %v4884 = vadd.f32 %v4546, %v4820
      %v4885 = vadd.f32 %v4547, %v4823
      %v4886 = vadd.f32 %v4548, %v4828
      %v4887 = vadd.f32 %v4549, %v4831
      %v4888 = vadd.f32 %v4550, %v4836
      %v4889 = vadd.f32 %v4551, %v4839
      %v4890 = vadd.f32 %v4552, %v4844
      %v4891 = vadd.f32 %v4553, %v4847
      %v4892 = vadd.f32 %v4554, %v4852
      %v4893 = vadd.f32 %v4555, %v4855
      %v4894 = vld [vmem:[%s5] sm:$0x1]
      %v4896 = vlaneseq
      %v4897 = vshrl.u32 %v4896, 7
      %v4898 = vsub.s32 0, %v4897
      %v4899 = vrot.slane %v4894, %v4898
      %v4901 = vadd.f32 %v4858, %v4899
      %v4902 = vadd.f32 %v4859, %v4899
      %v4903 = vadd.f32 %v4860, %v4899
      %v4904 = vadd.f32 %v4861, %v4899
      %v4905 = vadd.f32 %v4862, %v4899
      %v4906 = vadd.f32 %v4863, %v4899
      %v4907 = vadd.f32 %v4864, %v4899
      %v4908 = vadd.f32 %v4865, %v4899
      %v4909 = vadd.f32 %v4866, %v4899
      %v4910 = vadd.f32 %v4867, %v4899
      %v4911 = vadd.f32 %v4868, %v4899
      %v4912 = vadd.f32 %v4869, %v4899
      %v4913 = vadd.f32 %v4870, %v4899
      %v4914 = vadd.f32 %v4871, %v4899
      %v4915 = vadd.f32 %v4872, %v4899
      %v4916 = vadd.f32 %v4873, %v4899
      %v4917 = vadd.f32 %v4874, %v4899
      %v4918 = vadd.f32 %v4875, %v4899
      %v4919 = vadd.f32 %v4876, %v4899
      %v4920 = vadd.f32 %v4877, %v4899
      %v4921 = vadd.f32 %v4878, %v4899
      %v4922 = vadd.f32 %v4879, %v4899
      %v4923 = vadd.f32 %v4880, %v4899
      %v4924 = vadd.f32 %v4881, %v4899
      %v4925 = vadd.f32 %v4882, %v4899
      %v4926 = vadd.f32 %v4883, %v4899
      %v4927 = vadd.f32 %v4884, %v4899
      %v4928 = vadd.f32 %v4885, %v4899
      %v4929 = vadd.f32 %v4886, %v4899
      %v4930 = vadd.f32 %v4887, %v4899
      %v4931 = vadd.f32 %v4888, %v4899
      %v4932 = vadd.f32 %v4889, %v4899
      %v4933 = vadd.f32 %v4890, %v4899
      %v4934 = vadd.f32 %v4891, %v4899
      %v4935 = vadd.f32 %v4892, %v4899
      %v4936 = vadd.f32 %v4893, %v4899
      %v4937 = vmax.f32 %v4901, 0.0
      %v4938 = vmax.f32 %v4902, 0.0
      %v4939 = vmax.f32 %v4903, 0.0
      %v4940 = vmax.f32 %v4904, 0.0
      %v4941 = vmax.f32 %v4905, 0.0
      %v4942 = vmax.f32 %v4906, 0.0
      %v4943 = vmax.f32 %v4907, 0.0
      %v4944 = vmax.f32 %v4908, 0.0
      %v4945 = vmax.f32 %v4909, 0.0
      %v4946 = vmax.f32 %v4910, 0.0
      %v4947 = vmax.f32 %v4911, 0.0
      %v4948 = vmax.f32 %v4912, 0.0
      %v4949 = vmax.f32 %v4913, 0.0
      %v4950 = vmax.f32 %v4914, 0.0
      %v4951 = vmax.f32 %v4915, 0.0
      %v4952 = vmax.f32 %v4916, 0.0
      %v4953 = vmax.f32 %v4917, 0.0
      %v4954 = vmax.f32 %v4918, 0.0
      %v4955 = vmax.f32 %v4919, 0.0
      %v4956 = vmax.f32 %v4920, 0.0
      %v4957 = vmax.f32 %v4921, 0.0
      %v4958 = vmax.f32 %v4922, 0.0
      %v4959 = vmax.f32 %v4923, 0.0
      %v4960 = vmax.f32 %v4924, 0.0
      %v4961 = vmax.f32 %v4925, 0.0
      %v4962 = vmax.f32 %v4926, 0.0
      %v4963 = vmax.f32 %v4927, 0.0
      %v4964 = vmax.f32 %v4928, 0.0
      %v4965 = vmax.f32 %v4929, 0.0
      %v4966 = vmax.f32 %v4930, 0.0
      %v4967 = vmax.f32 %v4931, 0.0
      %v4968 = vmax.f32 %v4932, 0.0
      %v4969 = vmax.f32 %v4933, 0.0
      %v4970 = vmax.f32 %v4934, 0.0
      %v4971 = vmax.f32 %v4935, 0.0
      %v4972 = vmax.f32 %v4936, 0.0
      %v4973 = vpack.c.bf16 %v4938, %v4937
      %v4974 = vpack.c.bf16 %v4940, %v4939
      %v4975 = vpack.c.bf16 %v4942, %v4941
      %v4976 = vpack.c.bf16 %v4944, %v4943
      %v4977 = vpack.c.bf16 %v4946, %v4945
      %v4978 = vpack.c.bf16 %v4948, %v4947
      %v4979 = vpack.c.bf16 %v4950, %v4949
      %v4980 = vpack.c.bf16 %v4952, %v4951
      %v4981 = vpack.c.bf16 %v4954, %v4953
      %v4982 = vpack.c.bf16 %v4956, %v4955
      %v4983 = vpack.c.bf16 %v4958, %v4957
      %v4984 = vpack.c.bf16 %v4960, %v4959
      %v4985 = vpack.c.bf16 %v4962, %v4961
      %v4986 = vpack.c.bf16 %v4964, %v4963
      %v4987 = vpack.c.bf16 %v4966, %v4965
      %v4988 = vpack.c.bf16 %v4968, %v4967
      %v4989 = vpack.c.bf16 %v4970, %v4969
      %v4990 = vpack.c.bf16 %v4972, %v4971
      %v5009 = vunpack.c.l.b16 %v4973
      %v5010 = vunpack.c.h.b16 %v4973
      %v5011 = vunpack.c.l.b16 %v4974
      %v5012 = vunpack.c.h.b16 %v4974
      %v5013 = vunpack.c.l.b16 %v4975
      %v5014 = vunpack.c.h.b16 %v4975
      %v5015 = vunpack.c.l.b16 %v4976
      %v5016 = vunpack.c.h.b16 %v4976
      %v5017 = vunpack.c.l.b16 %v4977
      %v5018 = vunpack.c.h.b16 %v4977
      %v5019 = vunpack.c.l.b16 %v4978
      %v5020 = vunpack.c.h.b16 %v4978
      %v5021 = vunpack.c.l.b16 %v4979
      %v5022 = vunpack.c.h.b16 %v4979
      %v5023 = vunpack.c.l.b16 %v4980
      %v5024 = vunpack.c.h.b16 %v4980
      %v5025 = vunpack.c.l.b16 %v4981
      %v5026 = vunpack.c.h.b16 %v4981
      %v5027 = vunpack.c.l.b16 %v4982
      %v5028 = vunpack.c.h.b16 %v4982
      %v5029 = vunpack.c.l.b16 %v4983
      %v5030 = vunpack.c.h.b16 %v4983
      %v5031 = vunpack.c.l.b16 %v4984
      %v5032 = vunpack.c.h.b16 %v4984
      %v5033 = vunpack.c.l.b16 %v4985
      %v5034 = vunpack.c.h.b16 %v4985
      %v5035 = vunpack.c.l.b16 %v4986
      %v5036 = vunpack.c.h.b16 %v4986
      %v5037 = vunpack.c.l.b16 %v4987
      %v5038 = vunpack.c.h.b16 %v4987
      %v5039 = vunpack.c.l.b16 %v4988
      %v5040 = vunpack.c.h.b16 %v4988
      %v5041 = vunpack.c.l.b16 %v4989
      %v5042 = vunpack.c.h.b16 %v4989
      %v5043 = vunpack.c.l.b16 %v4990
      %v5044 = vunpack.c.h.b16 %v4990
      %v5045 = vpack.c.b16 %v5009, %v5009
      %v5046 = vpack.c.b16 %v5010, %v5010
      %v5047 = vpack.c.b16 %v5011, %v5011
      %v5048 = vpack.c.b16 %v5012, %v5012
      %v5049 = vpack.c.b16 %v5013, %v5013
      %v5050 = vpack.c.b16 %v5014, %v5014
      %v5051 = vpack.c.b16 %v5015, %v5015
      %v5052 = vpack.c.b16 %v5016, %v5016
      %v5053 = vpack.c.b16 %v5017, %v5017
      %v5054 = vpack.c.b16 %v5018, %v5018
      %v5055 = vpack.c.b16 %v5019, %v5019
      %v5056 = vpack.c.b16 %v5020, %v5020
      %v5057 = vpack.c.b16 %v5021, %v5021
      %v5058 = vpack.c.b16 %v5022, %v5022
      %v5059 = vpack.c.b16 %v5023, %v5023
      %v5060 = vpack.c.b16 %v5024, %v5024
      %v5061 = vpack.c.b16 %v5025, %v5025
      %v5062 = vpack.c.b16 %v5026, %v5026
      %v5063 = vpack.c.b16 %v5027, %v5027
      %v5064 = vpack.c.b16 %v5028, %v5028
      %v5065 = vpack.c.b16 %v5029, %v5029
      %v5066 = vpack.c.b16 %v5030, %v5030
      %v5067 = vpack.c.b16 %v5031, %v5031
      %v5068 = vpack.c.b16 %v5032, %v5032
      %v5069 = vpack.c.b16 %v5033, %v5033
      %v5070 = vpack.c.b16 %v5034, %v5034
      %v5071 = vpack.c.b16 %v5035, %v5035
      %v5072 = vpack.c.b16 %v5036, %v5036
      %v5073 = vpack.c.b16 %v5037, %v5037
      %v5074 = vpack.c.b16 %v5038, %v5038
      %v5075 = vpack.c.b16 %v5039, %v5039
      %v5076 = vpack.c.b16 %v5040, %v5040
      %v5077 = vpack.c.b16 %v5041, %v5041
      %v5078 = vpack.c.b16 %v5042, %v5042
      %v5079 = vpack.c.b16 %v5043, %v5043
      %v5080 = vpack.c.b16 %v5044, %v5044
      %5117 = vst [vmem:[%s345] sm:$0xf] %v5045
      %5118 = vst [vmem:[%s345 + $0x4] sm:$0xf] %v5046
      %5119 = vst [vmem:[%s345 + $0x8] sm:$0xf] %v5047
      %5120 = vst [vmem:[%s345 + $0xc] sm:$0xf] %v5048
      %5121 = vst [vmem:[%s345 + $0x10] sm:$0xf] %v5049
      %5122 = vst [vmem:[%s345 + $0x14] sm:$0xf] %v5050
      %5123 = vst [vmem:[%s345 + $0x18] sm:$0xf] %v5051
      %5124 = vst [vmem:[%s345 + $0x1c] sm:$0xf] %v5052
      %5125 = vst [vmem:[%s345 + $0x20] sm:$0xf] %v5053
      %5126 = vst [vmem:[%s345 + $0x24] sm:$0xf] %v5054
      %5127 = vst [vmem:[%s345 + $0x28] sm:$0xf] %v5055
      %5128 = vst [vmem:[%s345 + $0x2c] sm:$0xf] %v5056
      %5129 = vst [vmem:[%s345 + $0x30] sm:$0xf] %v5057
      %5130 = vst [vmem:[%s345 + $0x34] sm:$0xf] %v5058
      %5131 = vst [vmem:[%s345 + $0x38] sm:$0xf] %v5059
      %5132 = vst [vmem:[%s345 + $0x3c] sm:$0xf] %v5060
      %5133 = vst [vmem:[%s345 + $0x40] sm:$0xf] %v5061
      %5134 = vst [vmem:[%s345 + $0x44] sm:$0xf] %v5062
      %5135 = vst [vmem:[%s345 + $0x48] sm:$0xf] %v5063
      %5136 = vst [vmem:[%s345 + $0x4c] sm:$0xf] %v5064
      %5137 = vst [vmem:[%s345 + $0x50] sm:$0xf] %v5065
      %5138 = vst [vmem:[%s345 + $0x54] sm:$0xf] %v5066
      %5139 = vst [vmem:[%s345 + $0x58] sm:$0xf] %v5067
      %5140 = vst [vmem:[%s345 + $0x5c] sm:$0xf] %v5068
      %5141 = vst [vmem:[%s345 + $0x60] sm:$0xf] %v5069
      %5142 = vst [vmem:[%s345 + $0x64] sm:$0xf] %v5070
      %5143 = vst [vmem:[%s345 + $0x68] sm:$0xf] %v5071
      %5144 = vst [vmem:[%s345 + $0x6c] sm:$0xf] %v5072
      %5145 = vst [vmem:[%s345 + $0x70] sm:$0xf] %v5073
      %5146 = vst [vmem:[%s345 + $0x74] sm:$0xf] %v5074
      %5147 = vst [vmem:[%s345 + $0x78] sm:$0xf] %v5075
      %5148 = vst [vmem:[%s345 + $0x7c] sm:$0xf] %v5076
      %5149 = vst [vmem:[%s345 + $0x80] sm:$0xf] %v5077
      %5150 = vst [vmem:[%s345 + $0x84] sm:$0xf] %v5078
      %5151 = vst [vmem:[%s345 + $0x88] sm:$0xf] %v5079
      %5152 = vst [vmem:[%s345 + $0x8c] sm:$0xf] %v5080
      %v5153 = vld [vmem:[%s335 + $0x13] sm:$0xff]
      %v5154 = vld [vmem:[%s335 + $0x1b] sm:$0xff]
      %v5155 = vld [vmem:[%s335 + $0x23] sm:$0xff]
      %v5156 = vld [vmem:[%s335 + $0x2b] sm:$0xff]
      %v5157 = vld [vmem:[%s335 + $0x33] sm:$0xff]
      %v5158 = vld [vmem:[%s335 + $0x3b] sm:$0xff]
      %v5159 = vld [vmem:[%s335 + $0x43] sm:$0xff]
      %v5160 = vld [vmem:[%s335 + $0x4b] sm:$0xff]
      %v5161 = vld [vmem:[%s335 + $0x53] sm:$0xff]
      %v5162 = vld [vmem:[%s335 + $0x5b] sm:$0xff]
      %v5163 = vld [vmem:[%s335 + $0x63] sm:$0xff]
      %v5164 = vld [vmem:[%s335 + $0x6b] sm:$0xff]
      %v5165 = vld [vmem:[%s335 + $0x73] sm:$0xff]
      %v5166 = vld [vmem:[%s335 + $0x7b] sm:$0xff]
      %v5167 = vld [vmem:[%s335 + $0x83] sm:$0xff]
      %v5168 = vld [vmem:[%s335 + $0x8b] sm:$0xff]
      %v5169 = vld [vmem:[%s335 + $0x93] sm:$0xff]
      %v5170 = vld [vmem:[%s335 + $0x9b] sm:$0xff]
      %v5171 = vld [vmem:[%s335 + $0xa3] sm:$0xff]
      %v5172 = vld [vmem:[%s335 + $0xab] sm:$0xff]
      %v5173 = vld [vmem:[%s335 + $0xb3] sm:$0xff]
      %v5174 = vld [vmem:[%s335 + $0xbb] sm:$0xff]
      %v5175 = vld [vmem:[%s335 + $0xc3] sm:$0xff]
      %v5176 = vld [vmem:[%s335 + $0xcb] sm:$0xff]
      %v5177 = vld [vmem:[%s335 + $0xd3] sm:$0xff]
      %v5178 = vld [vmem:[%s335 + $0xdb] sm:$0xff]
      %v5179 = vld [vmem:[%s335 + $0xe3] sm:$0xff]
      %v5180 = vld [vmem:[%s335 + $0xeb] sm:$0xff]
      %v5181 = vld [vmem:[%s335 + $0xf3] sm:$0xff]
      %v5182 = vld [vmem:[%s335 + $0xfb] sm:$0xff]
      %v5183 = vld [vmem:[%s335 + $0x103] sm:$0xff]
      %v5184 = vld [vmem:[%s335 + $0x10b] sm:$0xff]
      %v5185 = vld [vmem:[%s335 + $0x113] sm:$0xff]
      %v5186 = vld [vmem:[%s335 + $0x11b] sm:$0xff]
      %v5187 = vld [vmem:[%s335 + $0x123] sm:$0xff]
      %v5188 = vld [vmem:[%s335 + $0x12b] sm:$0xff]
      %v5189 = vld [vmem:[%s6] sm:$0xf]
      %v5190 = vld [vmem:[%s6 + $0x4] sm:$0xf]
      %v5191 = vld [vmem:[%s6 + $0x8] sm:$0xf]
      %v5192 = vld [vmem:[%s6 + $0xc] sm:$0xf]
      %v5193 = vld [vmem:[%s6 + $0x10] sm:$0xf]
      %v5194 = vld [vmem:[%s6 + $0x14] sm:$0xf]
      %v5195 = vld [vmem:[%s6 + $0x18] sm:$0xf]
      %v5196 = vld [vmem:[%s6 + $0x1c] sm:$0xf]
      %v5197 = vld [vmem:[%s6 + $0x20] sm:$0xf]
      %v5198 = vld [vmem:[%s6 + $0x24] sm:$0xf]
      %v5199 = vld [vmem:[%s6 + $0x28] sm:$0xf]
      %v5200 = vld [vmem:[%s6 + $0x2c] sm:$0xf]
      %v5201 = vld [vmem:[%s6 + $0x30] sm:$0xf]
      %v5202 = vld [vmem:[%s6 + $0x34] sm:$0xf]
      %v5203 = vld [vmem:[%s6 + $0x38] sm:$0xf]
      %v5204 = vld [vmem:[%s6 + $0x3c] sm:$0xf]
      %v5205 = vld [vmem:[%s7] sm:$0x1]
      %v5207 = vlaneseq
      %v5208 = vshrl.u32 %v5207, 7
      %v5209 = vsub.s32 0, %v5208
      %v5210 = vrot.slane %v5205, %v5209
      %v5228 = vunpack.c.l.b16 %v5189
      %v5229 = vunpack.c.l.b16 %v5190
      %v5230 = vunpack.c.l.b16 %v5191
      %v5231 = vunpack.c.l.b16 %v5192
      %v5232 = vunpack.c.l.b16 %v5193
      %v5233 = vunpack.c.l.b16 %v5194
      %v5234 = vunpack.c.l.b16 %v5195
      %v5235 = vunpack.c.l.b16 %v5196
      %v5236 = vunpack.c.l.b16 %v5197
      %v5237 = vunpack.c.l.b16 %v5198
      %v5238 = vunpack.c.l.b16 %v5199
      %v5239 = vunpack.c.l.b16 %v5200
      %v5240 = vunpack.c.l.b16 %v5201
      %v5241 = vunpack.c.l.b16 %v5202
      %v5242 = vunpack.c.l.b16 %v5203
      %v5243 = vunpack.c.l.b16 %v5204
      %v5244 = vpack.c.b16 %v5229, %v5228
      %v5245 = vpack.c.b16 %v5231, %v5230
      %v5246 = vpack.c.b16 %v5233, %v5232
      %v5247 = vpack.c.b16 %v5235, %v5234
      %v5248 = vpack.c.b16 %v5237, %v5236
      %v5249 = vpack.c.b16 %v5239, %v5238
      %v5250 = vpack.c.b16 %v5241, %v5240
      %v5251 = vpack.c.b16 %v5243, %v5242
      %5260 = vmatprep.subr.bf16.mxu0 0
      %5261 = vmatpush1.bf16.msra.mxu0 %v5244
      %5262 = vmatprep.subr.bf16.mxu0 0
      %5263 = vmatpush1.bf16.msra.mxu0 %v5245
      %5264 = vmatprep.subr.bf16.mxu0 0
      %5265 = vmatpush1.bf16.msra.mxu0 %v5246
      %5266 = vmatprep.subr.bf16.mxu0 0
      %5267 = vmatpush1.bf16.msra.mxu0 %v5247
      %5268 = vmatprep.subr.bf16.mxu0 0
      %5269 = vmatpush1.bf16.msra.mxu0 %v5248
      %5270 = vmatprep.subr.bf16.mxu0 0
      %5271 = vmatpush1.bf16.msra.mxu0 %v5249
      %5272 = vmatprep.subr.bf16.mxu0 0
      %5273 = vmatpush1.bf16.msra.mxu0 %v5250
      %5274 = vmatprep.subr.bf16.mxu0 0
      %5275 = vmatpush1.bf16.msra.mxu0 %v5251
      %5276 = vmatprep.subr.bf16.mxu0 0
      %5277 = vmatpush1.bf16.msra.mxu0 0
      %5278 = vmatprep.subr.bf16.mxu0 0
      %5279 = vmatpush1.bf16.msra.mxu0 0
      %5280 = vmatprep.subr.bf16.mxu0 0
      %5281 = vmatpush1.bf16.msra.mxu0 0
      %5282 = vmatprep.subr.bf16.mxu0 0
      %5283 = vmatpush1.bf16.msra.mxu0 0
      %5284 = vmatprep.subr.bf16.mxu0 0
      %5285 = vmatpush1.bf16.msra.mxu0 0
      %5286 = vmatprep.subr.bf16.mxu0 0
      %5287 = vmatpush1.bf16.msra.mxu0 0
      %5288 = vmatprep.subr.bf16.mxu0 0
      %5289 = vmatpush1.bf16.msra.mxu0 0
      %5290 = vmatprep.subr.bf16.mxu0 0
      %5291 = vmatpush1.bf16.msra.mxu0 0
      %5292 = vmatprep.mubr.bf16.mxu0 0
      %5293 = vmatmul.mubr.bf16.gmra.mrb[0].mxu0 %v4973
      %v5294 = vpop.f32.mrb[0].mxu0
      %v5295 = vadd.f32 %v5210, %v5294
      %v5296 = vpop.f32.mrb[0].mxu0
      %v5297 = vpop.f32.mrb[0].mxu0
      %v5298 = vadd.f32 %v5210, %v5297
      %v5299 = vpop.f32.mrb[0].mxu0
      %5300 = vmatprep.mubr.bf16.mxu0 0
      %5301 = vmatmul.mubr.bf16.gmra.mrb[0].mxu0 %v4974
      %v5302 = vpop.f32.mrb[0].mxu0
      %v5303 = vadd.f32 %v5210, %v5302
      %v5304 = vpop.f32.mrb[0].mxu0
      %v5305 = vpop.f32.mrb[0].mxu0
      %v5306 = vadd.f32 %v5210, %v5305
      %v5307 = vpop.f32.mrb[0].mxu0
      %5308 = vmatprep.mubr.bf16.mxu0 0
      %5309 = vmatmul.mubr.bf16.gmra.mrb[0].mxu0 %v4975
      %v5310 = vpop.f32.mrb[0].mxu0
      %v5311 = vadd.f32 %v5210, %v5310
      %v5312 = vpop.f32.mrb[0].mxu0
      %v5313 = vpop.f32.mrb[0].mxu0
      %v5314 = vadd.f32 %v5210, %v5313
      %v5315 = vpop.f32.mrb[0].mxu0
      %5316 = vmatprep.mubr.bf16.mxu0 0
      %5317 = vmatmul.mubr.bf16.gmra.mrb[0].mxu0 %v4976
      %v5318 = vpop.f32.mrb[0].mxu0
      %v5319 = vadd.f32 %v5210, %v5318
      %v5320 = vpop.f32.mrb[0].mxu0
      %v5321 = vpop.f32.mrb[0].mxu0
      %v5322 = vadd.f32 %v5210, %v5321
      %v5323 = vpop.f32.mrb[0].mxu0
      %5324 = vmatprep.mubr.bf16.mxu0 0
      %5325 = vmatmul.mubr.bf16.gmra.mrb[0].mxu0 %v4977
      %v5326 = vpop.f32.mrb[0].mxu0
      %v5327 = vadd.f32 %v5210, %v5326
      %v5328 = vpop.f32.mrb[0].mxu0
      %v5329 = vpop.f32.mrb[0].mxu0
      %v5330 = vadd.f32 %v5210, %v5329
      %v5331 = vpop.f32.mrb[0].mxu0
      %5332 = vmatprep.mubr.bf16.mxu0 0
      %5333 = vmatmul.mubr.bf16.gmra.mrb[0].mxu0 %v4978
      %v5334 = vpop.f32.mrb[0].mxu0
      %v5335 = vadd.f32 %v5210, %v5334
      %v5336 = vpop.f32.mrb[0].mxu0
      %v5337 = vpop.f32.mrb[0].mxu0
      %v5338 = vadd.f32 %v5210, %v5337
      %v5339 = vpop.f32.mrb[0].mxu0
      %5340 = vmatprep.mubr.bf16.mxu0 0
      %5341 = vmatmul.mubr.bf16.gmra.mrb[0].mxu0 %v4979
      %v5342 = vpop.f32.mrb[0].mxu0
      %v5343 = vadd.f32 %v5210, %v5342
      %v5344 = vpop.f32.mrb[0].mxu0
      %v5345 = vpop.f32.mrb[0].mxu0
      %v5346 = vadd.f32 %v5210, %v5345
      %v5347 = vpop.f32.mrb[0].mxu0
      %5348 = vmatprep.mubr.bf16.mxu0 0
      %5349 = vmatmul.mubr.bf16.gmra.mrb[0].mxu0 %v4980
      %v5350 = vpop.f32.mrb[0].mxu0
      %v5351 = vadd.f32 %v5210, %v5350
      %v5352 = vpop.f32.mrb[0].mxu0
      %v5353 = vpop.f32.mrb[0].mxu0
      %v5354 = vadd.f32 %v5210, %v5353
      %v5355 = vpop.f32.mrb[0].mxu0
      %5356 = vmatprep.mubr.bf16.mxu0 0
      %5357 = vmatmul.mubr.bf16.gmra.mrb[0].mxu0 %v4981
      %v5358 = vpop.f32.mrb[0].mxu0
      %v5359 = vadd.f32 %v5210, %v5358
      %v5360 = vpop.f32.mrb[0].mxu0
      %v5361 = vpop.f32.mrb[0].mxu0
      %v5362 = vadd.f32 %v5210, %v5361
      %v5363 = vpop.f32.mrb[0].mxu0
      %5364 = vmatprep.mubr.bf16.mxu0 0
      %5365 = vmatmul.mubr.bf16.gmra.mrb[0].mxu0 %v4982
      %v5366 = vpop.f32.mrb[0].mxu0
      %v5367 = vadd.f32 %v5210, %v5366
      %v5368 = vpop.f32.mrb[0].mxu0
      %v5369 = vpop.f32.mrb[0].mxu0
      %v5370 = vadd.f32 %v5210, %v5369
      %v5371 = vpop.f32.mrb[0].mxu0
      %5372 = vmatprep.mubr.bf16.mxu0 0
      %5373 = vmatmul.mubr.bf16.gmra.mrb[0].mxu0 %v4983
      %v5374 = vpop.f32.mrb[0].mxu0
      %v5375 = vadd.f32 %v5210, %v5374
      %v5376 = vpop.f32.mrb[0].mxu0
      %v5377 = vpop.f32.mrb[0].mxu0
      %v5378 = vadd.f32 %v5210, %v5377
      %v5379 = vpop.f32.mrb[0].mxu0
      %5380 = vmatprep.mubr.bf16.mxu0 0
      %5381 = vmatmul.mubr.bf16.gmra.mrb[0].mxu0 %v4984
      %v5382 = vpop.f32.mrb[0].mxu0
      %v5383 = vadd.f32 %v5210, %v5382
      %v5384 = vpop.f32.mrb[0].mxu0
      %v5385 = vpop.f32.mrb[0].mxu0
      %v5386 = vadd.f32 %v5210, %v5385
      %v5387 = vpop.f32.mrb[0].mxu0
      %5388 = vmatprep.mubr.bf16.mxu0 0
      %5389 = vmatmul.mubr.bf16.gmra.mrb[0].mxu0 %v4985
      %v5390 = vpop.f32.mrb[0].mxu0
      %v5391 = vadd.f32 %v5210, %v5390
      %v5392 = vpop.f32.mrb[0].mxu0
      %v5393 = vpop.f32.mrb[0].mxu0
      %v5394 = vadd.f32 %v5210, %v5393
      %v5395 = vpop.f32.mrb[0].mxu0
      %5396 = vmatprep.mubr.bf16.mxu0 0
      %5397 = vmatmul.mubr.bf16.gmra.mrb[0].mxu0 %v4986
      %v5398 = vpop.f32.mrb[0].mxu0
      %v5399 = vadd.f32 %v5210, %v5398
      %v5400 = vpop.f32.mrb[0].mxu0
      %v5401 = vpop.f32.mrb[0].mxu0
      %v5402 = vadd.f32 %v5210, %v5401
      %v5403 = vpop.f32.mrb[0].mxu0
      %5404 = vmatprep.mubr.bf16.mxu0 0
      %5405 = vmatmul.mubr.bf16.gmra.mrb[0].mxu0 %v4987
      %v5406 = vpop.f32.mrb[0].mxu0
      %v5407 = vadd.f32 %v5210, %v5406
      %v5408 = vpop.f32.mrb[0].mxu0
      %v5409 = vpop.f32.mrb[0].mxu0
      %v5410 = vadd.f32 %v5210, %v5409
      %v5411 = vpop.f32.mrb[0].mxu0
      %5412 = vmatprep.mubr.bf16.mxu0 0
      %5413 = vmatmul.mubr.bf16.gmra.mrb[0].mxu0 %v4988
      %v5414 = vpop.f32.mrb[0].mxu0
      %v5415 = vadd.f32 %v5210, %v5414
      %v5416 = vpop.f32.mrb[0].mxu0
      %v5417 = vpop.f32.mrb[0].mxu0
      %v5418 = vadd.f32 %v5210, %v5417
      %v5419 = vpop.f32.mrb[0].mxu0
      %5420 = vmatprep.mubr.bf16.mxu0 0
      %5421 = vmatmul.mubr.bf16.gmra.mrb[0].mxu0 %v4989
      %v5422 = vpop.f32.mrb[0].mxu0
      %v5423 = vadd.f32 %v5210, %v5422
      %v5424 = vpop.f32.mrb[0].mxu0
      %v5425 = vpop.f32.mrb[0].mxu0
      %v5426 = vadd.f32 %v5210, %v5425
      %v5427 = vpop.f32.mrb[0].mxu0
      %5428 = vmatprep.mubr.bf16.mxu0 0
      %5429 = vmatmul.mubr.bf16.gmra.mrb[0].mxu0 %v4990
      %v5430 = vpop.f32.mrb[0].mxu0
      %v5431 = vadd.f32 %v5210, %v5430
      %v5432 = vpop.f32.mrb[0].mxu0
      %v5433 = vpop.f32.mrb[0].mxu0
      %v5434 = vadd.f32 %v5210, %v5433
      %v5435 = vpop.f32.mrb[0].mxu0
      %5436 = vdwg.mxu0
      %v5437 = vadd.f32 %v5295, %v5153
      %v5438 = vadd.f32 %v5298, %v5154
      %v5439 = vadd.f32 %v5303, %v5155
      %v5440 = vadd.f32 %v5306, %v5156
      %v5441 = vadd.f32 %v5311, %v5157
      %v5442 = vadd.f32 %v5314, %v5158
      %v5443 = vadd.f32 %v5319, %v5159
      %v5444 = vadd.f32 %v5322, %v5160
      %v5445 = vadd.f32 %v5327, %v5161
      %v5446 = vadd.f32 %v5330, %v5162
      %v5447 = vadd.f32 %v5335, %v5163
      %v5448 = vadd.f32 %v5338, %v5164
      %v5449 = vadd.f32 %v5343, %v5165
      %v5450 = vadd.f32 %v5346, %v5166
      %v5451 = vadd.f32 %v5351, %v5167
      %v5452 = vadd.f32 %v5354, %v5168
      %v5453 = vadd.f32 %v5359, %v5169
      %v5454 = vadd.f32 %v5362, %v5170
      %v5455 = vadd.f32 %v5367, %v5171
      %v5456 = vadd.f32 %v5370, %v5172
      %v5457 = vadd.f32 %v5375, %v5173
      %v5458 = vadd.f32 %v5378, %v5174
      %v5459 = vadd.f32 %v5383, %v5175
      %v5460 = vadd.f32 %v5386, %v5176
      %v5461 = vadd.f32 %v5391, %v5177
      %v5462 = vadd.f32 %v5394, %v5178
      %v5463 = vadd.f32 %v5399, %v5179
      %v5464 = vadd.f32 %v5402, %v5180
      %v5465 = vadd.f32 %v5407, %v5181
      %v5466 = vadd.f32 %v5410, %v5182
      %v5467 = vadd.f32 %v5415, %v5183
      %v5468 = vadd.f32 %v5418, %v5184
      %v5469 = vadd.f32 %v5423, %v5185
      %v5470 = vadd.f32 %v5426, %v5186
      %v5471 = vadd.f32 %v5431, %v5187
      %v5472 = vadd.f32 %v5434, %v5188
      %v5473 = vmax.f32 %v5437, 0.0
      %v5474 = vmax.f32 %v5438, 0.0
      %v5475 = vmax.f32 %v5439, 0.0
      %v5476 = vmax.f32 %v5440, 0.0
      %v5477 = vmax.f32 %v5441, 0.0
      %v5478 = vmax.f32 %v5442, 0.0
      %v5479 = vmax.f32 %v5443, 0.0
      %v5480 = vmax.f32 %v5444, 0.0
      %v5481 = vmax.f32 %v5445, 0.0
      %v5482 = vmax.f32 %v5446, 0.0
      %v5483 = vmax.f32 %v5447, 0.0
      %v5484 = vmax.f32 %v5448, 0.0
      %v5485 = vmax.f32 %v5449, 0.0
      %v5486 = vmax.f32 %v5450, 0.0
      %v5487 = vmax.f32 %v5451, 0.0
      %v5488 = vmax.f32 %v5452, 0.0
      %v5489 = vmax.f32 %v5453, 0.0
      %v5490 = vmax.f32 %v5454, 0.0
      %v5491 = vmax.f32 %v5455, 0.0
      %v5492 = vmax.f32 %v5456, 0.0
      %v5493 = vmax.f32 %v5457, 0.0
      %v5494 = vmax.f32 %v5458, 0.0
      %v5495 = vmax.f32 %v5459, 0.0
      %v5496 = vmax.f32 %v5460, 0.0
      %v5497 = vmax.f32 %v5461, 0.0
      %v5498 = vmax.f32 %v5462, 0.0
      %v5499 = vmax.f32 %v5463, 0.0
      %v5500 = vmax.f32 %v5464, 0.0
      %v5501 = vmax.f32 %v5465, 0.0
      %v5502 = vmax.f32 %v5466, 0.0
      %v5503 = vmax.f32 %v5467, 0.0
      %v5504 = vmax.f32 %v5468, 0.0
      %v5505 = vmax.f32 %v5469, 0.0
      %v5506 = vmax.f32 %v5470, 0.0
      %v5507 = vmax.f32 %v5471, 0.0
      %v5508 = vmax.f32 %v5472, 0.0
      %v5509 = vpack.c.bf16 %v5474, %v5473
      %v5510 = vpack.c.bf16 %v5476, %v5475
      %v5511 = vpack.c.bf16 %v5478, %v5477
      %v5512 = vpack.c.bf16 %v5480, %v5479
      %v5513 = vpack.c.bf16 %v5482, %v5481
      %v5514 = vpack.c.bf16 %v5484, %v5483
      %v5515 = vpack.c.bf16 %v5486, %v5485
      %v5516 = vpack.c.bf16 %v5488, %v5487
      %v5517 = vpack.c.bf16 %v5490, %v5489
      %v5518 = vpack.c.bf16 %v5492, %v5491
      %v5519 = vpack.c.bf16 %v5494, %v5493
      %v5520 = vpack.c.bf16 %v5496, %v5495
      %v5521 = vpack.c.bf16 %v5498, %v5497
      %v5522 = vpack.c.bf16 %v5500, %v5499
      %v5523 = vpack.c.bf16 %v5502, %v5501
      %v5524 = vpack.c.bf16 %v5504, %v5503
      %v5525 = vpack.c.bf16 %v5506, %v5505
      %v5526 = vpack.c.bf16 %v5508, %v5507
      %v5545 = vunpack.c.l.b16 %v5509
      %v5546 = vunpack.c.h.b16 %v5509
      %v5547 = vunpack.c.l.b16 %v5510
      %v5548 = vunpack.c.h.b16 %v5510
      %v5549 = vunpack.c.l.b16 %v5511
      %v5550 = vunpack.c.h.b16 %v5511
      %v5551 = vunpack.c.l.b16 %v5512
      %v5552 = vunpack.c.h.b16 %v5512
      %v5553 = vunpack.c.l.b16 %v5513
      %v5554 = vunpack.c.h.b16 %v5513
      %v5555 = vunpack.c.l.b16 %v5514
      %v5556 = vunpack.c.h.b16 %v5514
      %v5557 = vunpack.c.l.b16 %v5515
      %v5558 = vunpack.c.h.b16 %v5515
      %v5559 = vunpack.c.l.b16 %v5516
      %v5560 = vunpack.c.h.b16 %v5516
      %v5561 = vunpack.c.l.b16 %v5517
      %v5562 = vunpack.c.h.b16 %v5517
      %v5563 = vunpack.c.l.b16 %v5518
      %v5564 = vunpack.c.h.b16 %v5518
      %v5565 = vunpack.c.l.b16 %v5519
      %v5566 = vunpack.c.h.b16 %v5519
      %v5567 = vunpack.c.l.b16 %v5520
      %v5568 = vunpack.c.h.b16 %v5520
      %v5569 = vunpack.c.l.b16 %v5521
      %v5570 = vunpack.c.h.b16 %v5521
      %v5571 = vunpack.c.l.b16 %v5522
      %v5572 = vunpack.c.h.b16 %v5522
      %v5573 = vunpack.c.l.b16 %v5523
      %v5574 = vunpack.c.h.b16 %v5523
      %v5575 = vunpack.c.l.b16 %v5524
      %v5576 = vunpack.c.h.b16 %v5524
      %v5577 = vunpack.c.l.b16 %v5525
      %v5578 = vunpack.c.h.b16 %v5525
      %v5579 = vunpack.c.l.b16 %v5526
      %v5580 = vunpack.c.h.b16 %v5526
      %v5581 = vpack.c.b16 %v5545, %v5545
      %v5582 = vpack.c.b16 %v5546, %v5546
      %v5583 = vpack.c.b16 %v5547, %v5547
      %v5584 = vpack.c.b16 %v5548, %v5548
      %v5585 = vpack.c.b16 %v5549, %v5549
      %v5586 = vpack.c.b16 %v5550, %v5550
      %v5587 = vpack.c.b16 %v5551, %v5551
      %v5588 = vpack.c.b16 %v5552, %v5552
      %v5589 = vpack.c.b16 %v5553, %v5553
      %v5590 = vpack.c.b16 %v5554, %v5554
      %v5591 = vpack.c.b16 %v5555, %v5555
      %v5592 = vpack.c.b16 %v5556, %v5556
      %v5593 = vpack.c.b16 %v5557, %v5557
      %v5594 = vpack.c.b16 %v5558, %v5558
      %v5595 = vpack.c.b16 %v5559, %v5559
      %v5596 = vpack.c.b16 %v5560, %v5560
      %v5597 = vpack.c.b16 %v5561, %v5561
      %v5598 = vpack.c.b16 %v5562, %v5562
      %v5599 = vpack.c.b16 %v5563, %v5563
      %v5600 = vpack.c.b16 %v5564, %v5564
      %v5601 = vpack.c.b16 %v5565, %v5565
      %v5602 = vpack.c.b16 %v5566, %v5566
      %v5603 = vpack.c.b16 %v5567, %v5567
      %v5604 = vpack.c.b16 %v5568, %v5568
      %v5605 = vpack.c.b16 %v5569, %v5569
      %v5606 = vpack.c.b16 %v5570, %v5570
      %v5607 = vpack.c.b16 %v5571, %v5571
      %v5608 = vpack.c.b16 %v5572, %v5572
      %v5609 = vpack.c.b16 %v5573, %v5573
      %v5610 = vpack.c.b16 %v5574, %v5574
      %v5611 = vpack.c.b16 %v5575, %v5575
      %v5612 = vpack.c.b16 %v5576, %v5576
      %v5613 = vpack.c.b16 %v5577, %v5577
      %v5614 = vpack.c.b16 %v5578, %v5578
      %v5615 = vpack.c.b16 %v5579, %v5579
      %v5616 = vpack.c.b16 %v5580, %v5580
      %5653 = vst [vmem:[%s340] sm:$0xf] %v5581
      %5654 = vst [vmem:[%s340 + $0x4] sm:$0xf] %v5582
      %5655 = vst [vmem:[%s340 + $0x8] sm:$0xf] %v5583
      %5656 = vst [vmem:[%s340 + $0xc] sm:$0xf] %v5584
      %5657 = vst [vmem:[%s340 + $0x10] sm:$0xf] %v5585
      %5658 = vst [vmem:[%s340 + $0x14] sm:$0xf] %v5586
      %5659 = vst [vmem:[%s340 + $0x18] sm:$0xf] %v5587
      %5660 = vst [vmem:[%s340 + $0x1c] sm:$0xf] %v5588
      %5661 = vst [vmem:[%s340 + $0x20] sm:$0xf] %v5589
      %5662 = vst [vmem:[%s340 + $0x24] sm:$0xf] %v5590
      %5663 = vst [vmem:[%s340 + $0x28] sm:$0xf] %v5591
      %5664 = vst [vmem:[%s340 + $0x2c] sm:$0xf] %v5592
      %5665 = vst [vmem:[%s340 + $0x30] sm:$0xf] %v5593
      %5666 = vst [vmem:[%s340 + $0x34] sm:$0xf] %v5594
      %5667 = vst [vmem:[%s340 + $0x38] sm:$0xf] %v5595
      %5668 = vst [vmem:[%s340 + $0x3c] sm:$0xf] %v5596
      %5669 = vst [vmem:[%s340 + $0x40] sm:$0xf] %v5597
      %5670 = vst [vmem:[%s340 + $0x44] sm:$0xf] %v5598
      %5671 = vst [vmem:[%s340 + $0x48] sm:$0xf] %v5599
      %5672 = vst [vmem:[%s340 + $0x4c] sm:$0xf] %v5600
      %5673 = vst [vmem:[%s340 + $0x50] sm:$0xf] %v5601
      %5674 = vst [vmem:[%s340 + $0x54] sm:$0xf] %v5602
      %5675 = vst [vmem:[%s340 + $0x58] sm:$0xf] %v5603
      %5676 = vst [vmem:[%s340 + $0x5c] sm:$0xf] %v5604
      %5677 = vst [vmem:[%s340 + $0x60] sm:$0xf] %v5605
      %5678 = vst [vmem:[%s340 + $0x64] sm:$0xf] %v5606
      %5679 = vst [vmem:[%s340 + $0x68] sm:$0xf] %v5607
      %5680 = vst [vmem:[%s340 + $0x6c] sm:$0xf] %v5608
      %5681 = vst [vmem:[%s340 + $0x70] sm:$0xf] %v5609
      %5682 = vst [vmem:[%s340 + $0x74] sm:$0xf] %v5610
      %5683 = vst [vmem:[%s340 + $0x78] sm:$0xf] %v5611
      %5684 = vst [vmem:[%s340 + $0x7c] sm:$0xf] %v5612
      %5685 = vst [vmem:[%s340 + $0x80] sm:$0xf] %v5613
      %5686 = vst [vmem:[%s340 + $0x84] sm:$0xf] %v5614
      %5687 = vst [vmem:[%s340 + $0x88] sm:$0xf] %v5615
      %5688 = vst [vmem:[%s340 + $0x8c] sm:$0xf] %v5616
      %p5689 = scmp.lt.s32.totalorder %s21, 1
      %s5690 = scalar_select %p5689, %s21, 1
      %s5691 = smul.addr %s5690, 36
      %s5692 = smul.addr %s5691, 4
      %s5693 = scalar_lea.vmem %s8, %s5692
      %p5694 = scmp.lt.s32.totalorder %s21, 1
      %s5695 = scalar_select %p5694, %s21, 1
      %s5696 = smul.addr %s5695, 36
      %s5697 = smul.addr %s5696, 4
      %s5698 = scalar_lea.vmem %s9, %s5697
      // Predicated region
      $region53: #{conv_block_forward.1} parent=51 // pred_check
        %p5699 = pneg %p212
      $region54: #{conv_block_forward.1} parent=51 // pred_check_branch
        %5701 = sbr.rel (%p5699) target = $region56
      $region55: #{conv_block_forward.1} parent=51 // pred_region
        _
      $region56: #{conv_block_forward.1} parent=51 // pred_fallthru
        _
      // Predicated region
      $region57: #{conv_block_forward.1} parent=51 // pred_check
        %p5702 = pneg %p238
      $region58: #{conv_block_forward.1} parent=51 // pred_check_branch
        %5704 = sbr.rel (%p5702) target = $region60
      $region59: #{conv_block_forward.1} parent=51 // pred_region
        _
      $region60: #{conv_block_forward.1} parent=51 // pred_fallthru
        _
    $region52: #{conv_block_forward.1} parent=5 // pred_fallthru
      _
    %p5705 = scmp.le.s32.totalorder 2, %s16
    // Predicated region
    $region61: #{conv_block_forward.1} parent=5 // pred_check
      %p5706 = pneg %p5705
    $region62: #{conv_block_forward.1} parent=5 // pred_check_branch
      %5708 = sbr.rel (%p5706) target = $region64
    $region63: #{conv_block_forward.1} parent=5 // pred_region
      %s5709 = ssub.s32 %s16, 2
      // Predicated region
      $region65: #{conv_block_forward.1} parent=63 // pred_check
        %p5710 = pneg %p218
      $region66: #{conv_block_forward.1} parent=63 // pred_check_branch
        %5712 = sbr.rel (%p5710) target = $region68
      $region67: #{conv_block_forward.1} parent=63 // pred_region
        %p5713 = scmp.lt.s32.totalorder %s22, 1
        %s5714 = scalar_select %p5713, %s22, 1
        %s5715 = smul.addr %s5714, 36
        %s5716 = smul.addr %s5715, 4
        %s5717 = scalar_lea.vmem %s8, %s5716
      $region68: #{conv_block_forward.1} parent=63 // pred_fallthru
        _
      // Predicated region
      $region69: #{conv_block_forward.1} parent=63 // pred_check
        %p5718 = pneg %p244
      $region70: #{conv_block_forward.1} parent=63 // pred_check_branch
        %5720 = sbr.rel (%p5718) target = $region72
      $region71: #{conv_block_forward.1} parent=63 // pred_region
        %p5721 = scmp.lt.s32.totalorder %s22, 1
        %s5722 = scalar_select %p5721, %s22, 1
        %s5723 = smul.addr %s5722, 36
        %s5724 = smul.addr %s5723, 4
        %s5725 = scalar_lea.vmem %s9, %s5724
      $region72: #{conv_block_forward.1} parent=63 // pred_fallthru
        _
    $region64: #{conv_block_forward.1} parent=5 // pred_fallthru
      _
  $region6: #{conv_block_forward.1} parent=0 // loop_footer
    %s20 = sadd.s32 1, %s16
  $region7: #{conv_block_forward.1} parent=0 // loop_footer_branch
    %15 = sbr.rel target = $region3
  $region8: #{conv_block_forward.1} parent=0 // loop_exit
    _

</llo_original>
